<compile_context>
chip_gen: v5e
topology: v5e:2x2
jax: 0.10.0
libtpu: 0.0.40
codegen_flags: <defaults>
</compile_context>

<pallas_src>
import jax
import jax.numpy as jnp
from jax.experimental import pallas as pl
from jax.experimental.pallas import tpu as pltpu

# ----------------------------- problem sizes --------------------------------
VOCAB = 50
VOCAB_PAD = 64    # embedding table padded with zero rows for aligned K
EMBED = 16
HID = 32          # hidden_dim -> bidirectional output dim = 2*HID = 64
NCLS = 2
BATCH = 2
SEQ = 8
BATCH_TILE = 8    # sublane-full per-invocation batch tile


# ----------------------------- fused Pallas kernel ---------------------------
def fused_forward_kernel(ids_ref, w0_ref, whh0_ref, b0_ref,
                         wih1_ref, whh1_ref, b1_ref,
                         aw_ref, ab_ref, fw_ref, fb_ref,
                         out_ref):
    """Whole SpamDetectorLSTM forward on VMEM-resident operands.

    ids_ref : (S*B, 1) int32   time-major flattened token ids (this batch tile)
    w0_ref  : (Vp, 8H)         emb @ W_ih0  (embedding folded into layer-0 proj)
    whh*    : (2H, 8H)         block-diagonal fwd+bwd hidden->gate weights
    wih1    : (2H, 8H)         packed layer-1 input->gate weights (gate-major)
    b*      : (1, 8H)          packed combined biases (b_ih + b_hh)
    aw/ab   : (2H, 1) / (1,1)  attention linear
    fw/fb   : (2H, C) / (1,C)  final linear
    out_ref : (B, C)           logits for this batch tile
    """
    B = out_ref.shape[0]
    H2 = whh0_ref.shape[0]          # 2 * hidden
    H = H2 // 2
    H8 = whh0_ref.shape[1]          # 8 * hidden
    SB = ids_ref.shape[0]
    S = SB // B
    Vp = w0_ref.shape[0]

    # ---- embedding folded into layer-0 input projection ----------------------
    ids = jnp.clip(ids_ref[...], 0, VOCAB - 1)                       # (S*B, 1)
    vocab_iota = jax.lax.broadcasted_iota(jnp.int32, (SB, Vp), 1)
    onehot = jnp.where(ids == vocab_iota, 1.0, 0.0)                  # (S*B, Vp)
    g_in0 = jnp.dot(onehot, w0_ref[...],
                    preferred_element_type=jnp.float32) + b0_ref[...]  # (S*B, 8H)

    # Column c of a packed (., 8H) gate tensor belongs to the forward direction
    # iff (c mod 2H) < H   (layout [i_f i_b f_f f_b g_f g_b o_f o_b]).
    lane_sb = jax.lax.broadcasted_iota(jnp.int32, (SB, H8), 1)
    fwd_cols_sb = (lane_sb % H2) < H                                  # (S*B, 8H)
    lane_b = jax.lax.broadcasted_iota(jnp.int32, (B, H8), 1)
    tanh_cols = (lane_b >= 2 * H2) & (lane_b < 3 * H2)                # "g" gate

    def bilstm_layer(g_in, whh):
        # Hoisted out of the recurrence: fwd columns read time t, bwd columns
        # read time S-1-t.  Build the selected tensor once, full width (the
        # time reversal is a static sublane permutation at trace time).
        g_rev = jnp.concatenate(
            [g_in[(S - 1 - t) * B:(S - t) * B, :] for t in range(S)], axis=0)
        g_sel = jnp.where(fwd_cols_sb, g_in, g_rev)                   # (S*B, 8H)

        h = jnp.zeros((B, H2), jnp.float32)      # [h_fwd | h_bwd]
        c = jnp.zeros((B, H2), jnp.float32)
        outs_f = [None] * S
        outs_b = [None] * S
        for t in range(S):                        # static S -> fully unrolled
            g = g_sel[t * B:(t + 1) * B, :] + jnp.dot(
                h, whh, preferred_element_type=jnp.float32)           # (B, 8H)
            # Full-width activation with a lane mask: one tanh + one sigmoid
            # + one select instead of four sub-width EUP launches per step.
            act = jnp.where(tanh_cols, jnp.tanh(g), jax.nn.sigmoid(g))
            i = act[:, 0:H2]
            f = act[:, H2:2 * H2]
            gg = act[:, 2 * H2:3 * H2]
            o = act[:, 3 * H2:4 * H2]
            c = f * c + i * gg
            h = o * jnp.tanh(c)
            outs_f[t] = h[:, :H]                  # fwd output at position t
            outs_b[S - 1 - t] = h[:, H:]          # bwd output at position S-1-t
        return [jnp.concatenate([outs_f[t], outs_b[t]], axis=-1)
                for t in range(S)]                # S x (B, 2H)

    outs0 = bilstm_layer(g_in0, whh0_ref[...])
    x1 = jnp.concatenate(outs0, axis=0)           # (S*B, 2H) time-major
    g_in1 = jnp.dot(x1, wih1_ref[...],
                    preferred_element_type=jnp.float32) + b1_ref[...]
    outs1 = bilstm_layer(g_in1, whh1_ref[...])
    y1 = jnp.concatenate(outs1, axis=0)           # (S*B, 2H)

    # ---- attention pooling + FC (epilogue, off the critical path) ------------
    s_flat = jnp.dot(y1, aw_ref[...],
                     preferred_element_type=jnp.float32)              # (S*B, 1)
    scores = jnp.concatenate(
        [s_flat[t * B:(t + 1) * B, :] for t in range(S)], axis=1)     # (B, S)
    scores = scores + ab_ref[...]
    scores = scores - jnp.max(scores, axis=1, keepdims=True)
    e = jnp.exp(scores)
    w = e / jnp.sum(e, axis=1, keepdims=True)                         # (B, S)
    ctx = jnp.zeros((B, H2), jnp.float32)
    for t in range(S):
        ctx = ctx + w[:, t:t + 1] * outs1[t]                          # (B, 2H)
    # TODO(synk): nn.Dropout on the context vector is identity at inference.
    out_ref[...] = (jnp.dot(ctx, fw_ref[...],
                            preferred_element_type=jnp.float32)
                    + fb_ref[...])


# ----------------------------- weight packing --------------------------------
def pack_bidir_weights(w_ih_f, w_hh_f, b_f, w_ih_b, w_hh_b, b_b):
    """Pack fwd/bwd gate weights gate-major: cols [i_f i_b f_f f_b g_f g_b o_f o_b].

    Returns
      wih : (Din, 8H)
      whh : (2H, 8H)   block-diagonal (h_fwd only drives fwd gates, h_bwd bwd)
      b   : (1, 8H)    combined bias (for real PyTorch weights: bias_ih + bias_hh)
    """
    H = HID
    din = w_ih_f.shape[0]
    wih = jnp.zeros((din, 8 * H), jnp.float32)
    whh = jnp.zeros((2 * H, 8 * H), jnp.float32)
    b = jnp.zeros((1, 8 * H), jnp.float32)
    for k in range(4):                       # PyTorch gate order i, f, g, o
        cols_g = slice(k * H, (k + 1) * H)
        cols_f = slice(2 * k * H, (2 * k + 1) * H)
        cols_b = slice((2 * k + 1) * H, (2 * k + 2) * H)
        wih = wih.at[:, cols_f].set(w_ih_f[:, cols_g])
        wih = wih.at[:, cols_b].set(w_ih_b[:, cols_g])
        whh = whh.at[:H, cols_f].set(w_hh_f[:, cols_g])
        whh = whh.at[H:, cols_b].set(w_hh_b[:, cols_g])
        b = b.at[:, cols_f].set(b_f[:, cols_g])
        b = b.at[:, cols_b].set(b_b[:, cols_g])
    return wih, whh, b


# ----------------------------- wrapper ----------------------------------------
def forward_pallas(ids, p, *, batch_tile=BATCH_TILE):
    """ids: (B, S) int32 token ids. Returns (B, NCLS) logits."""
    B_in, S = ids.shape
    Bt = batch_tile
    num_tiles = -(-B_in // Bt)
    B_pad = num_tiles * Bt

    # Pad batch to a sublane-full multiple of the tile (padded rows use id 0
    # = padding row; they are dropped before returning).
    ids_pad = jnp.zeros((B_pad, S), jnp.int32).at[:B_in].set(ids.astype(jnp.int32))
    # Blocked time-major layout: row (i*S*Bt + t*Bt + j) = ids_pad[i*Bt + j, t]
    ids_blk = (ids_pad.reshape(num_tiles, Bt, S)
               .transpose(0, 2, 1)
               .reshape(num_tiles * S * Bt, 1))

    emb = jnp.zeros((VOCAB_PAD, EMBED), jnp.float32).at[:VOCAB].set(p["emb"])
    wih0, whh0, b0 = pack_bidir_weights(*p["l0_f"], *p["l0_b"])
    wih1, whh1, b1 = pack_bidir_weights(*p["l1_f"], *p["l1_b"])
    # Fold the embedding into the layer-0 input projection (exact: one-hot
    # rows of the table select exact rows of this product).
    w0 = emb @ wih0                                            # (Vp, 8H)
    aw = jnp.transpose(p["aw"])                                # (2H, 1)

    operands = (ids_blk, w0, whh0, b0, wih1, whh1, b1,
                aw, p["ab"], p["fw"], p["fb"])

    if num_tiles == 1:
        # Single batch tile: no grid at all (no pipeline scaffolding); all
        # operands are whole-array VMEM residents (~0.25 MiB total).
        out = pl.pallas_call(
            fused_forward_kernel,
            out_shape=jax.ShapeDtypeStruct((B_pad, NCLS), jnp.float32),
        )(*operands)
    else:
        # Batch-tiled grid marked "parallel": on v7x both TensorCores each
        # take a slice of the batch; on v5e/v6e it is a sequential loop.
        def full(a):
            return pl.BlockSpec(a.shape, lambda i: (0,) * a.ndim)
        in_specs = ([pl.BlockSpec((S * Bt, 1), lambda i: (i, 0))]
                    + [full(a) for a in operands[1:]])
        out = pl.pallas_call(
            fused_forward_kernel,
            out_shape=jax.ShapeDtypeStruct((B_pad, NCLS), jnp.float32),
            grid=(num_tiles,),
            in_specs=in_specs,
            out_specs=pl.BlockSpec((Bt, NCLS), lambda i: (i, 0)),
            compiler_params=pltpu.CompilerParams(
                dimension_semantics=("parallel",)),
        )(*operands)
    return out[:B_in]


# ----------------------------- pure-JAX reference ----------------------------
def forward_ref(ids, p):
    ids = jnp.clip(ids, 0, VOCAB - 1)
    emb = p["emb"][ids]
    x = jnp.transpose(emb, (1, 0, 2))
    H = HID

    def run_dir(x_tm, w_ih, w_hh, b):
        B = x_tm.shape[1]

        def step(carry, x_t):
            h, c = carry
            g = x_t @ w_ih + h @ w_hh + b
            i = jax.nn.sigmoid(g[:, :H])
            f = jax.nn.sigmoid(g[:, H:2 * H])
            gg = jnp.tanh(g[:, 2 * H:3 * H])
            o = jax.nn.sigmoid(g[:, 3 * H:])
            c = f * c + i * gg
            h = o * jnp.tanh(c)
            return (h, c), h

        _, hs = jax.lax.scan(
            step, (jnp.zeros((B, H)), jnp.zeros((B, H))), x_tm)
        return hs

    for l in range(2):
        hf = run_dir(x, *p[f"l{l}_f"])
        hb = jnp.flip(run_dir(jnp.flip(x, 0), *p[f"l{l}_b"]), 0)
        x = jnp.concatenate([hf, hb], -1)

    lo = jnp.transpose(x, (1, 0, 2))
    scores = jnp.einsum("bsd,d->bs", lo, p["aw"][0]) + p["ab"][0, 0]
    w = jax.nn.softmax(scores, axis=1)
    ctx = jnp.sum(w[:, :, None] * lo, axis=1)
    return ctx @ p["fw"] + p["fb"]


# ----------------------------- params ----------------------------------------
def init_params(key):
    ks = iter(jax.random.split(key, 32))
    p = {}
    emb = 0.1 * jax.random.normal(next(ks), (VOCAB, EMBED), jnp.float32)
    p["emb"] = emb.at[0].set(0.0)                     # padding_idx=0
    for l in range(2):
        din = EMBED if l == 0 else 2 * HID
        for d in ("f", "b"):
            w_ih = 0.1 * jax.random.normal(next(ks), (din, 4 * HID), jnp.float32)
            w_hh = 0.1 * jax.random.normal(next(ks), (HID, 4 * HID), jnp.float32)
            b = 0.1 * jax.random.normal(next(ks), (1, 4 * HID), jnp.float32)
            p[f"l{l}_{d}"] = (w_ih, w_hh, b)
    p["aw"] = 0.1 * jax.random.normal(next(ks), (1, 2 * HID), jnp.float32)
    p["ab"] = 0.1 * jax.random.normal(next(ks), (1, 1), jnp.float32)
    p["fw"] = 0.1 * jax.random.normal(next(ks), (2 * HID, NCLS), jnp.float32)
    p["fb"] = 0.1 * jax.random.normal(next(ks), (1, NCLS), jnp.float32)
    return p


# ----------------------------- main -------------------------------------------
if __name__ == "__main__":
    key = jax.random.PRNGKey(0)
    k_ids, k_par, k_ids2 = jax.random.split(key, 3)
    params = init_params(k_par)

    # Spec-sized case (batch=2, seq=8): pads to one sublane-full tile of 8,
    # single invocation, no grid.
    ids = jax.random.randint(k_ids, (BATCH, SEQ), 0, VOCAB, dtype=jnp.int32)
    out = jax.block_until_ready(forward_pallas(ids, params))
    ref = jax.block_until_ready(forward_ref(ids, params))
    assert out.shape == (BATCH, NCLS), out.shape
    assert jnp.allclose(out, ref, rtol=1e-4, atol=1e-4), (out, ref)

    # Larger batch exercises the batch-tiled "parallel" grid path
    # (splits across both TensorCores on v7x).
    ids_big = jax.random.randint(k_ids2, (32, SEQ), 0, VOCAB, dtype=jnp.int32)
    out_big = jax.block_until_ready(forward_pallas(ids_big, params))
    ref_big = jax.block_until_ready(forward_ref(ids_big, params))
    assert out_big.shape == (32, NCLS), out_big.shape
    assert jnp.allclose(out_big, ref_big, rtol=1e-4, atol=1e-4), (out_big, ref_big)

    print("KERNEL_OK")
</pallas_src>

<mosaic_0001>
module attributes {stable_mosaic.version = 11 : i64} {
  func.func @fused_forward_kernel(%arg0: memref<64x1xi32, #tpu.memory_space<vmem>>, %arg1: memref<64x256xf32, #tpu.memory_space<vmem>>, %arg2: memref<64x256xf32, #tpu.memory_space<vmem>>, %arg3: memref<1x256xf32, #tpu.memory_space<vmem>>, %arg4: memref<64x256xf32, #tpu.memory_space<vmem>>, %arg5: memref<64x256xf32, #tpu.memory_space<vmem>>, %arg6: memref<1x256xf32, #tpu.memory_space<vmem>>, %arg7: memref<64x1xf32, #tpu.memory_space<vmem>>, %arg8: memref<1x1xf32, #tpu.memory_space<vmem>>, %arg9: memref<64x2xf32, #tpu.memory_space<vmem>>, %arg10: memref<1x2xf32, #tpu.memory_space<vmem>>, %arg11: memref<8x2xf32, #tpu.memory_space<vmem>>) attributes {dimension_semantics = [], scalar_prefetch = 0 : i64, scratch_operands = 0 : i64, tpu.core_type = #tpu.core_type<tc>} {
    %c0 = arith.constant 0 : index
    %c0_0 = arith.constant 0 : index
    %0 = vector.load %arg0[%c0, %c0_0] : memref<64x1xi32, #tpu.memory_space<vmem>>, vector<64x1xi32>
    %c0_i32 = arith.constant 0 : i32
    %c49_i32 = arith.constant 49 : i32
    %1 = vector.broadcast %c0_i32 : i32 to vector<64x1xi32>
    %2 = arith.maxsi %1, %0 : vector<64x1xi32>
    %3 = vector.broadcast %c49_i32 : i32 to vector<64x1xi32>
    %4 = arith.minsi %3, %2 : vector<64x1xi32>
    %5 = tpu.iota {dimensions = array<i32: 1>} : vector<64x64xi32>
    %6 = vector.broadcast %4 : vector<64x1xi32> to vector<64x64xi32>
    %7 = arith.cmpi eq, %6, %5 : vector<64x64xi32>
    %cst = arith.constant 1.000000e+00 : f32
    %cst_1 = arith.constant 0.000000e+00 : f32
    %8 = vector.broadcast %cst : f32 to vector<64x64xf32>
    %9 = vector.broadcast %cst_1 : f32 to vector<64x64xf32>
    %10 = arith.select %7, %8, %9 : vector<64x64xi1>, vector<64x64xf32>
    %c0_2 = arith.constant 0 : index
    %c0_3 = arith.constant 0 : index
    %11 = vector.load %arg1[%c0_2, %c0_3] : memref<64x256xf32, #tpu.memory_space<vmem>>, vector<64x256xf32>
    %cst_4 = arith.constant dense<0.000000e+00> : vector<64x256xf32>
    %12 = tpu.matmul %10, %11, %cst_4 {dimension_numbers = #tpu.dot_dimension_numbers<[1], [0], [0], [1], [0, 0, 1, 1], [], []>} : vector<64x64xf32>, vector<64x256xf32>, vector<64x256xf32> -> vector<64x256xf32>
    %c0_5 = arith.constant 0 : index
    %c0_6 = arith.constant 0 : index
    %13 = vector.load %arg3[%c0_5, %c0_6] : memref<1x256xf32, #tpu.memory_space<vmem>>, vector<1x256xf32>
    %14 = vector.broadcast %13 : vector<1x256xf32> to vector<64x256xf32>
    %15 = arith.addf %12, %14 : vector<64x256xf32>
    %16 = tpu.iota {dimensions = array<i32: 1>} : vector<64x256xi32>
    %c64_i32 = arith.constant 64 : i32
    %c0_i32_7 = arith.constant 0 : i32
    %17 = arith.cmpi eq, %c64_i32, %c0_i32_7 : i32
    %c1_i32 = arith.constant 1 : i32
    %18 = arith.select %17, %c1_i32, %c64_i32 : i32
    %19 = vector.broadcast %18 : i32 to vector<64x256xi32>
    %20 = arith.remsi %16, %19 : vector<64x256xi32>
    %c0_i32_8 = arith.constant 0 : i32
    %21 = vector.broadcast %c0_i32_8 : i32 to vector<64x256xi32>
    %22 = arith.cmpi ne, %20, %21 : vector<64x256xi32>
    %c0_i32_9 = arith.constant 0 : i32
    %23 = vector.broadcast %c0_i32_9 : i32 to vector<64x256xi32>
    %24 = arith.cmpi slt, %20, %23 : vector<64x256xi32>
    %c0_i32_10 = arith.constant 0 : i32
    %25 = arith.cmpi slt, %18, %c0_i32_10 : i32
    %26 = vector.broadcast %25 : i1 to vector<64x256xi1>
    %27 = vector.broadcast %26 : vector<64x256xi1> to vector<64x256xi1>
    %28 = arith.xori %24, %27 : vector<64x256xi1>
    %29 = arith.andi %28, %22 : vector<64x256xi1>
    %30 = vector.broadcast %18 : i32 to vector<64x256xi32>
    %31 = arith.addi %20, %30 : vector<64x256xi32>
    %32 = arith.select %29, %31, %20 : vector<64x256xi1>, vector<64x256xi32>
    %c32_i32 = arith.constant 32 : i32
    %33 = vector.broadcast %c32_i32 : i32 to vector<64x256xi32>
    %34 = arith.cmpi slt, %32, %33 : vector<64x256xi32>
    %35 = tpu.iota {dimensions = array<i32: 1>} : vector<8x256xi32>
    %c128_i32 = arith.constant 128 : i32
    %36 = vector.broadcast %c128_i32 : i32 to vector<8x256xi32>
    %37 = arith.cmpi sge, %35, %36 : vector<8x256xi32>
    %c192_i32 = arith.constant 192 : i32
    %38 = vector.broadcast %c192_i32 : i32 to vector<8x256xi32>
    %39 = arith.cmpi slt, %35, %38 : vector<8x256xi32>
    %40 = arith.andi %37, %39 : vector<8x256xi1>
    %c0_11 = arith.constant 0 : index
    %c0_12 = arith.constant 0 : index
    %41 = vector.load %arg2[%c0_11, %c0_12] : memref<64x256xf32, #tpu.memory_space<vmem>>, vector<64x256xf32>
    %42 = vector.extract_strided_slice %15 {offsets = [56, 0], sizes = [8, 256], strides = [1, 1]} : vector<64x256xf32> to vector<8x256xf32>
    %43 = vector.extract_strided_slice %15 {offsets = [48, 0], sizes = [8, 256], strides = [1, 1]} : vector<64x256xf32> to vector<8x256xf32>
    %44 = vector.extract_strided_slice %15 {offsets = [40, 0], sizes = [8, 256], strides = [1, 1]} : vector<64x256xf32> to vector<8x256xf32>
    %45 = vector.extract_strided_slice %15 {offsets = [32, 0], sizes = [8, 256], strides = [1, 1]} : vector<64x256xf32> to vector<8x256xf32>
    %46 = vector.extract_strided_slice %15 {offsets = [24, 0], sizes = [8, 256], strides = [1, 1]} : vector<64x256xf32> to vector<8x256xf32>
    %47 = vector.extract_strided_slice %15 {offsets = [16, 0], sizes = [8, 256], strides = [1, 1]} : vector<64x256xf32> to vector<8x256xf32>
    %48 = vector.extract_strided_slice %15 {offsets = [8, 0], sizes = [8, 256], strides = [1, 1]} : vector<64x256xf32> to vector<8x256xf32>
    %49 = vector.extract_strided_slice %15 {offsets = [0, 0], sizes = [8, 256], strides = [1, 1]} : vector<64x256xf32> to vector<8x256xf32>
    %50 = tpu.concatenate %42, %43, %44, %45, %46, %47, %48, %49 in 0 : vector<8x256xf32>, vector<8x256xf32>, vector<8x256xf32>, vector<8x256xf32>, vector<8x256xf32>, vector<8x256xf32>, vector<8x256xf32>, vector<8x256xf32> -> vector<64x256xf32>
    %51 = arith.select %34, %15, %50 : vector<64x256xi1>, vector<64x256xf32>
    %cst_13 = arith.constant 0.000000e+00 : f32
    %52 = vector.broadcast %cst_13 : f32 to vector<8x64xf32>
    %cst_14 = arith.constant 0.000000e+00 : f32
    %53 = vector.broadcast %cst_14 : f32 to vector<8x64xf32>
    %54 = vector.extract_strided_slice %51 {offsets = [0, 0], sizes = [8, 256], strides = [1, 1]} : vector<64x256xf32> to vector<8x256xf32>
    %cst_15 = arith.constant dense<0.000000e+00> : vector<8x256xf32>
    %55 = tpu.matmul %52, %41, %cst_15 {dimension_numbers = #tpu.dot_dimension_numbers<[1], [0], [0], [1], [0, 0, 1, 1], [], []>} : vector<8x64xf32>, vector<64x256xf32>, vector<8x256xf32> -> vector<8x256xf32>
    %56 = arith.addf %54, %55 : vector<8x256xf32>
    %57 = math.tanh %56 : vector<8x256xf32>
    %58 = arith.negf %56 : vector<8x256xf32>
    %59 = math.exp %58 : vector<8x256xf32>
    %cst_16 = arith.constant 1.000000e+00 : f32
    %60 = vector.broadcast %cst_16 : f32 to vector<8x256xf32>
    %61 = arith.addf %60, %59 : vector<8x256xf32>
    %62 = arith.divf %60, %61 : vector<8x256xf32>
    %63 = arith.select %40, %57, %62 : vector<8x256xi1>, vector<8x256xf32>
    %64 = vector.extract_strided_slice %63 {offsets = [0, 0], sizes = [8, 64], strides = [1, 1]} : vector<8x256xf32> to vector<8x64xf32>
    %65 = vector.extract_strided_slice %63 {offsets = [0, 64], sizes = [8, 64], strides = [1, 1]} : vector<8x256xf32> to vector<8x64xf32>
    %66 = vector.extract_strided_slice %63 {offsets = [0, 128], sizes = [8, 64], strides = [1, 1]} : vector<8x256xf32> to vector<8x64xf32>
    %67 = vector.extract_strided_slice %63 {offsets = [0, 192], sizes = [8, 64], strides = [1, 1]} : vector<8x256xf32> to vector<8x64xf32>
    %68 = arith.mulf %65, %53 : vector<8x64xf32>
    %69 = arith.mulf %64, %66 : vector<8x64xf32>
    %70 = arith.addf %68, %69 : vector<8x64xf32>
    %71 = math.tanh %70 : vector<8x64xf32>
    %72 = arith.mulf %67, %71 : vector<8x64xf32>
    %73 = vector.extract_strided_slice %72 {offsets = [0, 0], sizes = [8, 32], strides = [1, 1]} : vector<8x64xf32> to vector<8x32xf32>
    %74 = vector.extract_strided_slice %72 {offsets = [0, 32], sizes = [8, 32], strides = [1, 1]} : vector<8x64xf32> to vector<8x32xf32>
    %75 = vector.extract_strided_slice %51 {offsets = [8, 0], sizes = [8, 256], strides = [1, 1]} : vector<64x256xf32> to vector<8x256xf32>
    %cst_17 = arith.constant dense<0.000000e+00> : vector<8x256xf32>
    %76 = tpu.matmul %72, %41, %cst_17 {dimension_numbers = #tpu.dot_dimension_numbers<[1], [0], [0], [1], [0, 0, 1, 1], [], []>} : vector<8x64xf32>, vector<64x256xf32>, vector<8x256xf32> -> vector<8x256xf32>
    %77 = arith.addf %75, %76 : vector<8x256xf32>
    %78 = math.tanh %77 : vector<8x256xf32>
    %79 = arith.negf %77 : vector<8x256xf32>
    %80 = math.exp %79 : vector<8x256xf32>
    %cst_18 = arith.constant 1.000000e+00 : f32
    %81 = vector.broadcast %cst_18 : f32 to vector<8x256xf32>
    %82 = arith.addf %81, %80 : vector<8x256xf32>
    %83 = arith.divf %81, %82 : vector<8x256xf32>
    %84 = arith.select %40, %78, %83 : vector<8x256xi1>, vector<8x256xf32>
    %85 = vector.extract_strided_slice %84 {offsets = [0, 0], sizes = [8, 64], strides = [1, 1]} : vector<8x256xf32> to vector<8x64xf32>
    %86 = vector.extract_strided_slice %84 {offsets = [0, 64], sizes = [8, 64], strides = [1, 1]} : vector<8x256xf32> to vector<8x64xf32>
    %87 = vector.extract_strided_slice %84 {offsets = [0, 128], sizes = [8, 64], strides = [1, 1]} : vector<8x256xf32> to vector<8x64xf32>
    %88 = vector.extract_strided_slice %84 {offsets = [0, 192], sizes = [8, 64], strides = [1, 1]} : vector<8x256xf32> to vector<8x64xf32>
    %89 = arith.mulf %86, %70 : vector<8x64xf32>
    %90 = arith.mulf %85, %87 : vector<8x64xf32>
    %91 = arith.addf %89, %90 : vector<8x64xf32>
    %92 = math.tanh %91 : vector<8x64xf32>
    %93 = arith.mulf %88, %92 : vector<8x64xf32>
    %94 = vector.extract_strided_slice %93 {offsets = [0, 0], sizes = [8, 32], strides = [1, 1]} : vector<8x64xf32> to vector<8x32xf32>
    %95 = vector.extract_strided_slice %93 {offsets = [0, 32], sizes = [8, 32], strides = [1, 1]} : vector<8x64xf32> to vector<8x32xf32>
    %96 = vector.extract_strided_slice %51 {offsets = [16, 0], sizes = [8, 256], strides = [1, 1]} : vector<64x256xf32> to vector<8x256xf32>
    %cst_19 = arith.constant dense<0.000000e+00> : vector<8x256xf32>
    %97 = tpu.matmul %93, %41, %cst_19 {dimension_numbers = #tpu.dot_dimension_numbers<[1], [0], [0], [1], [0, 0, 1, 1], [], []>} : vector<8x64xf32>, vector<64x256xf32>, vector<8x256xf32> -> vector<8x256xf32>
    %98 = arith.addf %96, %97 : vector<8x256xf32>
    %99 = math.tanh %98 : vector<8x256xf32>
    %100 = arith.negf %98 : vector<8x256xf32>
    %101 = math.exp %100 : vector<8x256xf32>
    %cst_20 = arith.constant 1.000000e+00 : f32
    %102 = vector.broadcast %cst_20 : f32 to vector<8x256xf32>
    %103 = arith.addf %102, %101 : vector<8x256xf32>
    %104 = arith.divf %102, %103 : vector<8x256xf32>
    %105 = arith.select %40, %99, %104 : vector<8x256xi1>, vector<8x256xf32>
    %106 = vector.extract_strided_slice %105 {offsets = [0, 0], sizes = [8, 64], strides = [1, 1]} : vector<8x256xf32> to vector<8x64xf32>
    %107 = vector.extract_strided_slice %105 {offsets = [0, 64], sizes = [8, 64], strides = [1, 1]} : vector<8x256xf32> to vector<8x64xf32>
    %108 = vector.extract_strided_slice %105 {offsets = [0, 128], sizes = [8, 64], strides = [1, 1]} : vector<8x256xf32> to vector<8x64xf32>
    %109 = vector.extract_strided_slice %105 {offsets = [0, 192], sizes = [8, 64], strides = [1, 1]} : vector<8x256xf32> to vector<8x64xf32>
    %110 = arith.mulf %107, %91 : vector<8x64xf32>
    %111 = arith.mulf %106, %108 : vector<8x64xf32>
    %112 = arith.addf %110, %111 : vector<8x64xf32>
    %113 = math.tanh %112 : vector<8x64xf32>
    %114 = arith.mulf %109, %113 : vector<8x64xf32>
    %115 = vector.extract_strided_slice %114 {offsets = [0, 0], sizes = [8, 32], strides = [1, 1]} : vector<8x64xf32> to vector<8x32xf32>
    %116 = vector.extract_strided_slice %114 {offsets = [0, 32], sizes = [8, 32], strides = [1, 1]} : vector<8x64xf32> to vector<8x32xf32>
    %117 = vector.extract_strided_slice %51 {offsets = [24, 0], sizes = [8, 256], strides = [1, 1]} : vector<64x256xf32> to vector<8x256xf32>
    %cst_21 = arith.constant dense<0.000000e+00> : vector<8x256xf32>
    %118 = tpu.matmul %114, %41, %cst_21 {dimension_numbers = #tpu.dot_dimension_numbers<[1], [0], [0], [1], [0, 0, 1, 1], [], []>} : vector<8x64xf32>, vector<64x256xf32>, vector<8x256xf32> -> vector<8x256xf32>
    %119 = arith.addf %117, %118 : vector<8x256xf32>
    %120 = math.tanh %119 : vector<8x256xf32>
    %121 = arith.negf %119 : vector<8x256xf32>
    %122 = math.exp %121 : vector<8x256xf32>
    %cst_22 = arith.constant 1.000000e+00 : f32
    %123 = vector.broadcast %cst_22 : f32 to vector<8x256xf32>
    %124 = arith.addf %123, %122 : vector<8x256xf32>
    %125 = arith.divf %123, %124 : vector<8x256xf32>
    %126 = arith.select %40, %120, %125 : vector<8x256xi1>, vector<8x256xf32>
    %127 = vector.extract_strided_slice %126 {offsets = [0, 0], sizes = [8, 64], strides = [1, 1]} : vector<8x256xf32> to vector<8x64xf32>
    %128 = vector.extract_strided_slice %126 {offsets = [0, 64], sizes = [8, 64], strides = [1, 1]} : vector<8x256xf32> to vector<8x64xf32>
    %129 = vector.extract_strided_slice %126 {offsets = [0, 128], sizes = [8, 64], strides = [1, 1]} : vector<8x256xf32> to vector<8x64xf32>
    %130 = vector.extract_strided_slice %126 {offsets = [0, 192], sizes = [8, 64], strides = [1, 1]} : vector<8x256xf32> to vector<8x64xf32>
    %131 = arith.mulf %128, %112 : vector<8x64xf32>
    %132 = arith.mulf %127, %129 : vector<8x64xf32>
    %133 = arith.addf %131, %132 : vector<8x64xf32>
    %134 = math.tanh %133 : vector<8x64xf32>
    %135 = arith.mulf %130, %134 : vector<8x64xf32>
    %136 = vector.extract_strided_slice %135 {offsets = [0, 0], sizes = [8, 32], strides = [1, 1]} : vector<8x64xf32> to vector<8x32xf32>
    %137 = vector.extract_strided_slice %135 {offsets = [0, 32], sizes = [8, 32], strides = [1, 1]} : vector<8x64xf32> to vector<8x32xf32>
    %138 = vector.extract_strided_slice %51 {offsets = [32, 0], sizes = [8, 256], strides = [1, 1]} : vector<64x256xf32> to vector<8x256xf32>
    %cst_23 = arith.constant dense<0.000000e+00> : vector<8x256xf32>
    %139 = tpu.matmul %135, %41, %cst_23 {dimension_numbers = #tpu.dot_dimension_numbers<[1], [0], [0], [1], [0, 0, 1, 1], [], []>} : vector<8x64xf32>, vector<64x256xf32>, vector<8x256xf32> -> vector<8x256xf32>
    %140 = arith.addf %138, %139 : vector<8x256xf32>
    %141 = math.tanh %140 : vector<8x256xf32>
    %142 = arith.negf %140 : vector<8x256xf32>
    %143 = math.exp %142 : vector<8x256xf32>
    %cst_24 = arith.constant 1.000000e+00 : f32
    %144 = vector.broadcast %cst_24 : f32 to vector<8x256xf32>
    %145 = arith.addf %144, %143 : vector<8x256xf32>
    %146 = arith.divf %144, %145 : vector<8x256xf32>
    %147 = arith.select %40, %141, %146 : vector<8x256xi1>, vector<8x256xf32>
    %148 = vector.extract_strided_slice %147 {offsets = [0, 0], sizes = [8, 64], strides = [1, 1]} : vector<8x256xf32> to vector<8x64xf32>
    %149 = vector.extract_strided_slice %147 {offsets = [0, 64], sizes = [8, 64], strides = [1, 1]} : vector<8x256xf32> to vector<8x64xf32>
    %150 = vector.extract_strided_slice %147 {offsets = [0, 128], sizes = [8, 64], strides = [1, 1]} : vector<8x256xf32> to vector<8x64xf32>
    %151 = vector.extract_strided_slice %147 {offsets = [0, 192], sizes = [8, 64], strides = [1, 1]} : vector<8x256xf32> to vector<8x64xf32>
    %152 = arith.mulf %149, %133 : vector<8x64xf32>
    %153 = arith.mulf %148, %150 : vector<8x64xf32>
    %154 = arith.addf %152, %153 : vector<8x64xf32>
    %155 = math.tanh %154 : vector<8x64xf32>
    %156 = arith.mulf %151, %155 : vector<8x64xf32>
    %157 = vector.extract_strided_slice %156 {offsets = [0, 0], sizes = [8, 32], strides = [1, 1]} : vector<8x64xf32> to vector<8x32xf32>
    %158 = vector.extract_strided_slice %156 {offsets = [0, 32], sizes = [8, 32], strides = [1, 1]} : vector<8x64xf32> to vector<8x32xf32>
    %159 = vector.extract_strided_slice %51 {offsets = [40, 0], sizes = [8, 256], strides = [1, 1]} : vector<64x256xf32> to vector<8x256xf32>
    %cst_25 = arith.constant dense<0.000000e+00> : vector<8x256xf32>
    %160 = tpu.matmul %156, %41, %cst_25 {dimension_numbers = #tpu.dot_dimension_numbers<[1], [0], [0], [1], [0, 0, 1, 1], [], []>} : vector<8x64xf32>, vector<64x256xf32>, vector<8x256xf32> -> vector<8x256xf32>
    %161 = arith.addf %159, %160 : vector<8x256xf32>
    %162 = math.tanh %161 : vector<8x256xf32>
    %163 = arith.negf %161 : vector<8x256xf32>
    %164 = math.exp %163 : vector<8x256xf32>
    %cst_26 = arith.constant 1.000000e+00 : f32
    %165 = vector.broadcast %cst_26 : f32 to vector<8x256xf32>
    %166 = arith.addf %165, %164 : vector<8x256xf32>
    %167 = arith.divf %165, %166 : vector<8x256xf32>
    %168 = arith.select %40, %162, %167 : vector<8x256xi1>, vector<8x256xf32>
    %169 = vector.extract_strided_slice %168 {offsets = [0, 0], sizes = [8, 64], strides = [1, 1]} : vector<8x256xf32> to vector<8x64xf32>
    %170 = vector.extract_strided_slice %168 {offsets = [0, 64], sizes = [8, 64], strides = [1, 1]} : vector<8x256xf32> to vector<8x64xf32>
    %171 = vector.extract_strided_slice %168 {offsets = [0, 128], sizes = [8, 64], strides = [1, 1]} : vector<8x256xf32> to vector<8x64xf32>
    %172 = vector.extract_strided_slice %168 {offsets = [0, 192], sizes = [8, 64], strides = [1, 1]} : vector<8x256xf32> to vector<8x64xf32>
    %173 = arith.mulf %170, %154 : vector<8x64xf32>
    %174 = arith.mulf %169, %171 : vector<8x64xf32>
    %175 = arith.addf %173, %174 : vector<8x64xf32>
    %176 = math.tanh %175 : vector<8x64xf32>
    %177 = arith.mulf %172, %176 : vector<8x64xf32>
    %178 = vector.extract_strided_slice %177 {offsets = [0, 0], sizes = [8, 32], strides = [1, 1]} : vector<8x64xf32> to vector<8x32xf32>
    %179 = vector.extract_strided_slice %177 {offsets = [0, 32], sizes = [8, 32], strides = [1, 1]} : vector<8x64xf32> to vector<8x32xf32>
    %180 = vector.extract_strided_slice %51 {offsets = [48, 0], sizes = [8, 256], strides = [1, 1]} : vector<64x256xf32> to vector<8x256xf32>
    %cst_27 = arith.constant dense<0.000000e+00> : vector<8x256xf32>
    %181 = tpu.matmul %177, %41, %cst_27 {dimension_numbers = #tpu.dot_dimension_numbers<[1], [0], [0], [1], [0, 0, 1, 1], [], []>} : vector<8x64xf32>, vector<64x256xf32>, vector<8x256xf32> -> vector<8x256xf32>
    %182 = arith.addf %180, %181 : vector<8x256xf32>
    %183 = math.tanh %182 : vector<8x256xf32>
    %184 = arith.negf %182 : vector<8x256xf32>
    %185 = math.exp %184 : vector<8x256xf32>
    %cst_28 = arith.constant 1.000000e+00 : f32
    %186 = vector.broadcast %cst_28 : f32 to vector<8x256xf32>
    %187 = arith.addf %186, %185 : vector<8x256xf32>
    %188 = arith.divf %186, %187 : vector<8x256xf32>
    %189 = arith.select %40, %183, %188 : vector<8x256xi1>, vector<8x256xf32>
    %190 = vector.extract_strided_slice %189 {offsets = [0, 0], sizes = [8, 64], strides = [1, 1]} : vector<8x256xf32> to vector<8x64xf32>
    %191 = vector.extract_strided_slice %189 {offsets = [0, 64], sizes = [8, 64], strides = [1, 1]} : vector<8x256xf32> to vector<8x64xf32>
    %192 = vector.extract_strided_slice %189 {offsets = [0, 128], sizes = [8, 64], strides = [1, 1]} : vector<8x256xf32> to vector<8x64xf32>
    %193 = vector.extract_strided_slice %189 {offsets = [0, 192], sizes = [8, 64], strides = [1, 1]} : vector<8x256xf32> to vector<8x64xf32>
    %194 = arith.mulf %191, %175 : vector<8x64xf32>
    %195 = arith.mulf %190, %192 : vector<8x64xf32>
    %196 = arith.addf %194, %195 : vector<8x64xf32>
    %197 = math.tanh %196 : vector<8x64xf32>
    %198 = arith.mulf %193, %197 : vector<8x64xf32>
    %199 = vector.extract_strided_slice %198 {offsets = [0, 0], sizes = [8, 32], strides = [1, 1]} : vector<8x64xf32> to vector<8x32xf32>
    %200 = vector.extract_strided_slice %198 {offsets = [0, 32], sizes = [8, 32], strides = [1, 1]} : vector<8x64xf32> to vector<8x32xf32>
    %201 = vector.extract_strided_slice %51 {offsets = [56, 0], sizes = [8, 256], strides = [1, 1]} : vector<64x256xf32> to vector<8x256xf32>
    %cst_29 = arith.constant dense<0.000000e+00> : vector<8x256xf32>
    %202 = tpu.matmul %198, %41, %cst_29 {dimension_numbers = #tpu.dot_dimension_numbers<[1], [0], [0], [1], [0, 0, 1, 1], [], []>} : vector<8x64xf32>, vector<64x256xf32>, vector<8x256xf32> -> vector<8x256xf32>
    %203 = arith.addf %201, %202 : vector<8x256xf32>
    %204 = math.tanh %203 : vector<8x256xf32>
    %205 = arith.negf %203 : vector<8x256xf32>
    %206 = math.exp %205 : vector<8x256xf32>
    %cst_30 = arith.constant 1.000000e+00 : f32
    %207 = vector.broadcast %cst_30 : f32 to vector<8x256xf32>
    %208 = arith.addf %207, %206 : vector<8x256xf32>
    %209 = arith.divf %207, %208 : vector<8x256xf32>
    %210 = arith.select %40, %204, %209 : vector<8x256xi1>, vector<8x256xf32>
    %211 = vector.extract_strided_slice %210 {offsets = [0, 0], sizes = [8, 64], strides = [1, 1]} : vector<8x256xf32> to vector<8x64xf32>
    %212 = vector.extract_strided_slice %210 {offsets = [0, 64], sizes = [8, 64], strides = [1, 1]} : vector<8x256xf32> to vector<8x64xf32>
    %213 = vector.extract_strided_slice %210 {offsets = [0, 128], sizes = [8, 64], strides = [1, 1]} : vector<8x256xf32> to vector<8x64xf32>
    %214 = vector.extract_strided_slice %210 {offsets = [0, 192], sizes = [8, 64], strides = [1, 1]} : vector<8x256xf32> to vector<8x64xf32>
    %215 = arith.mulf %212, %196 : vector<8x64xf32>
    %216 = arith.mulf %211, %213 : vector<8x64xf32>
    %217 = arith.addf %215, %216 : vector<8x64xf32>
    %218 = math.tanh %217 : vector<8x64xf32>
    %219 = arith.mulf %214, %218 : vector<8x64xf32>
    %220 = vector.extract_strided_slice %219 {offsets = [0, 0], sizes = [8, 32], strides = [1, 1]} : vector<8x64xf32> to vector<8x32xf32>
    %221 = vector.extract_strided_slice %219 {offsets = [0, 32], sizes = [8, 32], strides = [1, 1]} : vector<8x64xf32> to vector<8x32xf32>
    %222 = tpu.concatenate %73, %221 in 1 : vector<8x32xf32>, vector<8x32xf32> -> vector<8x64xf32>
    %223 = tpu.concatenate %94, %200 in 1 : vector<8x32xf32>, vector<8x32xf32> -> vector<8x64xf32>
    %224 = tpu.concatenate %115, %179 in 1 : vector<8x32xf32>, vector<8x32xf32> -> vector<8x64xf32>
    %225 = tpu.concatenate %136, %158 in 1 : vector<8x32xf32>, vector<8x32xf32> -> vector<8x64xf32>
    %226 = tpu.concatenate %157, %137 in 1 : vector<8x32xf32>, vector<8x32xf32> -> vector<8x64xf32>
    %227 = tpu.concatenate %178, %116 in 1 : vector<8x32xf32>, vector<8x32xf32> -> vector<8x64xf32>
    %228 = tpu.concatenate %199, %95 in 1 : vector<8x32xf32>, vector<8x32xf32> -> vector<8x64xf32>
    %229 = tpu.concatenate %220, %74 in 1 : vector<8x32xf32>, vector<8x32xf32> -> vector<8x64xf32>
    %230 = tpu.concatenate %222, %223, %224, %225, %226, %227, %228, %229 in 0 : vector<8x64xf32>, vector<8x64xf32>, vector<8x64xf32>, vector<8x64xf32>, vector<8x64xf32>, vector<8x64xf32>, vector<8x64xf32>, vector<8x64xf32> -> vector<64x64xf32>
    %c0_31 = arith.constant 0 : index
    %c0_32 = arith.constant 0 : index
    %231 = vector.load %arg4[%c0_31, %c0_32] : memref<64x256xf32, #tpu.memory_space<vmem>>, vector<64x256xf32>
    %cst_33 = arith.constant dense<0.000000e+00> : vector<64x256xf32>
    %232 = tpu.matmul %230, %231, %cst_33 {dimension_numbers = #tpu.dot_dimension_numbers<[1], [0], [0], [1], [0, 0, 1, 1], [], []>} : vector<64x64xf32>, vector<64x256xf32>, vector<64x256xf32> -> vector<64x256xf32>
    %c0_34 = arith.constant 0 : index
    %c0_35 = arith.constant 0 : index
    %233 = vector.load %arg6[%c0_34, %c0_35] : memref<1x256xf32, #tpu.memory_space<vmem>>, vector<1x256xf32>
    %234 = vector.broadcast %233 : vector<1x256xf32> to vector<64x256xf32>
    %235 = arith.addf %232, %234 : vector<64x256xf32>
    %c0_36 = arith.constant 0 : index
    %c0_37 = arith.constant 0 : index
    %236 = vector.load %arg5[%c0_36, %c0_37] : memref<64x256xf32, #tpu.memory_space<vmem>>, vector<64x256xf32>
    %237 = vector.extract_strided_slice %235 {offsets = [56, 0], sizes = [8, 256], strides = [1, 1]} : vector<64x256xf32> to vector<8x256xf32>
    %238 = vector.extract_strided_slice %235 {offsets = [48, 0], sizes = [8, 256], strides = [1, 1]} : vector<64x256xf32> to vector<8x256xf32>
    %239 = vector.extract_strided_slice %235 {offsets = [40, 0], sizes = [8, 256], strides = [1, 1]} : vector<64x256xf32> to vector<8x256xf32>
    %240 = vector.extract_strided_slice %235 {offsets = [32, 0], sizes = [8, 256], strides = [1, 1]} : vector<64x256xf32> to vector<8x256xf32>
    %241 = vector.extract_strided_slice %235 {offsets = [24, 0], sizes = [8, 256], strides = [1, 1]} : vector<64x256xf32> to vector<8x256xf32>
    %242 = vector.extract_strided_slice %235 {offsets = [16, 0], sizes = [8, 256], strides = [1, 1]} : vector<64x256xf32> to vector<8x256xf32>
    %243 = vector.extract_strided_slice %235 {offsets = [8, 0], sizes = [8, 256], strides = [1, 1]} : vector<64x256xf32> to vector<8x256xf32>
    %244 = vector.extract_strided_slice %235 {offsets = [0, 0], sizes = [8, 256], strides = [1, 1]} : vector<64x256xf32> to vector<8x256xf32>
    %245 = tpu.concatenate %237, %238, %239, %240, %241, %242, %243, %244 in 0 : vector<8x256xf32>, vector<8x256xf32>, vector<8x256xf32>, vector<8x256xf32>, vector<8x256xf32>, vector<8x256xf32>, vector<8x256xf32>, vector<8x256xf32> -> vector<64x256xf32>
    %246 = arith.select %34, %235, %245 : vector<64x256xi1>, vector<64x256xf32>
    %cst_38 = arith.constant 0.000000e+00 : f32
    %247 = vector.broadcast %cst_38 : f32 to vector<8x64xf32>
    %cst_39 = arith.constant 0.000000e+00 : f32
    %248 = vector.broadcast %cst_39 : f32 to vector<8x64xf32>
    %249 = vector.extract_strided_slice %246 {offsets = [0, 0], sizes = [8, 256], strides = [1, 1]} : vector<64x256xf32> to vector<8x256xf32>
    %cst_40 = arith.constant dense<0.000000e+00> : vector<8x256xf32>
    %250 = tpu.matmul %247, %236, %cst_40 {dimension_numbers = #tpu.dot_dimension_numbers<[1], [0], [0], [1], [0, 0, 1, 1], [], []>} : vector<8x64xf32>, vector<64x256xf32>, vector<8x256xf32> -> vector<8x256xf32>
    %251 = arith.addf %249, %250 : vector<8x256xf32>
    %252 = math.tanh %251 : vector<8x256xf32>
    %253 = arith.negf %251 : vector<8x256xf32>
    %254 = math.exp %253 : vector<8x256xf32>
    %cst_41 = arith.constant 1.000000e+00 : f32
    %255 = vector.broadcast %cst_41 : f32 to vector<8x256xf32>
    %256 = arith.addf %255, %254 : vector<8x256xf32>
    %257 = arith.divf %255, %256 : vector<8x256xf32>
    %258 = arith.select %40, %252, %257 : vector<8x256xi1>, vector<8x256xf32>
    %259 = vector.extract_strided_slice %258 {offsets = [0, 0], sizes = [8, 64], strides = [1, 1]} : vector<8x256xf32> to vector<8x64xf32>
    %260 = vector.extract_strided_slice %258 {offsets = [0, 64], sizes = [8, 64], strides = [1, 1]} : vector<8x256xf32> to vector<8x64xf32>
    %261 = vector.extract_strided_slice %258 {offsets = [0, 128], sizes = [8, 64], strides = [1, 1]} : vector<8x256xf32> to vector<8x64xf32>
    %262 = vector.extract_strided_slice %258 {offsets = [0, 192], sizes = [8, 64], strides = [1, 1]} : vector<8x256xf32> to vector<8x64xf32>
    %263 = arith.mulf %260, %248 : vector<8x64xf32>
    %264 = arith.mulf %259, %261 : vector<8x64xf32>
    %265 = arith.addf %263, %264 : vector<8x64xf32>
    %266 = math.tanh %265 : vector<8x64xf32>
    %267 = arith.mulf %262, %266 : vector<8x64xf32>
    %268 = vector.extract_strided_slice %267 {offsets = [0, 0], sizes = [8, 32], strides = [1, 1]} : vector<8x64xf32> to vector<8x32xf32>
    %269 = vector.extract_strided_slice %267 {offsets = [0, 32], sizes = [8, 32], strides = [1, 1]} : vector<8x64xf32> to vector<8x32xf32>
    %270 = vector.extract_strided_slice %246 {offsets = [8, 0], sizes = [8, 256], strides = [1, 1]} : vector<64x256xf32> to vector<8x256xf32>
    %cst_42 = arith.constant dense<0.000000e+00> : vector<8x256xf32>
    %271 = tpu.matmul %267, %236, %cst_42 {dimension_numbers = #tpu.dot_dimension_numbers<[1], [0], [0], [1], [0, 0, 1, 1], [], []>} : vector<8x64xf32>, vector<64x256xf32>, vector<8x256xf32> -> vector<8x256xf32>
    %272 = arith.addf %270, %271 : vector<8x256xf32>
    %273 = math.tanh %272 : vector<8x256xf32>
    %274 = arith.negf %272 : vector<8x256xf32>
    %275 = math.exp %274 : vector<8x256xf32>
    %cst_43 = arith.constant 1.000000e+00 : f32
    %276 = vector.broadcast %cst_43 : f32 to vector<8x256xf32>
    %277 = arith.addf %276, %275 : vector<8x256xf32>
    %278 = arith.divf %276, %277 : vector<8x256xf32>
    %279 = arith.select %40, %273, %278 : vector<8x256xi1>, vector<8x256xf32>
    %280 = vector.extract_strided_slice %279 {offsets = [0, 0], sizes = [8, 64], strides = [1, 1]} : vector<8x256xf32> to vector<8x64xf32>
    %281 = vector.extract_strided_slice %279 {offsets = [0, 64], sizes = [8, 64], strides = [1, 1]} : vector<8x256xf32> to vector<8x64xf32>
    %282 = vector.extract_strided_slice %279 {offsets = [0, 128], sizes = [8, 64], strides = [1, 1]} : vector<8x256xf32> to vector<8x64xf32>
    %283 = vector.extract_strided_slice %279 {offsets = [0, 192], sizes = [8, 64], strides = [1, 1]} : vector<8x256xf32> to vector<8x64xf32>
    %284 = arith.mulf %281, %265 : vector<8x64xf32>
    %285 = arith.mulf %280, %282 : vector<8x64xf32>
    %286 = arith.addf %284, %285 : vector<8x64xf32>
    %287 = math.tanh %286 : vector<8x64xf32>
    %288 = arith.mulf %283, %287 : vector<8x64xf32>
    %289 = vector.extract_strided_slice %288 {offsets = [0, 0], sizes = [8, 32], strides = [1, 1]} : vector<8x64xf32> to vector<8x32xf32>
    %290 = vector.extract_strided_slice %288 {offsets = [0, 32], sizes = [8, 32], strides = [1, 1]} : vector<8x64xf32> to vector<8x32xf32>
    %291 = vector.extract_strided_slice %246 {offsets = [16, 0], sizes = [8, 256], strides = [1, 1]} : vector<64x256xf32> to vector<8x256xf32>
    %cst_44 = arith.constant dense<0.000000e+00> : vector<8x256xf32>
    %292 = tpu.matmul %288, %236, %cst_44 {dimension_numbers = #tpu.dot_dimension_numbers<[1], [0], [0], [1], [0, 0, 1, 1], [], []>} : vector<8x64xf32>, vector<64x256xf32>, vector<8x256xf32> -> vector<8x256xf32>
    %293 = arith.addf %291, %292 : vector<8x256xf32>
    %294 = math.tanh %293 : vector<8x256xf32>
    %295 = arith.negf %293 : vector<8x256xf32>
    %296 = math.exp %295 : vector<8x256xf32>
    %cst_45 = arith.constant 1.000000e+00 : f32
    %297 = vector.broadcast %cst_45 : f32 to vector<8x256xf32>
    %298 = arith.addf %297, %296 : vector<8x256xf32>
    %299 = arith.divf %297, %298 : vector<8x256xf32>
    %300 = arith.select %40, %294, %299 : vector<8x256xi1>, vector<8x256xf32>
    %301 = vector.extract_strided_slice %300 {offsets = [0, 0], sizes = [8, 64], strides = [1, 1]} : vector<8x256xf32> to vector<8x64xf32>
    %302 = vector.extract_strided_slice %300 {offsets = [0, 64], sizes = [8, 64], strides = [1, 1]} : vector<8x256xf32> to vector<8x64xf32>
    %303 = vector.extract_strided_slice %300 {offsets = [0, 128], sizes = [8, 64], strides = [1, 1]} : vector<8x256xf32> to vector<8x64xf32>
    %304 = vector.extract_strided_slice %300 {offsets = [0, 192], sizes = [8, 64], strides = [1, 1]} : vector<8x256xf32> to vector<8x64xf32>
    %305 = arith.mulf %302, %286 : vector<8x64xf32>
    %306 = arith.mulf %301, %303 : vector<8x64xf32>
    %307 = arith.addf %305, %306 : vector<8x64xf32>
    %308 = math.tanh %307 : vector<8x64xf32>
    %309 = arith.mulf %304, %308 : vector<8x64xf32>
    %310 = vector.extract_strided_slice %309 {offsets = [0, 0], sizes = [8, 32], strides = [1, 1]} : vector<8x64xf32> to vector<8x32xf32>
    %311 = vector.extract_strided_slice %309 {offsets = [0, 32], sizes = [8, 32], strides = [1, 1]} : vector<8x64xf32> to vector<8x32xf32>
    %312 = vector.extract_strided_slice %246 {offsets = [24, 0], sizes = [8, 256], strides = [1, 1]} : vector<64x256xf32> to vector<8x256xf32>
    %cst_46 = arith.constant dense<0.000000e+00> : vector<8x256xf32>
    %313 = tpu.matmul %309, %236, %cst_46 {dimension_numbers = #tpu.dot_dimension_numbers<[1], [0], [0], [1], [0, 0, 1, 1], [], []>} : vector<8x64xf32>, vector<64x256xf32>, vector<8x256xf32> -> vector<8x256xf32>
    %314 = arith.addf %312, %313 : vector<8x256xf32>
    %315 = math.tanh %314 : vector<8x256xf32>
    %316 = arith.negf %314 : vector<8x256xf32>
    %317 = math.exp %316 : vector<8x256xf32>
    %cst_47 = arith.constant 1.000000e+00 : f32
    %318 = vector.broadcast %cst_47 : f32 to vector<8x256xf32>
    %319 = arith.addf %318, %317 : vector<8x256xf32>
    %320 = arith.divf %318, %319 : vector<8x256xf32>
    %321 = arith.select %40, %315, %320 : vector<8x256xi1>, vector<8x256xf32>
    %322 = vector.extract_strided_slice %321 {offsets = [0, 0], sizes = [8, 64], strides = [1, 1]} : vector<8x256xf32> to vector<8x64xf32>
    %323 = vector.extract_strided_slice %321 {offsets = [0, 64], sizes = [8, 64], strides = [1, 1]} : vector<8x256xf32> to vector<8x64xf32>
    %324 = vector.extract_strided_slice %321 {offsets = [0, 128], sizes = [8, 64], strides = [1, 1]} : vector<8x256xf32> to vector<8x64xf32>
    %325 = vector.extract_strided_slice %321 {offsets = [0, 192], sizes = [8, 64], strides = [1, 1]} : vector<8x256xf32> to vector<8x64xf32>
    %326 = arith.mulf %323, %307 : vector<8x64xf32>
    %327 = arith.mulf %322, %324 : vector<8x64xf32>
    %328 = arith.addf %326, %327 : vector<8x64xf32>
    %329 = math.tanh %328 : vector<8x64xf32>
    %330 = arith.mulf %325, %329 : vector<8x64xf32>
    %331 = vector.extract_strided_slice %330 {offsets = [0, 0], sizes = [8, 32], strides = [1, 1]} : vector<8x64xf32> to vector<8x32xf32>
    %332 = vector.extract_strided_slice %330 {offsets = [0, 32], sizes = [8, 32], strides = [1, 1]} : vector<8x64xf32> to vector<8x32xf32>
    %333 = vector.extract_strided_slice %246 {offsets = [32, 0], sizes = [8, 256], strides = [1, 1]} : vector<64x256xf32> to vector<8x256xf32>
    %cst_48 = arith.constant dense<0.000000e+00> : vector<8x256xf32>
    %334 = tpu.matmul %330, %236, %cst_48 {dimension_numbers = #tpu.dot_dimension_numbers<[1], [0], [0], [1], [0, 0, 1, 1], [], []>} : vector<8x64xf32>, vector<64x256xf32>, vector<8x256xf32> -> vector<8x256xf32>
    %335 = arith.addf %333, %334 : vector<8x256xf32>
    %336 = math.tanh %335 : vector<8x256xf32>
    %337 = arith.negf %335 : vector<8x256xf32>
    %338 = math.exp %337 : vector<8x256xf32>
    %cst_49 = arith.constant 1.000000e+00 : f32
    %339 = vector.broadcast %cst_49 : f32 to vector<8x256xf32>
    %340 = arith.addf %339, %338 : vector<8x256xf32>
    %341 = arith.divf %339, %340 : vector<8x256xf32>
    %342 = arith.select %40, %336, %341 : vector<8x256xi1>, vector<8x256xf32>
    %343 = vector.extract_strided_slice %342 {offsets = [0, 0], sizes = [8, 64], strides = [1, 1]} : vector<8x256xf32> to vector<8x64xf32>
    %344 = vector.extract_strided_slice %342 {offsets = [0, 64], sizes = [8, 64], strides = [1, 1]} : vector<8x256xf32> to vector<8x64xf32>
    %345 = vector.extract_strided_slice %342 {offsets = [0, 128], sizes = [8, 64], strides = [1, 1]} : vector<8x256xf32> to vector<8x64xf32>
    %346 = vector.extract_strided_slice %342 {offsets = [0, 192], sizes = [8, 64], strides = [1, 1]} : vector<8x256xf32> to vector<8x64xf32>
    %347 = arith.mulf %344, %328 : vector<8x64xf32>
    %348 = arith.mulf %343, %345 : vector<8x64xf32>
    %349 = arith.addf %347, %348 : vector<8x64xf32>
    %350 = math.tanh %349 : vector<8x64xf32>
    %351 = arith.mulf %346, %350 : vector<8x64xf32>
    %352 = vector.extract_strided_slice %351 {offsets = [0, 0], sizes = [8, 32], strides = [1, 1]} : vector<8x64xf32> to vector<8x32xf32>
    %353 = vector.extract_strided_slice %351 {offsets = [0, 32], sizes = [8, 32], strides = [1, 1]} : vector<8x64xf32> to vector<8x32xf32>
    %354 = vector.extract_strided_slice %246 {offsets = [40, 0], sizes = [8, 256], strides = [1, 1]} : vector<64x256xf32> to vector<8x256xf32>
    %cst_50 = arith.constant dense<0.000000e+00> : vector<8x256xf32>
    %355 = tpu.matmul %351, %236, %cst_50 {dimension_numbers = #tpu.dot_dimension_numbers<[1], [0], [0], [1], [0, 0, 1, 1], [], []>} : vector<8x64xf32>, vector<64x256xf32>, vector<8x256xf32> -> vector<8x256xf32>
    %356 = arith.addf %354, %355 : vector<8x256xf32>
    %357 = math.tanh %356 : vector<8x256xf32>
    %358 = arith.negf %356 : vector<8x256xf32>
    %359 = math.exp %358 : vector<8x256xf32>
    %cst_51 = arith.constant 1.000000e+00 : f32
    %360 = vector.broadcast %cst_51 : f32 to vector<8x256xf32>
    %361 = arith.addf %360, %359 : vector<8x256xf32>
    %362 = arith.divf %360, %361 : vector<8x256xf32>
    %363 = arith.select %40, %357, %362 : vector<8x256xi1>, vector<8x256xf32>
    %364 = vector.extract_strided_slice %363 {offsets = [0, 0], sizes = [8, 64], strides = [1, 1]} : vector<8x256xf32> to vector<8x64xf32>
    %365 = vector.extract_strided_slice %363 {offsets = [0, 64], sizes = [8, 64], strides = [1, 1]} : vector<8x256xf32> to vector<8x64xf32>
    %366 = vector.extract_strided_slice %363 {offsets = [0, 128], sizes = [8, 64], strides = [1, 1]} : vector<8x256xf32> to vector<8x64xf32>
    %367 = vector.extract_strided_slice %363 {offsets = [0, 192], sizes = [8, 64], strides = [1, 1]} : vector<8x256xf32> to vector<8x64xf32>
    %368 = arith.mulf %365, %349 : vector<8x64xf32>
    %369 = arith.mulf %364, %366 : vector<8x64xf32>
    %370 = arith.addf %368, %369 : vector<8x64xf32>
    %371 = math.tanh %370 : vector<8x64xf32>
    %372 = arith.mulf %367, %371 : vector<8x64xf32>
    %373 = vector.extract_strided_slice %372 {offsets = [0, 0], sizes = [8, 32], strides = [1, 1]} : vector<8x64xf32> to vector<8x32xf32>
    %374 = vector.extract_strided_slice %372 {offsets = [0, 32], sizes = [8, 32], strides = [1, 1]} : vector<8x64xf32> to vector<8x32xf32>
    %375 = vector.extract_strided_slice %246 {offsets = [48, 0], sizes = [8, 256], strides = [1, 1]} : vector<64x256xf32> to vector<8x256xf32>
    %cst_52 = arith.constant dense<0.000000e+00> : vector<8x256xf32>
    %376 = tpu.matmul %372, %236, %cst_52 {dimension_numbers = #tpu.dot_dimension_numbers<[1], [0], [0], [1], [0, 0, 1, 1], [], []>} : vector<8x64xf32>, vector<64x256xf32>, vector<8x256xf32> -> vector<8x256xf32>
    %377 = arith.addf %375, %376 : vector<8x256xf32>
    %378 = math.tanh %377 : vector<8x256xf32>
    %379 = arith.negf %377 : vector<8x256xf32>
    %380 = math.exp %379 : vector<8x256xf32>
    %cst_53 = arith.constant 1.000000e+00 : f32
    %381 = vector.broadcast %cst_53 : f32 to vector<8x256xf32>
    %382 = arith.addf %381, %380 : vector<8x256xf32>
    %383 = arith.divf %381, %382 : vector<8x256xf32>
    %384 = arith.select %40, %378, %383 : vector<8x256xi1>, vector<8x256xf32>
    %385 = vector.extract_strided_slice %384 {offsets = [0, 0], sizes = [8, 64], strides = [1, 1]} : vector<8x256xf32> to vector<8x64xf32>
    %386 = vector.extract_strided_slice %384 {offsets = [0, 64], sizes = [8, 64], strides = [1, 1]} : vector<8x256xf32> to vector<8x64xf32>
    %387 = vector.extract_strided_slice %384 {offsets = [0, 128], sizes = [8, 64], strides = [1, 1]} : vector<8x256xf32> to vector<8x64xf32>
    %388 = vector.extract_strided_slice %384 {offsets = [0, 192], sizes = [8, 64], strides = [1, 1]} : vector<8x256xf32> to vector<8x64xf32>
    %389 = arith.mulf %386, %370 : vector<8x64xf32>
    %390 = arith.mulf %385, %387 : vector<8x64xf32>
    %391 = arith.addf %389, %390 : vector<8x64xf32>
    %392 = math.tanh %391 : vector<8x64xf32>
    %393 = arith.mulf %388, %392 : vector<8x64xf32>
    %394 = vector.extract_strided_slice %393 {offsets = [0, 0], sizes = [8, 32], strides = [1, 1]} : vector<8x64xf32> to vector<8x32xf32>
    %395 = vector.extract_strided_slice %393 {offsets = [0, 32], sizes = [8, 32], strides = [1, 1]} : vector<8x64xf32> to vector<8x32xf32>
    %396 = vector.extract_strided_slice %246 {offsets = [56, 0], sizes = [8, 256], strides = [1, 1]} : vector<64x256xf32> to vector<8x256xf32>
    %cst_54 = arith.constant dense<0.000000e+00> : vector<8x256xf32>
    %397 = tpu.matmul %393, %236, %cst_54 {dimension_numbers = #tpu.dot_dimension_numbers<[1], [0], [0], [1], [0, 0, 1, 1], [], []>} : vector<8x64xf32>, vector<64x256xf32>, vector<8x256xf32> -> vector<8x256xf32>
    %398 = arith.addf %396, %397 : vector<8x256xf32>
    %399 = math.tanh %398 : vector<8x256xf32>
    %400 = arith.negf %398 : vector<8x256xf32>
    %401 = math.exp %400 : vector<8x256xf32>
    %cst_55 = arith.constant 1.000000e+00 : f32
    %402 = vector.broadcast %cst_55 : f32 to vector<8x256xf32>
    %403 = arith.addf %402, %401 : vector<8x256xf32>
    %404 = arith.divf %402, %403 : vector<8x256xf32>
    %405 = arith.select %40, %399, %404 : vector<8x256xi1>, vector<8x256xf32>
    %406 = vector.extract_strided_slice %405 {offsets = [0, 0], sizes = [8, 64], strides = [1, 1]} : vector<8x256xf32> to vector<8x64xf32>
    %407 = vector.extract_strided_slice %405 {offsets = [0, 64], sizes = [8, 64], strides = [1, 1]} : vector<8x256xf32> to vector<8x64xf32>
    %408 = vector.extract_strided_slice %405 {offsets = [0, 128], sizes = [8, 64], strides = [1, 1]} : vector<8x256xf32> to vector<8x64xf32>
    %409 = vector.extract_strided_slice %405 {offsets = [0, 192], sizes = [8, 64], strides = [1, 1]} : vector<8x256xf32> to vector<8x64xf32>
    %410 = arith.mulf %407, %391 : vector<8x64xf32>
    %411 = arith.mulf %406, %408 : vector<8x64xf32>
    %412 = arith.addf %410, %411 : vector<8x64xf32>
    %413 = math.tanh %412 : vector<8x64xf32>
    %414 = arith.mulf %409, %413 : vector<8x64xf32>
    %415 = vector.extract_strided_slice %414 {offsets = [0, 0], sizes = [8, 32], strides = [1, 1]} : vector<8x64xf32> to vector<8x32xf32>
    %416 = vector.extract_strided_slice %414 {offsets = [0, 32], sizes = [8, 32], strides = [1, 1]} : vector<8x64xf32> to vector<8x32xf32>
    %417 = tpu.concatenate %268, %416 in 1 : vector<8x32xf32>, vector<8x32xf32> -> vector<8x64xf32>
    %418 = tpu.concatenate %289, %395 in 1 : vector<8x32xf32>, vector<8x32xf32> -> vector<8x64xf32>
    %419 = tpu.concatenate %310, %374 in 1 : vector<8x32xf32>, vector<8x32xf32> -> vector<8x64xf32>
    %420 = tpu.concatenate %331, %353 in 1 : vector<8x32xf32>, vector<8x32xf32> -> vector<8x64xf32>
    %421 = tpu.concatenate %352, %332 in 1 : vector<8x32xf32>, vector<8x32xf32> -> vector<8x64xf32>
    %422 = tpu.concatenate %373, %311 in 1 : vector<8x32xf32>, vector<8x32xf32> -> vector<8x64xf32>
    %423 = tpu.concatenate %394, %290 in 1 : vector<8x32xf32>, vector<8x32xf32> -> vector<8x64xf32>
    %424 = tpu.concatenate %415, %269 in 1 : vector<8x32xf32>, vector<8x32xf32> -> vector<8x64xf32>
    %425 = tpu.concatenate %417, %418, %419, %420, %421, %422, %423, %424 in 0 : vector<8x64xf32>, vector<8x64xf32>, vector<8x64xf32>, vector<8x64xf32>, vector<8x64xf32>, vector<8x64xf32>, vector<8x64xf32>, vector<8x64xf32> -> vector<64x64xf32>
    %c0_56 = arith.constant 0 : index
    %c0_57 = arith.constant 0 : index
    %426 = vector.load %arg7[%c0_56, %c0_57] : memref<64x1xf32, #tpu.memory_space<vmem>>, vector<64x1xf32>
    %cst_58 = arith.constant dense<0.000000e+00> : vector<64x1xf32>
    %427 = tpu.matmul %425, %426, %cst_58 {dimension_numbers = #tpu.dot_dimension_numbers<[1], [0], [0], [1], [0, 0, 1, 1], [], []>} : vector<64x64xf32>, vector<64x1xf32>, vector<64x1xf32> -> vector<64x1xf32>
    %428 = vector.extract_strided_slice %427 {offsets = [0, 0], sizes = [8, 1], strides = [1, 1]} : vector<64x1xf32> to vector<8x1xf32>
    %429 = vector.extract_strided_slice %427 {offsets = [8, 0], sizes = [8, 1], strides = [1, 1]} : vector<64x1xf32> to vector<8x1xf32>
    %430 = vector.extract_strided_slice %427 {offsets = [16, 0], sizes = [8, 1], strides = [1, 1]} : vector<64x1xf32> to vector<8x1xf32>
    %431 = vector.extract_strided_slice %427 {offsets = [24, 0], sizes = [8, 1], strides = [1, 1]} : vector<64x1xf32> to vector<8x1xf32>
    %432 = vector.extract_strided_slice %427 {offsets = [32, 0], sizes = [8, 1], strides = [1, 1]} : vector<64x1xf32> to vector<8x1xf32>
    %433 = vector.extract_strided_slice %427 {offsets = [40, 0], sizes = [8, 1], strides = [1, 1]} : vector<64x1xf32> to vector<8x1xf32>
    %434 = vector.extract_strided_slice %427 {offsets = [48, 0], sizes = [8, 1], strides = [1, 1]} : vector<64x1xf32> to vector<8x1xf32>
    %435 = vector.extract_strided_slice %427 {offsets = [56, 0], sizes = [8, 1], strides = [1, 1]} : vector<64x1xf32> to vector<8x1xf32>
    %436 = tpu.concatenate %428, %429, %430, %431, %432, %433, %434, %435 in 1 : vector<8x1xf32>, vector<8x1xf32>, vector<8x1xf32>, vector<8x1xf32>, vector<8x1xf32>, vector<8x1xf32>, vector<8x1xf32>, vector<8x1xf32> -> vector<8x8xf32>
    %c0_59 = arith.constant 0 : index
    %c0_60 = arith.constant 0 : index
    %437 = vector.load %arg8[%c0_59, %c0_60] : memref<1x1xf32, #tpu.memory_space<vmem>>, vector<1x1xf32>
    %438 = vector.broadcast %437 : vector<1x1xf32> to vector<8x8xf32>
    %439 = arith.addf %436, %438 : vector<8x8xf32>
    %cst_61 = arith.constant dense<0xFF800000> : vector<8xf32>
    %440 = vector.multi_reduction <maximumf>, %439, %cst_61 [1] : vector<8x8xf32> to vector<8xf32>
    %441 = vector.shape_cast %440 : vector<8xf32> to vector<8x1xf32>
    %442 = vector.broadcast %441 : vector<8x1xf32> to vector<8x8xf32>
    %443 = arith.subf %439, %442 : vector<8x8xf32>
    %444 = math.exp %443 : vector<8x8xf32>
    %cst_62 = arith.constant dense<0.000000e+00> : vector<8xf32>
    %445 = vector.multi_reduction <add>, %444, %cst_62 [1] : vector<8x8xf32> to vector<8xf32>
    %446 = vector.shape_cast %445 : vector<8xf32> to vector<8x1xf32>
    %447 = vector.broadcast %446 : vector<8x1xf32> to vector<8x8xf32>
    %448 = arith.divf %444, %447 : vector<8x8xf32>
    %cst_63 = arith.constant 0.000000e+00 : f32
    %449 = vector.broadcast %cst_63 : f32 to vector<8x64xf32>
    %450 = vector.extract_strided_slice %448 {offsets = [0, 0], sizes = [8, 1], strides = [1, 1]} : vector<8x8xf32> to vector<8x1xf32>
    %451 = vector.broadcast %450 : vector<8x1xf32> to vector<8x64xf32>
    %452 = arith.mulf %451, %417 : vector<8x64xf32>
    %453 = arith.addf %449, %452 : vector<8x64xf32>
    %454 = vector.extract_strided_slice %448 {offsets = [0, 1], sizes = [8, 1], strides = [1, 1]} : vector<8x8xf32> to vector<8x1xf32>
    %455 = vector.broadcast %454 : vector<8x1xf32> to vector<8x64xf32>
    %456 = arith.mulf %455, %418 : vector<8x64xf32>
    %457 = arith.addf %453, %456 : vector<8x64xf32>
    %458 = vector.extract_strided_slice %448 {offsets = [0, 2], sizes = [8, 1], strides = [1, 1]} : vector<8x8xf32> to vector<8x1xf32>
    %459 = vector.broadcast %458 : vector<8x1xf32> to vector<8x64xf32>
    %460 = arith.mulf %459, %419 : vector<8x64xf32>
    %461 = arith.addf %457, %460 : vector<8x64xf32>
    %462 = vector.extract_strided_slice %448 {offsets = [0, 3], sizes = [8, 1], strides = [1, 1]} : vector<8x8xf32> to vector<8x1xf32>
    %463 = vector.broadcast %462 : vector<8x1xf32> to vector<8x64xf32>
    %464 = arith.mulf %463, %420 : vector<8x64xf32>
    %465 = arith.addf %461, %464 : vector<8x64xf32>
    %466 = vector.extract_strided_slice %448 {offsets = [0, 4], sizes = [8, 1], strides = [1, 1]} : vector<8x8xf32> to vector<8x1xf32>
    %467 = vector.broadcast %466 : vector<8x1xf32> to vector<8x64xf32>
    %468 = arith.mulf %467, %421 : vector<8x64xf32>
    %469 = arith.addf %465, %468 : vector<8x64xf32>
    %470 = vector.extract_strided_slice %448 {offsets = [0, 5], sizes = [8, 1], strides = [1, 1]} : vector<8x8xf32> to vector<8x1xf32>
    %471 = vector.broadcast %470 : vector<8x1xf32> to vector<8x64xf32>
    %472 = arith.mulf %471, %422 : vector<8x64xf32>
    %473 = arith.addf %469, %472 : vector<8x64xf32>
    %474 = vector.extract_strided_slice %448 {offsets = [0, 6], sizes = [8, 1], strides = [1, 1]} : vector<8x8xf32> to vector<8x1xf32>
    %475 = vector.broadcast %474 : vector<8x1xf32> to vector<8x64xf32>
    %476 = arith.mulf %475, %423 : vector<8x64xf32>
    %477 = arith.addf %473, %476 : vector<8x64xf32>
    %478 = vector.extract_strided_slice %448 {offsets = [0, 7], sizes = [8, 1], strides = [1, 1]} : vector<8x8xf32> to vector<8x1xf32>
    %479 = vector.broadcast %478 : vector<8x1xf32> to vector<8x64xf32>
    %480 = arith.mulf %479, %424 : vector<8x64xf32>
    %481 = arith.addf %477, %480 : vector<8x64xf32>
    %c0_64 = arith.constant 0 : index
    %c0_65 = arith.constant 0 : index
    %482 = vector.load %arg9[%c0_64, %c0_65] : memref<64x2xf32, #tpu.memory_space<vmem>>, vector<64x2xf32>
    %cst_66 = arith.constant dense<0.000000e+00> : vector<8x2xf32>
    %483 = tpu.matmul %481, %482, %cst_66 {dimension_numbers = #tpu.dot_dimension_numbers<[1], [0], [0], [1], [0, 0, 1, 1], [], []>} : vector<8x64xf32>, vector<64x2xf32>, vector<8x2xf32> -> vector<8x2xf32>
    %c0_67 = arith.constant 0 : index
    %c0_68 = arith.constant 0 : index
    %484 = vector.load %arg10[%c0_67, %c0_68] : memref<1x2xf32, #tpu.memory_space<vmem>>, vector<1x2xf32>
    %485 = vector.broadcast %484 : vector<1x2xf32> to vector<8x2xf32>
    %486 = arith.addf %483, %485 : vector<8x2xf32>
    %c0_69 = arith.constant 0 : index
    %c0_70 = arith.constant 0 : index
    %487 = vector.load %arg11[%c0_69, %c0_70] : memref<8x2xf32, #tpu.memory_space<vmem>>, vector<8x2xf32>
    tpu.vector_store %arg11[%c0_69, %c0_70], %486 {strides = array<i32>} : memref<8x2xf32, #tpu.memory_space<vmem>>, vector<8x2xf32>,
    return
  }
}

</mosaic_0001>

<llo_original>
// kernel: tpu_custom_call.1
$region0: #{tpu_custom_call.1}
  #allocation0 [shape = 'u32[]', space=smem, size = 0x4, offset = 0x4, fixed_abs, tag = 'smem constant byte address 0x4 - core index']
  #allocation1 [shape = 'u32[72,128]{1,0:T(1,128)}', space=vmem, size = 0x9000, scoped, tag = 'internal scratch']
  #allocation2 [shape = 'f32[1,1]{1,0:T(1,128)S(1)}', space=vmem, size = 0x200, scoped, tag = 'scoped memory for tpu_custom_call.1']
  %s0 = inlined_call_operand.vmem [shape: s32[64,1], index: 0, kind: input, shape index: {}]
  %s1 = inlined_call_operand.vmem [shape: f32[64,256], index: 1, kind: input, shape index: {}]
  %s2 = inlined_call_operand.hbm [shape: f32[64,256], index: 2, kind: input, shape index: {}]
  %s3 = inlined_call_operand.vmem [shape: f32[1,256], index: 3, kind: input, shape index: {}]
  %s4 = inlined_call_operand.hbm [shape: f32[64,256], index: 4, kind: input, shape index: {}]
  %s5 = inlined_call_operand.hbm [shape: f32[64,256], index: 5, kind: input, shape index: {}]
  %s6 = inlined_call_operand.vmem [shape: f32[1,256], index: 6, kind: input, shape index: {}]
  %s7 = inlined_call_operand.vmem [shape: f32[64,1], index: 7, kind: input, shape index: {}]
  %s8 = inlined_call_operand.<no memory space> [shape: f32[1,1], index: 8, kind: input, shape index: {}]
  %s9 = inlined_call_operand.vmem [shape: f32[64,2], index: 9, kind: input, shape index: {}]
  %s10 = inlined_call_operand.vmem [shape: f32[1,2], index: 10, kind: input, shape index: {}]
  %s11 = inlined_call_operand.vmem [shape: f32[8,2], index: 11, kind: output, shape index: {}]
  %s12 = sld [smem:[#allocation0]]
  $region66: #{tpu_custom_call.1} parent=0
    _
  %s14 = ssub.s32 1, %s12
  %s15 = scalar_select 0, %s14, %s12
  %v16 = vstv %s8
  %17 = vst [vmem:[#allocation2] sm:$0x1] %v16
  $region1: #{tpu_custom_call.1} parent=0
    #allocation3 [shape = 'u8[65536]{0}', space=vmem, size = 0x10000, scoped, tag = 'input window, operand 2, single buffered']
    #allocation4 [shape = 's32[1]{0}', space=sflag, size = 0x4, scoped, tag = 'scoped memory for tpu_custom_call.1']
    #allocation5 [shape = 'u8[65536]{0}', space=vmem, size = 0x10000, scoped, tag = 'input window, operand 4, single buffered']
    #allocation6 [shape = 's32[1]{0}', space=sflag, size = 0x4, scoped, tag = 'scoped memory for tpu_custom_call.1']
    #allocation7 [shape = 'u8[65536]{0}', space=vmem, size = 0x10000, scoped, tag = 'input window, operand 5, single buffered']
    %18 = vsyncpa [#allocation4], 0
    %19 = vsyncpa [#allocation6], 0
    // Predicated region
    $region2: #{tpu_custom_call.1} parent=1 // pred_check
      _
    $region3: #{tpu_custom_call.1} parent=1 // pred_check_branch
      %21 = sbr.rel (0) target = $region5
    $region4: #{tpu_custom_call.1} parent=1 // pred_region
      _
    $region5: #{tpu_custom_call.1} parent=1 // pred_fallthru
      _
    // Predicated region
    $region6: #{tpu_custom_call.1} parent=1 // pred_check
      _
    $region7: #{tpu_custom_call.1} parent=1 // pred_check_branch
      %23 = sbr.rel (0) target = $region9
    $region8: #{tpu_custom_call.1} parent=1 // pred_region
      _
    $region9: #{tpu_custom_call.1} parent=1 // pred_fallthru
      _
    // Predicated region
    $region10: #{tpu_custom_call.1} parent=1 // pred_check
      _
    $region11: #{tpu_custom_call.1} parent=1 // pred_check_branch
      %25 = sbr.rel (0) target = $region13
    $region12: #{tpu_custom_call.1} parent=1 // pred_region
      %27 = vsyncadd [#allocation4], 0
      %s28 = sshll.u32 %s2, 4
      %s29 = int_to_ptr.hbm [resolvable:$true] %s28
      %s30 = sshll.u32 [#allocation3], 4
      %s31 = int_to_ptr.vmem [resolvable:$true] %s30
      %36 = dma.hbm_to_vmem [thread:$0]  %s29, 2048, %s31, [#allocation4], 256, 256, 16
    $region13: #{tpu_custom_call.1} parent=1 // pred_fallthru
      _
    // Predicated region
    $region14: #{tpu_custom_call.1} parent=1 // pred_check
      _
    $region15: #{tpu_custom_call.1} parent=1 // pred_check_branch
      %38 = sbr.rel (0) target = $region17
    $region16: #{tpu_custom_call.1} parent=1 // pred_region
      _
    $region17: #{tpu_custom_call.1} parent=1 // pred_fallthru
      _
    // Predicated region
    $region18: #{tpu_custom_call.1} parent=1 // pred_check
      _
    $region19: #{tpu_custom_call.1} parent=1 // pred_check_branch
      %40 = sbr.rel (0) target = $region21
    $region20: #{tpu_custom_call.1} parent=1 // pred_region
      %42 = vsyncadd [#allocation6], 0
      %s43 = sshll.u32 %s4, 4
      %s44 = int_to_ptr.hbm [resolvable:$true] %s43
      %s45 = sshll.u32 [#allocation5], 4
      %s46 = int_to_ptr.vmem [resolvable:$true] %s45
      %51 = dma.hbm_to_vmem [thread:$0]  %s44, 2048, %s46, [#allocation6], 256, 256, 16
    $region21: #{tpu_custom_call.1} parent=1 // pred_fallthru
      _
    // Predicated region
    $region22: #{tpu_custom_call.1} parent=1 // pred_check
      _
    $region23: #{tpu_custom_call.1} parent=1 // pred_check_branch
      %53 = sbr.rel (0) target = $region25
    $region24: #{tpu_custom_call.1} parent=1 // pred_region
      %55 = vsyncadd [#allocation6], 0
      %s56 = sshll.u32 %s5, 4
      %s57 = int_to_ptr.hbm [resolvable:$true] %s56
      %s58 = sshll.u32 [#allocation7], 4
      %s59 = int_to_ptr.vmem [resolvable:$true] %s58
      %64 = dma.hbm_to_vmem [thread:$0]  %s57, 2048, %s59, [#allocation6], 256, 256, 16
    $region25: #{tpu_custom_call.1} parent=1 // pred_fallthru
      _
    // Predicated region
    $region26: #{tpu_custom_call.1} parent=1 // pred_check
      _
    $region27: #{tpu_custom_call.1} parent=1 // pred_check_branch
      %66 = sbr.rel (0) target = $region29
    $region28: #{tpu_custom_call.1} parent=1 // pred_region
      _
    $region29: #{tpu_custom_call.1} parent=1 // pred_fallthru
      _
    // Predicated region
    $region30: #{tpu_custom_call.1} parent=1 // pred_check
      _
    $region31: #{tpu_custom_call.1} parent=1 // pred_check_branch
      %68 = sbr.rel (0) target = $region33
    $region32: #{tpu_custom_call.1} parent=1 // pred_region
      _
    $region33: #{tpu_custom_call.1} parent=1 // pred_fallthru
      _
    // Predicated region
    $region34: #{tpu_custom_call.1} parent=1 // pred_check
      _
    $region35: #{tpu_custom_call.1} parent=1 // pred_check_branch
      %70 = sbr.rel (0) target = $region37
    $region36: #{tpu_custom_call.1} parent=1 // pred_region
      _
    $region37: #{tpu_custom_call.1} parent=1 // pred_fallthru
      _
    // Predicated region
    $region38: #{tpu_custom_call.1} parent=1 // pred_check
      _
    $region39: #{tpu_custom_call.1} parent=1 // pred_check_branch
      %72 = sbr.rel (0) target = $region41
    $region40: #{tpu_custom_call.1} parent=1 // pred_region
      _
    $region41: #{tpu_custom_call.1} parent=1 // pred_fallthru
      _
    // Predicated region
    $region42: #{tpu_custom_call.1} parent=1 // pred_check
      _
    $region43: #{tpu_custom_call.1} parent=1 // pred_check_branch
      %74 = sbr.rel (0) target = $region45
    $region44: #{tpu_custom_call.1} parent=1 // pred_region
      _
    $region45: #{tpu_custom_call.1} parent=1 // pred_fallthru
      _
    // Predicated region
    $region46: #{tpu_custom_call.1} parent=1 // pred_check
      _
    $region47: #{tpu_custom_call.1} parent=1 // pred_check_branch
      %76 = sbr.rel (0) target = $region49
    $region48: #{tpu_custom_call.1} parent=1 // pred_region
      %78 = dma.done [#allocation4], 2048
    $region49: #{tpu_custom_call.1} parent=1 // pred_fallthru
      _
    // Predicated region
    $region50: #{tpu_custom_call.1} parent=1 // pred_check
      _
    $region51: #{tpu_custom_call.1} parent=1 // pred_check_branch
      %80 = sbr.rel (0) target = $region53
    $region52: #{tpu_custom_call.1} parent=1 // pred_region
      %82 = dma.done [#allocation6], 2048
    $region53: #{tpu_custom_call.1} parent=1 // pred_fallthru
      _
    // Predicated region
    $region54: #{tpu_custom_call.1} parent=1 // pred_check
      _
    $region55: #{tpu_custom_call.1} parent=1 // pred_check_branch
      %84 = sbr.rel (0) target = $region57
    $region56: #{tpu_custom_call.1} parent=1 // pred_region
      %86 = dma.done [#allocation6], 2048
    $region57: #{tpu_custom_call.1} parent=1 // pred_fallthru
      _
    %v87 = vld [vmem:[%s0] sm:$0xff]
    %v88 = vld [vmem:[%s0 + $0x8] sm:$0xff]
    %v89 = vld [vmem:[%s0 + $0x10] sm:$0xff]
    %v90 = vld [vmem:[%s0 + $0x18] sm:$0xff]
    %v91 = vld [vmem:[%s0 + $0x20] sm:$0xff]
    %v92 = vld [vmem:[%s0 + $0x28] sm:$0xff]
    %v93 = vld [vmem:[%s0 + $0x30] sm:$0xff]
    %v94 = vld [vmem:[%s0 + $0x38] sm:$0xff]
    %vm95 = vcmp.gt.s32.totalorder %v87, 0
    %v96 = vsel %vm95, %v87, 0
    %vm97 = vcmp.gt.s32.totalorder %v88, 0
    %v98 = vsel %vm97, %v88, 0
    %vm99 = vcmp.gt.s32.totalorder %v89, 0
    %v100 = vsel %vm99, %v89, 0
    %vm101 = vcmp.gt.s32.totalorder %v90, 0
    %v102 = vsel %vm101, %v90, 0
    %vm103 = vcmp.gt.s32.totalorder %v91, 0
    %v104 = vsel %vm103, %v91, 0
    %vm105 = vcmp.gt.s32.totalorder %v92, 0
    %v106 = vsel %vm105, %v92, 0
    %vm107 = vcmp.gt.s32.totalorder %v93, 0
    %v108 = vsel %vm107, %v93, 0
    %vm109 = vcmp.gt.s32.totalorder %v94, 0
    %v110 = vsel %vm109, %v94, 0
    %vm111 = vcmp.lt.s32.totalorder %v96, 49
    %v112 = vsel %vm111, %v96, 49
    %vm113 = vcmp.lt.s32.totalorder %v98, 49
    %v114 = vsel %vm113, %v98, 49
    %vm115 = vcmp.lt.s32.totalorder %v100, 49
    %v116 = vsel %vm115, %v100, 49
    %vm117 = vcmp.lt.s32.totalorder %v102, 49
    %v118 = vsel %vm117, %v102, 49
    %vm119 = vcmp.lt.s32.totalorder %v104, 49
    %v120 = vsel %vm119, %v104, 49
    %vm121 = vcmp.lt.s32.totalorder %v106, 49
    %v122 = vsel %vm121, %v106, 49
    %vm123 = vcmp.lt.s32.totalorder %v108, 49
    %v124 = vsel %vm123, %v108, 49
    %vm125 = vcmp.lt.s32.totalorder %v110, 49
    %v126 = vsel %vm125, %v110, 49
    %v127 = vlaneseq
    %v128 = vand.u32 %v127, 127
    %129 = vset.pattern.permute.xlu0 0
    %130 = vperm.xlu0 %129, %v112
    %v131 = vpop.permute.xlu0 %130
    %132 = vset.pattern.permute.xlu0 0
    %133 = vperm.xlu0 %132, %v114
    %v134 = vpop.permute.xlu0 %133
    %135 = vset.pattern.permute.xlu0 0
    %136 = vperm.xlu0 %135, %v116
    %v137 = vpop.permute.xlu0 %136
    %138 = vset.pattern.permute.xlu0 0
    %139 = vperm.xlu0 %138, %v118
    %v140 = vpop.permute.xlu0 %139
    %141 = vset.pattern.permute.xlu0 0
    %142 = vperm.xlu0 %141, %v120
    %v143 = vpop.permute.xlu0 %142
    %144 = vset.pattern.permute.xlu0 0
    %145 = vperm.xlu0 %144, %v122
    %v146 = vpop.permute.xlu0 %145
    %147 = vset.pattern.permute.xlu0 0
    %148 = vperm.xlu0 %147, %v124
    %v149 = vpop.permute.xlu0 %148
    %150 = vset.pattern.permute.xlu0 0
    %151 = vperm.xlu0 %150, %v126
    %v152 = vpop.permute.xlu0 %151
    %vm153 = vcmp.eq.s32.totalorder %v131, %v128
    %vm154 = vcmp.eq.s32.totalorder %v134, %v128
    %vm155 = vcmp.eq.s32.totalorder %v137, %v128
    %vm156 = vcmp.eq.s32.totalorder %v140, %v128
    %vm157 = vcmp.eq.s32.totalorder %v143, %v128
    %vm158 = vcmp.eq.s32.totalorder %v146, %v128
    %vm159 = vcmp.eq.s32.totalorder %v149, %v128
    %vm160 = vcmp.eq.s32.totalorder %v152, %v128
    %v161 = vsel %vm153, 1.0, 0.0
    %v162 = vsel %vm154, 1.0, 0.0
    %v163 = vsel %vm155, 1.0, 0.0
    %v164 = vsel %vm156, 1.0, 0.0
    %v165 = vsel %vm157, 1.0, 0.0
    %v166 = vsel %vm158, 1.0, 0.0
    %v167 = vsel %vm159, 1.0, 0.0
    %v168 = vsel %vm160, 1.0, 0.0
    %v169 = vld [vmem:[%s1] sm:$0xff]
    %v170 = vld [vmem:[%s1 + $0x8] sm:$0xff]
    %v171 = vld [vmem:[%s1 + $0x10] sm:$0xff]
    %v172 = vld [vmem:[%s1 + $0x18] sm:$0xff]
    %v173 = vld [vmem:[%s1 + $0x20] sm:$0xff]
    %v174 = vld [vmem:[%s1 + $0x28] sm:$0xff]
    %v175 = vld [vmem:[%s1 + $0x30] sm:$0xff]
    %v176 = vld [vmem:[%s1 + $0x38] sm:$0xff]
    %v177 = vld [vmem:[%s1 + $0x40] sm:$0xff]
    %v178 = vld [vmem:[%s1 + $0x48] sm:$0xff]
    %v179 = vld [vmem:[%s1 + $0x50] sm:$0xff]
    %v180 = vld [vmem:[%s1 + $0x58] sm:$0xff]
    %v181 = vld [vmem:[%s1 + $0x60] sm:$0xff]
    %v182 = vld [vmem:[%s1 + $0x68] sm:$0xff]
    %v183 = vld [vmem:[%s1 + $0x70] sm:$0xff]
    %v184 = vld [vmem:[%s1 + $0x78] sm:$0xff]
    %v185 = vld [vmem:[%s3] sm:$0x3]
    %v187 = vperm.slane %v185, 0
    %v188 = vperm.slane %v185, 1
    %vm191 = vcmask 523264
    %v193 = vsel %vm191, %v161, 0
    %v196 = vsel %vm191, %v162, 0
    %v199 = vsel %vm191, %v163, 0
    %v202 = vsel %vm191, %v164, 0
    %v205 = vsel %vm191, %v165, 0
    %v208 = vsel %vm191, %v166, 0
    %v211 = vsel %vm191, %v167, 0
    %v214 = vsel %vm191, %v168, 0
    %216 = vmatpush.msra.mxu0 0.0
    %217 = vmatpush.msra.mxu0 0.0
    %218 = vmatpush.msra.mxu0 0.0
    %219 = vmatpush.msra.mxu0 0.0
    %220 = vmatpush.msra.mxu0 0.0
    %221 = vmatpush.msra.mxu0 0.0
    %222 = vmatpush.msra.mxu0 0.0
    %223 = vmatpush.msra.mxu0 0.0
    %224 = vmatpush.msra.mxu0 %v183
    %225 = vmatpush.msra.mxu0 %v181
    %226 = vmatpush.msra.mxu0 %v179
    %227 = vmatpush.msra.mxu0 %v177
    %228 = vmatpush.msra.mxu0 %v175
    %229 = vmatpush.msra.mxu0 %v173
    %230 = vmatpush.msra.mxu0 %v171
    %231 = vmatpush.msra.mxu0 %v169
    %232 = vmatmul.f32.gmra.mxu0 %v193
    %v233 = vpop.f32.mrf.mxu0
    %v234 = vadd.f32 %v187, %v233
    %235 = vmatmul.f32.gmra.mxu0 %v196
    %v236 = vpop.f32.mrf.mxu0
    %v237 = vadd.f32 %v187, %v236
    %238 = vmatmul.f32.gmra.mxu0 %v199
    %v239 = vpop.f32.mrf.mxu0
    %v240 = vadd.f32 %v187, %v239
    %241 = vmatmul.f32.gmra.mxu0 %v202
    %v242 = vpop.f32.mrf.mxu0
    %v243 = vadd.f32 %v187, %v242
    %244 = vmatmul.f32.gmra.mxu0 %v205
    %v245 = vpop.f32.mrf.mxu0
    %v246 = vadd.f32 %v187, %v245
    %247 = vmatmul.f32.gmra.mxu0 %v208
    %v248 = vpop.f32.mrf.mxu0
    %v249 = vadd.f32 %v187, %v248
    %250 = vmatmul.f32.gmra.mxu0 %v211
    %v251 = vpop.f32.mrf.mxu0
    %v252 = vadd.f32 %v187, %v251
    %253 = vmatmul.f32.gmra.mxu0 %v214
    %v254 = vpop.f32.mrf.mxu0
    %v255 = vadd.f32 %v187, %v254
    %256 = vdwg.mxu0
    %257 = vmatpush.msra.mxu0 0.0
    %258 = vmatpush.msra.mxu0 0.0
    %259 = vmatpush.msra.mxu0 0.0
    %260 = vmatpush.msra.mxu0 0.0
    %261 = vmatpush.msra.mxu0 0.0
    %262 = vmatpush.msra.mxu0 0.0
    %263 = vmatpush.msra.mxu0 0.0
    %264 = vmatpush.msra.mxu0 0.0
    %265 = vmatpush.msra.mxu0 %v184
    %266 = vmatpush.msra.mxu0 %v182
    %267 = vmatpush.msra.mxu0 %v180
    %268 = vmatpush.msra.mxu0 %v178
    %269 = vmatpush.msra.mxu0 %v176
    %270 = vmatpush.msra.mxu0 %v174
    %271 = vmatpush.msra.mxu0 %v172
    %272 = vmatpush.msra.mxu0 %v170
    %273 = vmatmul.f32.gmra.mxu0 %v193
    %v274 = vpop.f32.mrf.mxu0
    %v275 = vadd.f32 %v188, %v274
    %276 = vmatmul.f32.gmra.mxu0 %v196
    %v277 = vpop.f32.mrf.mxu0
    %v278 = vadd.f32 %v188, %v277
    %279 = vmatmul.f32.gmra.mxu0 %v199
    %v280 = vpop.f32.mrf.mxu0
    %v281 = vadd.f32 %v188, %v280
    %282 = vmatmul.f32.gmra.mxu0 %v202
    %v283 = vpop.f32.mrf.mxu0
    %v284 = vadd.f32 %v188, %v283
    %285 = vmatmul.f32.gmra.mxu0 %v205
    %v286 = vpop.f32.mrf.mxu0
    %v287 = vadd.f32 %v188, %v286
    %288 = vmatmul.f32.gmra.mxu0 %v208
    %v289 = vpop.f32.mrf.mxu0
    %v290 = vadd.f32 %v188, %v289
    %291 = vmatmul.f32.gmra.mxu0 %v211
    %v292 = vpop.f32.mrf.mxu0
    %v293 = vadd.f32 %v188, %v292
    %294 = vmatmul.f32.gmra.mxu0 %v214
    %v295 = vpop.f32.mrf.mxu0
    %v296 = vadd.f32 %v188, %v295
    %297 = vdwg.mxu0
    %v298 = vadd.s32 %v128, 128
    %vm299 = vcmp.lt.s32.totalorder %v128, 0
    %v300 = vsub.s32 0, %v128
    %v301 = vsel %vm299, %v300, %v128
    %v302 = vshrl.u32 %v301, 6
    %v303 = vand.u32 %v301, 63
    %v304 = vsub.s32 0, %v303
    %v305 = vsel %vm299, %v304, %v303
    %vm306 = vcmp.lt.s32.totalorder %v298, 0
    %v307 = vsub.s32 0, %v298
    %v308 = vsel %vm306, %v307, %v298
    %v309 = vshrl.u32 %v308, 6
    %v310 = vand.u32 %v308, 63
    %v311 = vsub.s32 0, %v310
    %v312 = vsel %vm306, %v311, %v310
    %vm313 = vcmp.ne.s32.totalorder %v305, 0
    %vm314 = vcmp.ne.s32.totalorder %v312, 0
    %vm315 = vcmp.lt.s32.totalorder %v305, 0
    %vm316 = vcmp.lt.s32.totalorder %v312, 0
    %vm317 = vmand %vm315, %vm313
    %vm318 = vmand %vm316, %vm314
    %v319 = vadd.s32 %v305, 64
    %v320 = vadd.s32 %v312, 64
    %v321 = vsel %vm317, %v319, %v305
    %v322 = vsel %vm318, %v320, %v312
    %vm323 = vcmp.lt.s32.totalorder %v321, 32
    %vm324 = vcmp.lt.s32.totalorder %v322, 32
    %vm325 = vcmp.ge.s32.totalorder %v128, 128
    %vm326 = vcmp.ge.s32.totalorder %v298, 128
    %vm327 = vcmp.lt.s32.totalorder %v128, 192
    %vm328 = vcmp.lt.s32.totalorder %v298, 192
    %vm329 = vmand %vm325, %vm327
    %vm330 = vmand %vm326, %vm328
    %v331 = vld [vmem:[#allocation3] sm:$0xff]
    %v332 = vld [vmem:[#allocation3 + $0x8] sm:$0xff]
    %v333 = vld [vmem:[#allocation3 + $0x10] sm:$0xff]
    %v334 = vld [vmem:[#allocation3 + $0x18] sm:$0xff]
    %v335 = vld [vmem:[#allocation3 + $0x20] sm:$0xff]
    %v336 = vld [vmem:[#allocation3 + $0x28] sm:$0xff]
    %v337 = vld [vmem:[#allocation3 + $0x30] sm:$0xff]
    %v338 = vld [vmem:[#allocation3 + $0x38] sm:$0xff]
    %v339 = vld [vmem:[#allocation3 + $0x40] sm:$0xff]
    %v340 = vld [vmem:[#allocation3 + $0x48] sm:$0xff]
    %v341 = vld [vmem:[#allocation3 + $0x50] sm:$0xff]
    %v342 = vld [vmem:[#allocation3 + $0x58] sm:$0xff]
    %v343 = vld [vmem:[#allocation3 + $0x60] sm:$0xff]
    %v344 = vld [vmem:[#allocation3 + $0x68] sm:$0xff]
    %v345 = vld [vmem:[#allocation3 + $0x70] sm:$0xff]
    %v346 = vld [vmem:[#allocation3 + $0x78] sm:$0xff]
    %v347 = vsel %vm323, %v234, %v255
    %v348 = vsel %vm324, %v275, %v296
    %v349 = vsel %vm323, %v237, %v252
    %v350 = vsel %vm324, %v278, %v293
    %v351 = vsel %vm323, %v240, %v249
    %v352 = vsel %vm324, %v281, %v290
    %v353 = vsel %vm323, %v243, %v246
    %v354 = vsel %vm324, %v284, %v287
    %v355 = vsel %vm323, %v246, %v243
    %v356 = vsel %vm324, %v287, %v284
    %v357 = vsel %vm323, %v249, %v240
    %v358 = vsel %vm324, %v290, %v281
    %v359 = vsel %vm323, %v252, %v237
    %v360 = vsel %vm324, %v293, %v278
    %v361 = vsel %vm323, %v255, %v234
    %v362 = vsel %vm324, %v296, %v275
    %v364 = vsel %vm191, 0.0, 0
    %366 = vmatpush.msra.mxu0 0.0
    %367 = vmatpush.msra.mxu0 0.0
    %368 = vmatpush.msra.mxu0 0.0
    %369 = vmatpush.msra.mxu0 0.0
    %370 = vmatpush.msra.mxu0 0.0
    %371 = vmatpush.msra.mxu0 0.0
    %372 = vmatpush.msra.mxu0 0.0
    %373 = vmatpush.msra.mxu0 0.0
    %374 = vmatpush.msra.mxu0 %v345
    %375 = vmatpush.msra.mxu0 %v343
    %376 = vmatpush.msra.mxu0 %v341
    %377 = vmatpush.msra.mxu0 %v339
    %378 = vmatpush.msra.mxu0 %v337
    %379 = vmatpush.msra.mxu0 %v335
    %380 = vmatpush.msra.mxu0 %v333
    %381 = vmatpush.msra.mxu0 %v331
    %382 = vmatmul.f32.gmra.mxu0 %v364
    %v383 = vpop.f32.mrf.mxu0
    %v384 = vadd.f32 0.0, %v383
    %385 = vdwg.mxu0
    %386 = vmatpush.msra.mxu0 0.0
    %387 = vmatpush.msra.mxu0 0.0
    %388 = vmatpush.msra.mxu0 0.0
    %389 = vmatpush.msra.mxu0 0.0
    %390 = vmatpush.msra.mxu0 0.0
    %391 = vmatpush.msra.mxu0 0.0
    %392 = vmatpush.msra.mxu0 0.0
    %393 = vmatpush.msra.mxu0 0.0
    %394 = vmatpush.msra.mxu0 %v346
    %395 = vmatpush.msra.mxu0 %v344
    %396 = vmatpush.msra.mxu0 %v342
    %397 = vmatpush.msra.mxu0 %v340
    %398 = vmatpush.msra.mxu0 %v338
    %399 = vmatpush.msra.mxu0 %v336
    %400 = vmatpush.msra.mxu0 %v334
    %401 = vmatpush.msra.mxu0 %v332
    %402 = vmatmul.f32.gmra.mxu0 %v364
    %v403 = vpop.f32.mrf.mxu0
    %v404 = vadd.f32 0.0, %v403
    %405 = vdwg.mxu0
    %v406 = vadd.f32 %v347, %v384
    %v407 = vadd.f32 %v348, %v404
    %v408 = vtanh.pop %v406
    %v409 = vtanh.pop %v407
    %v410 = vxor.u32 %v406, 2147483648
    %v411 = vxor.u32 %v407, 2147483648
    %v412 = vmul.f32 %v410, 1.442695
    %v413 = vpow.pop %v412
    %v414 = vmul.f32 %v411, 1.442695
    %v415 = vpow.pop %v414
    %v416 = vadd.f32 %v413, 1.0
    %v417 = vadd.f32 %v415, 1.0
    %v418 = vrcp.pop %v416
    %v419 = vmul.f32 %v416, %v418
    %v420 = vsub.f32 1.0, %v419
    %v421 = vmul.f32 %v418, %v420
    %v422 = vadd.f32 %v418, %v421
    %vm423 = vweird.f32 %v416
    %vm424 = vweird.f32 %v418
    %vm425 = vmor %vm423, %vm424
    %v426 = vsel %vm425, %v418, %v422
    %v427 = vand.u32 2147483647, %v416
    %vm428 = vcmp.eq.f32.partialorder %v427, 8.507059e+37
    %v429 = vand.u32 %v416, 2147483648
    %v430 = vor.u32 1.1754944e-38, %v429
    %v431 = vsel %vm428, %v430, %v426
    %v432 = vmul.f32 1.0, %v431
    %v433 = vrcp.pop %v417
    %v434 = vmul.f32 %v417, %v433
    %v435 = vsub.f32 1.0, %v434
    %v436 = vmul.f32 %v433, %v435
    %v437 = vadd.f32 %v433, %v436
    %vm438 = vweird.f32 %v417
    %vm439 = vweird.f32 %v433
    %vm440 = vmor %vm438, %vm439
    %v441 = vsel %vm440, %v433, %v437
    %v442 = vand.u32 2147483647, %v417
    %vm443 = vcmp.eq.f32.partialorder %v442, 8.507059e+37
    %v444 = vand.u32 %v417, 2147483648
    %v445 = vor.u32 1.1754944e-38, %v444
    %v446 = vsel %vm443, %v445, %v441
    %v447 = vmul.f32 1.0, %v446
    %v448 = vsel %vm329, %v408, %v432
    %v449 = vsel %vm330, %v409, %v447
    %v450 = vmul.f32 %v448, 0.0
    %v451 = vmul.f32 %v448, %v449
    %453 = vrot.lane.b32.xlu0 %v451, 64
    %v454 = vpop.permute.xlu0 %453
    %v456 = vadd.f32 %v450, %v454
    %v457 = vtanh.pop %v456
    %v458 = vmul.f32 %v449, %v457
    %460 = vrot.lane.b32.xlu0 %v458, 64
    %v461 = vpop.permute.xlu0 %460
    %v462 = vsel %vm191, %v461, 0
    %464 = vmatpush.msra.mxu0 0.0
    %465 = vmatpush.msra.mxu0 0.0
    %466 = vmatpush.msra.mxu0 0.0
    %467 = vmatpush.msra.mxu0 0.0
    %468 = vmatpush.msra.mxu0 0.0
    %469 = vmatpush.msra.mxu0 0.0
    %470 = vmatpush.msra.mxu0 0.0
    %471 = vmatpush.msra.mxu0 0.0
    %472 = vmatpush.msra.mxu0 %v345
    %473 = vmatpush.msra.mxu0 %v343
    %474 = vmatpush.msra.mxu0 %v341
    %475 = vmatpush.msra.mxu0 %v339
    %476 = vmatpush.msra.mxu0 %v337
    %477 = vmatpush.msra.mxu0 %v335
    %478 = vmatpush.msra.mxu0 %v333
    %479 = vmatpush.msra.mxu0 %v331
    %480 = vmatmul.f32.gmra.mxu0 %v462
    %v481 = vpop.f32.mrf.mxu0
    %v482 = vadd.f32 0.0, %v481
    %483 = vdwg.mxu0
    %484 = vmatpush.msra.mxu0 0.0
    %485 = vmatpush.msra.mxu0 0.0
    %486 = vmatpush.msra.mxu0 0.0
    %487 = vmatpush.msra.mxu0 0.0
    %488 = vmatpush.msra.mxu0 0.0
    %489 = vmatpush.msra.mxu0 0.0
    %490 = vmatpush.msra.mxu0 0.0
    %491 = vmatpush.msra.mxu0 0.0
    %492 = vmatpush.msra.mxu0 %v346
    %493 = vmatpush.msra.mxu0 %v344
    %494 = vmatpush.msra.mxu0 %v342
    %495 = vmatpush.msra.mxu0 %v340
    %496 = vmatpush.msra.mxu0 %v338
    %497 = vmatpush.msra.mxu0 %v336
    %498 = vmatpush.msra.mxu0 %v334
    %499 = vmatpush.msra.mxu0 %v332
    %500 = vmatmul.f32.gmra.mxu0 %v462
    %v501 = vpop.f32.mrf.mxu0
    %v502 = vadd.f32 0.0, %v501
    %503 = vdwg.mxu0
    %v504 = vadd.f32 %v349, %v482
    %v505 = vadd.f32 %v350, %v502
    %v506 = vtanh.pop %v504
    %v507 = vtanh.pop %v505
    %v508 = vxor.u32 %v504, 2147483648
    %v509 = vxor.u32 %v505, 2147483648
    %v510 = vmul.f32 %v508, 1.442695
    %v511 = vpow.pop %v510
    %v512 = vmul.f32 %v509, 1.442695
    %v513 = vpow.pop %v512
    %v514 = vadd.f32 %v511, 1.0
    %v515 = vadd.f32 %v513, 1.0
    %v516 = vrcp.pop %v514
    %v517 = vmul.f32 %v514, %v516
    %v518 = vsub.f32 1.0, %v517
    %v519 = vmul.f32 %v516, %v518
    %v520 = vadd.f32 %v516, %v519
    %vm521 = vweird.f32 %v514
    %vm522 = vweird.f32 %v516
    %vm523 = vmor %vm521, %vm522
    %v524 = vsel %vm523, %v516, %v520
    %v525 = vand.u32 2147483647, %v514
    %vm526 = vcmp.eq.f32.partialorder %v525, 8.507059e+37
    %v527 = vand.u32 %v514, 2147483648
    %v528 = vor.u32 1.1754944e-38, %v527
    %v529 = vsel %vm526, %v528, %v524
    %v530 = vmul.f32 1.0, %v529
    %v531 = vrcp.pop %v515
    %v532 = vmul.f32 %v515, %v531
    %v533 = vsub.f32 1.0, %v532
    %v534 = vmul.f32 %v531, %v533
    %v535 = vadd.f32 %v531, %v534
    %vm536 = vweird.f32 %v515
    %vm537 = vweird.f32 %v531
    %vm538 = vmor %vm536, %vm537
    %v539 = vsel %vm538, %v531, %v535
    %v540 = vand.u32 2147483647, %v515
    %vm541 = vcmp.eq.f32.partialorder %v540, 8.507059e+37
    %v542 = vand.u32 %v515, 2147483648
    %v543 = vor.u32 1.1754944e-38, %v542
    %v544 = vsel %vm541, %v543, %v539
    %v545 = vmul.f32 1.0, %v544
    %v546 = vsel %vm329, %v506, %v530
    %v547 = vsel %vm330, %v507, %v545
    %v548 = vmul.f32 %v546, %v456
    %v549 = vmul.f32 %v546, %v547
    %551 = vrot.lane.b32.xlu0 %v549, 64
    %v552 = vpop.permute.xlu0 %551
    %v554 = vadd.f32 %v548, %v552
    %v555 = vtanh.pop %v554
    %v556 = vmul.f32 %v547, %v555
    %558 = vrot.lane.b32.xlu0 %v556, 64
    %v559 = vpop.permute.xlu0 %558
    %v560 = vsel %vm191, %v559, 0
    %562 = vmatpush.msra.mxu0 0.0
    %563 = vmatpush.msra.mxu0 0.0
    %564 = vmatpush.msra.mxu0 0.0
    %565 = vmatpush.msra.mxu0 0.0
    %566 = vmatpush.msra.mxu0 0.0
    %567 = vmatpush.msra.mxu0 0.0
    %568 = vmatpush.msra.mxu0 0.0
    %569 = vmatpush.msra.mxu0 0.0
    %570 = vmatpush.msra.mxu0 %v345
    %571 = vmatpush.msra.mxu0 %v343
    %572 = vmatpush.msra.mxu0 %v341
    %573 = vmatpush.msra.mxu0 %v339
    %574 = vmatpush.msra.mxu0 %v337
    %575 = vmatpush.msra.mxu0 %v335
    %576 = vmatpush.msra.mxu0 %v333
    %577 = vmatpush.msra.mxu0 %v331
    %578 = vmatmul.f32.gmra.mxu0 %v560
    %v579 = vpop.f32.mrf.mxu0
    %v580 = vadd.f32 0.0, %v579
    %581 = vdwg.mxu0
    %582 = vmatpush.msra.mxu0 0.0
    %583 = vmatpush.msra.mxu0 0.0
    %584 = vmatpush.msra.mxu0 0.0
    %585 = vmatpush.msra.mxu0 0.0
    %586 = vmatpush.msra.mxu0 0.0
    %587 = vmatpush.msra.mxu0 0.0
    %588 = vmatpush.msra.mxu0 0.0
    %589 = vmatpush.msra.mxu0 0.0
    %590 = vmatpush.msra.mxu0 %v346
    %591 = vmatpush.msra.mxu0 %v344
    %592 = vmatpush.msra.mxu0 %v342
    %593 = vmatpush.msra.mxu0 %v340
    %594 = vmatpush.msra.mxu0 %v338
    %595 = vmatpush.msra.mxu0 %v336
    %596 = vmatpush.msra.mxu0 %v334
    %597 = vmatpush.msra.mxu0 %v332
    %598 = vmatmul.f32.gmra.mxu0 %v560
    %v599 = vpop.f32.mrf.mxu0
    %v600 = vadd.f32 0.0, %v599
    %601 = vdwg.mxu0
    %v602 = vadd.f32 %v351, %v580
    %v603 = vadd.f32 %v352, %v600
    %v604 = vtanh.pop %v602
    %v605 = vtanh.pop %v603
    %v606 = vxor.u32 %v602, 2147483648
    %v607 = vxor.u32 %v603, 2147483648
    %v608 = vmul.f32 %v606, 1.442695
    %v609 = vpow.pop %v608
    %v610 = vmul.f32 %v607, 1.442695
    %v611 = vpow.pop %v610
    %v612 = vadd.f32 %v609, 1.0
    %v613 = vadd.f32 %v611, 1.0
    %v614 = vrcp.pop %v612
    %v615 = vmul.f32 %v612, %v614
    %v616 = vsub.f32 1.0, %v615
    %v617 = vmul.f32 %v614, %v616
    %v618 = vadd.f32 %v614, %v617
    %vm619 = vweird.f32 %v612
    %vm620 = vweird.f32 %v614
    %vm621 = vmor %vm619, %vm620
    %v622 = vsel %vm621, %v614, %v618
    %v623 = vand.u32 2147483647, %v612
    %vm624 = vcmp.eq.f32.partialorder %v623, 8.507059e+37
    %v625 = vand.u32 %v612, 2147483648
    %v626 = vor.u32 1.1754944e-38, %v625
    %v627 = vsel %vm624, %v626, %v622
    %v628 = vmul.f32 1.0, %v627
    %v629 = vrcp.pop %v613
    %v630 = vmul.f32 %v613, %v629
    %v631 = vsub.f32 1.0, %v630
    %v632 = vmul.f32 %v629, %v631
    %v633 = vadd.f32 %v629, %v632
    %vm634 = vweird.f32 %v613
    %vm635 = vweird.f32 %v629
    %vm636 = vmor %vm634, %vm635
    %v637 = vsel %vm636, %v629, %v633
    %v638 = vand.u32 2147483647, %v613
    %vm639 = vcmp.eq.f32.partialorder %v638, 8.507059e+37
    %v640 = vand.u32 %v613, 2147483648
    %v641 = vor.u32 1.1754944e-38, %v640
    %v642 = vsel %vm639, %v641, %v637
    %v643 = vmul.f32 1.0, %v642
    %v644 = vsel %vm329, %v604, %v628
    %v645 = vsel %vm330, %v605, %v643
    %v646 = vmul.f32 %v644, %v554
    %v647 = vmul.f32 %v644, %v645
    %649 = vrot.lane.b32.xlu0 %v647, 64
    %v650 = vpop.permute.xlu0 %649
    %v652 = vadd.f32 %v646, %v650
    %v653 = vtanh.pop %v652
    %v654 = vmul.f32 %v645, %v653
    %656 = vrot.lane.b32.xlu0 %v654, 64
    %v657 = vpop.permute.xlu0 %656
    %v658 = vsel %vm191, %v657, 0
    %660 = vmatpush.msra.mxu0 0.0
    %661 = vmatpush.msra.mxu0 0.0
    %662 = vmatpush.msra.mxu0 0.0
    %663 = vmatpush.msra.mxu0 0.0
    %664 = vmatpush.msra.mxu0 0.0
    %665 = vmatpush.msra.mxu0 0.0
    %666 = vmatpush.msra.mxu0 0.0
    %667 = vmatpush.msra.mxu0 0.0
    %668 = vmatpush.msra.mxu0 %v345
    %669 = vmatpush.msra.mxu0 %v343
    %670 = vmatpush.msra.mxu0 %v341
    %671 = vmatpush.msra.mxu0 %v339
    %672 = vmatpush.msra.mxu0 %v337
    %673 = vmatpush.msra.mxu0 %v335
    %674 = vmatpush.msra.mxu0 %v333
    %675 = vmatpush.msra.mxu0 %v331
    %676 = vmatmul.f32.gmra.mxu0 %v658
    %v677 = vpop.f32.mrf.mxu0
    %v678 = vadd.f32 0.0, %v677
    %679 = vdwg.mxu0
    %680 = vmatpush.msra.mxu0 0.0
    %681 = vmatpush.msra.mxu0 0.0
    %682 = vmatpush.msra.mxu0 0.0
    %683 = vmatpush.msra.mxu0 0.0
    %684 = vmatpush.msra.mxu0 0.0
    %685 = vmatpush.msra.mxu0 0.0
    %686 = vmatpush.msra.mxu0 0.0
    %687 = vmatpush.msra.mxu0 0.0
    %688 = vmatpush.msra.mxu0 %v346
    %689 = vmatpush.msra.mxu0 %v344
    %690 = vmatpush.msra.mxu0 %v342
    %691 = vmatpush.msra.mxu0 %v340
    %692 = vmatpush.msra.mxu0 %v338
    %693 = vmatpush.msra.mxu0 %v336
    %694 = vmatpush.msra.mxu0 %v334
    %695 = vmatpush.msra.mxu0 %v332
    %696 = vmatmul.f32.gmra.mxu0 %v658
    %v697 = vpop.f32.mrf.mxu0
    %v698 = vadd.f32 0.0, %v697
    %699 = vdwg.mxu0
    %v700 = vadd.f32 %v353, %v678
    %v701 = vadd.f32 %v354, %v698
    %v702 = vtanh.pop %v700
    %v703 = vtanh.pop %v701
    %v704 = vxor.u32 %v700, 2147483648
    %v705 = vxor.u32 %v701, 2147483648
    %v706 = vmul.f32 %v704, 1.442695
    %v707 = vpow.pop %v706
    %v708 = vmul.f32 %v705, 1.442695
    %v709 = vpow.pop %v708
    %v710 = vadd.f32 %v707, 1.0
    %v711 = vadd.f32 %v709, 1.0
    %v712 = vrcp.pop %v710
    %v713 = vmul.f32 %v710, %v712
    %v714 = vsub.f32 1.0, %v713
    %v715 = vmul.f32 %v712, %v714
    %v716 = vadd.f32 %v712, %v715
    %vm717 = vweird.f32 %v710
    %vm718 = vweird.f32 %v712
    %vm719 = vmor %vm717, %vm718
    %v720 = vsel %vm719, %v712, %v716
    %v721 = vand.u32 2147483647, %v710
    %vm722 = vcmp.eq.f32.partialorder %v721, 8.507059e+37
    %v723 = vand.u32 %v710, 2147483648
    %v724 = vor.u32 1.1754944e-38, %v723
    %v725 = vsel %vm722, %v724, %v720
    %v726 = vmul.f32 1.0, %v725
    %v727 = vrcp.pop %v711
    %v728 = vmul.f32 %v711, %v727
    %v729 = vsub.f32 1.0, %v728
    %v730 = vmul.f32 %v727, %v729
    %v731 = vadd.f32 %v727, %v730
    %vm732 = vweird.f32 %v711
    %vm733 = vweird.f32 %v727
    %vm734 = vmor %vm732, %vm733
    %v735 = vsel %vm734, %v727, %v731
    %v736 = vand.u32 2147483647, %v711
    %vm737 = vcmp.eq.f32.partialorder %v736, 8.507059e+37
    %v738 = vand.u32 %v711, 2147483648
    %v739 = vor.u32 1.1754944e-38, %v738
    %v740 = vsel %vm737, %v739, %v735
    %v741 = vmul.f32 1.0, %v740
    %v742 = vsel %vm329, %v702, %v726
    %v743 = vsel %vm330, %v703, %v741
    %v744 = vmul.f32 %v742, %v652
    %v745 = vmul.f32 %v742, %v743
    %747 = vrot.lane.b32.xlu0 %v745, 64
    %v748 = vpop.permute.xlu0 %747
    %v750 = vadd.f32 %v744, %v748
    %v751 = vtanh.pop %v750
    %v752 = vmul.f32 %v743, %v751
    %754 = vrot.lane.b32.xlu0 %v752, 64
    %v755 = vpop.permute.xlu0 %754
    %v756 = vsel %vm191, %v755, 0
    %758 = vmatpush.msra.mxu0 0.0
    %759 = vmatpush.msra.mxu0 0.0
    %760 = vmatpush.msra.mxu0 0.0
    %761 = vmatpush.msra.mxu0 0.0
    %762 = vmatpush.msra.mxu0 0.0
    %763 = vmatpush.msra.mxu0 0.0
    %764 = vmatpush.msra.mxu0 0.0
    %765 = vmatpush.msra.mxu0 0.0
    %766 = vmatpush.msra.mxu0 %v345
    %767 = vmatpush.msra.mxu0 %v343
    %768 = vmatpush.msra.mxu0 %v341
    %769 = vmatpush.msra.mxu0 %v339
    %770 = vmatpush.msra.mxu0 %v337
    %771 = vmatpush.msra.mxu0 %v335
    %772 = vmatpush.msra.mxu0 %v333
    %773 = vmatpush.msra.mxu0 %v331
    %774 = vmatmul.f32.gmra.mxu0 %v756
    %v775 = vpop.f32.mrf.mxu0
    %v776 = vadd.f32 0.0, %v775
    %777 = vdwg.mxu0
    %778 = vmatpush.msra.mxu0 0.0
    %779 = vmatpush.msra.mxu0 0.0
    %780 = vmatpush.msra.mxu0 0.0
    %781 = vmatpush.msra.mxu0 0.0
    %782 = vmatpush.msra.mxu0 0.0
    %783 = vmatpush.msra.mxu0 0.0
    %784 = vmatpush.msra.mxu0 0.0
    %785 = vmatpush.msra.mxu0 0.0
    %786 = vmatpush.msra.mxu0 %v346
    %787 = vmatpush.msra.mxu0 %v344
    %788 = vmatpush.msra.mxu0 %v342
    %789 = vmatpush.msra.mxu0 %v340
    %790 = vmatpush.msra.mxu0 %v338
    %791 = vmatpush.msra.mxu0 %v336
    %792 = vmatpush.msra.mxu0 %v334
    %793 = vmatpush.msra.mxu0 %v332
    %794 = vmatmul.f32.gmra.mxu0 %v756
    %v795 = vpop.f32.mrf.mxu0
    %v796 = vadd.f32 0.0, %v795
    %797 = vdwg.mxu0
    %v798 = vadd.f32 %v355, %v776
    %v799 = vadd.f32 %v356, %v796
    %v800 = vtanh.pop %v798
    %v801 = vtanh.pop %v799
    %v802 = vxor.u32 %v798, 2147483648
    %v803 = vxor.u32 %v799, 2147483648
    %v804 = vmul.f32 %v802, 1.442695
    %v805 = vpow.pop %v804
    %v806 = vmul.f32 %v803, 1.442695
    %v807 = vpow.pop %v806
    %v808 = vadd.f32 %v805, 1.0
    %v809 = vadd.f32 %v807, 1.0
    %v810 = vrcp.pop %v808
    %v811 = vmul.f32 %v808, %v810
    %v812 = vsub.f32 1.0, %v811
    %v813 = vmul.f32 %v810, %v812
    %v814 = vadd.f32 %v810, %v813
    %vm815 = vweird.f32 %v808
    %vm816 = vweird.f32 %v810
    %vm817 = vmor %vm815, %vm816
    %v818 = vsel %vm817, %v810, %v814
    %v819 = vand.u32 2147483647, %v808
    %vm820 = vcmp.eq.f32.partialorder %v819, 8.507059e+37
    %v821 = vand.u32 %v808, 2147483648
    %v822 = vor.u32 1.1754944e-38, %v821
    %v823 = vsel %vm820, %v822, %v818
    %v824 = vmul.f32 1.0, %v823
    %v825 = vrcp.pop %v809
    %v826 = vmul.f32 %v809, %v825
    %v827 = vsub.f32 1.0, %v826
    %v828 = vmul.f32 %v825, %v827
    %v829 = vadd.f32 %v825, %v828
    %vm830 = vweird.f32 %v809
    %vm831 = vweird.f32 %v825
    %vm832 = vmor %vm830, %vm831
    %v833 = vsel %vm832, %v825, %v829
    %v834 = vand.u32 2147483647, %v809
    %vm835 = vcmp.eq.f32.partialorder %v834, 8.507059e+37
    %v836 = vand.u32 %v809, 2147483648
    %v837 = vor.u32 1.1754944e-38, %v836
    %v838 = vsel %vm835, %v837, %v833
    %v839 = vmul.f32 1.0, %v838
    %v840 = vsel %vm329, %v800, %v824
    %v841 = vsel %vm330, %v801, %v839
    %v842 = vmul.f32 %v840, %v750
    %v843 = vmul.f32 %v840, %v841
    %845 = vrot.lane.b32.xlu0 %v843, 64
    %v846 = vpop.permute.xlu0 %845
    %v848 = vadd.f32 %v842, %v846
    %v849 = vtanh.pop %v848
    %v850 = vmul.f32 %v841, %v849
    %852 = vrot.lane.b32.xlu0 %v850, 64
    %v853 = vpop.permute.xlu0 %852
    %v854 = vsel %vm191, %v853, 0
    %856 = vmatpush.msra.mxu0 0.0
    %857 = vmatpush.msra.mxu0 0.0
    %858 = vmatpush.msra.mxu0 0.0
    %859 = vmatpush.msra.mxu0 0.0
    %860 = vmatpush.msra.mxu0 0.0
    %861 = vmatpush.msra.mxu0 0.0
    %862 = vmatpush.msra.mxu0 0.0
    %863 = vmatpush.msra.mxu0 0.0
    %864 = vmatpush.msra.mxu0 %v345
    %865 = vmatpush.msra.mxu0 %v343
    %866 = vmatpush.msra.mxu0 %v341
    %867 = vmatpush.msra.mxu0 %v339
    %868 = vmatpush.msra.mxu0 %v337
    %869 = vmatpush.msra.mxu0 %v335
    %870 = vmatpush.msra.mxu0 %v333
    %871 = vmatpush.msra.mxu0 %v331
    %872 = vmatmul.f32.gmra.mxu0 %v854
    %v873 = vpop.f32.mrf.mxu0
    %v874 = vadd.f32 0.0, %v873
    %875 = vdwg.mxu0
    %876 = vmatpush.msra.mxu0 0.0
    %877 = vmatpush.msra.mxu0 0.0
    %878 = vmatpush.msra.mxu0 0.0
    %879 = vmatpush.msra.mxu0 0.0
    %880 = vmatpush.msra.mxu0 0.0
    %881 = vmatpush.msra.mxu0 0.0
    %882 = vmatpush.msra.mxu0 0.0
    %883 = vmatpush.msra.mxu0 0.0
    %884 = vmatpush.msra.mxu0 %v346
    %885 = vmatpush.msra.mxu0 %v344
    %886 = vmatpush.msra.mxu0 %v342
    %887 = vmatpush.msra.mxu0 %v340
    %888 = vmatpush.msra.mxu0 %v338
    %889 = vmatpush.msra.mxu0 %v336
    %890 = vmatpush.msra.mxu0 %v334
    %891 = vmatpush.msra.mxu0 %v332
    %892 = vmatmul.f32.gmra.mxu0 %v854
    %v893 = vpop.f32.mrf.mxu0
    %v894 = vadd.f32 0.0, %v893
    %895 = vdwg.mxu0
    %v896 = vadd.f32 %v357, %v874
    %v897 = vadd.f32 %v358, %v894
    %v898 = vtanh.pop %v896
    %v899 = vtanh.pop %v897
    %v900 = vxor.u32 %v896, 2147483648
    %v901 = vxor.u32 %v897, 2147483648
    %v902 = vmul.f32 %v900, 1.442695
    %v903 = vpow.pop %v902
    %v904 = vmul.f32 %v901, 1.442695
    %v905 = vpow.pop %v904
    %v906 = vadd.f32 %v903, 1.0
    %v907 = vadd.f32 %v905, 1.0
    %v908 = vrcp.pop %v906
    %v909 = vmul.f32 %v906, %v908
    %v910 = vsub.f32 1.0, %v909
    %v911 = vmul.f32 %v908, %v910
    %v912 = vadd.f32 %v908, %v911
    %vm913 = vweird.f32 %v906
    %vm914 = vweird.f32 %v908
    %vm915 = vmor %vm913, %vm914
    %v916 = vsel %vm915, %v908, %v912
    %v917 = vand.u32 2147483647, %v906
    %vm918 = vcmp.eq.f32.partialorder %v917, 8.507059e+37
    %v919 = vand.u32 %v906, 2147483648
    %v920 = vor.u32 1.1754944e-38, %v919
    %v921 = vsel %vm918, %v920, %v916
    %v922 = vmul.f32 1.0, %v921
    %v923 = vrcp.pop %v907
    %v924 = vmul.f32 %v907, %v923
    %v925 = vsub.f32 1.0, %v924
    %v926 = vmul.f32 %v923, %v925
    %v927 = vadd.f32 %v923, %v926
    %vm928 = vweird.f32 %v907
    %vm929 = vweird.f32 %v923
    %vm930 = vmor %vm928, %vm929
    %v931 = vsel %vm930, %v923, %v927
    %v932 = vand.u32 2147483647, %v907
    %vm933 = vcmp.eq.f32.partialorder %v932, 8.507059e+37
    %v934 = vand.u32 %v907, 2147483648
    %v935 = vor.u32 1.1754944e-38, %v934
    %v936 = vsel %vm933, %v935, %v931
    %v937 = vmul.f32 1.0, %v936
    %v938 = vsel %vm329, %v898, %v922
    %v939 = vsel %vm330, %v899, %v937
    %v940 = vmul.f32 %v938, %v848
    %v941 = vmul.f32 %v938, %v939
    %943 = vrot.lane.b32.xlu0 %v941, 64
    %v944 = vpop.permute.xlu0 %943
    %v946 = vadd.f32 %v940, %v944
    %v947 = vtanh.pop %v946
    %v948 = vmul.f32 %v939, %v947
    %950 = vrot.lane.b32.xlu0 %v948, 64
    %v951 = vpop.permute.xlu0 %950
    %v952 = vsel %vm191, %v951, 0
    %954 = vmatpush.msra.mxu0 0.0
    %955 = vmatpush.msra.mxu0 0.0
    %956 = vmatpush.msra.mxu0 0.0
    %957 = vmatpush.msra.mxu0 0.0
    %958 = vmatpush.msra.mxu0 0.0
    %959 = vmatpush.msra.mxu0 0.0
    %960 = vmatpush.msra.mxu0 0.0
    %961 = vmatpush.msra.mxu0 0.0
    %962 = vmatpush.msra.mxu0 %v345
    %963 = vmatpush.msra.mxu0 %v343
    %964 = vmatpush.msra.mxu0 %v341
    %965 = vmatpush.msra.mxu0 %v339
    %966 = vmatpush.msra.mxu0 %v337
    %967 = vmatpush.msra.mxu0 %v335
    %968 = vmatpush.msra.mxu0 %v333
    %969 = vmatpush.msra.mxu0 %v331
    %970 = vmatmul.f32.gmra.mxu0 %v952
    %v971 = vpop.f32.mrf.mxu0
    %v972 = vadd.f32 0.0, %v971
    %973 = vdwg.mxu0
    %974 = vmatpush.msra.mxu0 0.0
    %975 = vmatpush.msra.mxu0 0.0
    %976 = vmatpush.msra.mxu0 0.0
    %977 = vmatpush.msra.mxu0 0.0
    %978 = vmatpush.msra.mxu0 0.0
    %979 = vmatpush.msra.mxu0 0.0
    %980 = vmatpush.msra.mxu0 0.0
    %981 = vmatpush.msra.mxu0 0.0
    %982 = vmatpush.msra.mxu0 %v346
    %983 = vmatpush.msra.mxu0 %v344
    %984 = vmatpush.msra.mxu0 %v342
    %985 = vmatpush.msra.mxu0 %v340
    %986 = vmatpush.msra.mxu0 %v338
    %987 = vmatpush.msra.mxu0 %v336
    %988 = vmatpush.msra.mxu0 %v334
    %989 = vmatpush.msra.mxu0 %v332
    %990 = vmatmul.f32.gmra.mxu0 %v952
    %v991 = vpop.f32.mrf.mxu0
    %v992 = vadd.f32 0.0, %v991
    %993 = vdwg.mxu0
    %v994 = vadd.f32 %v359, %v972
    %v995 = vadd.f32 %v360, %v992
    %v996 = vtanh.pop %v994
    %v997 = vtanh.pop %v995
    %v998 = vxor.u32 %v994, 2147483648
    %v999 = vxor.u32 %v995, 2147483648
    %v1000 = vmul.f32 %v998, 1.442695
    %v1001 = vpow.pop %v1000
    %v1002 = vmul.f32 %v999, 1.442695
    %v1003 = vpow.pop %v1002
    %v1004 = vadd.f32 %v1001, 1.0
    %v1005 = vadd.f32 %v1003, 1.0
    %v1006 = vrcp.pop %v1004
    %v1007 = vmul.f32 %v1004, %v1006
    %v1008 = vsub.f32 1.0, %v1007
    %v1009 = vmul.f32 %v1006, %v1008
    %v1010 = vadd.f32 %v1006, %v1009
    %vm1011 = vweird.f32 %v1004
    %vm1012 = vweird.f32 %v1006
    %vm1013 = vmor %vm1011, %vm1012
    %v1014 = vsel %vm1013, %v1006, %v1010
    %v1015 = vand.u32 2147483647, %v1004
    %vm1016 = vcmp.eq.f32.partialorder %v1015, 8.507059e+37
    %v1017 = vand.u32 %v1004, 2147483648
    %v1018 = vor.u32 1.1754944e-38, %v1017
    %v1019 = vsel %vm1016, %v1018, %v1014
    %v1020 = vmul.f32 1.0, %v1019
    %v1021 = vrcp.pop %v1005
    %v1022 = vmul.f32 %v1005, %v1021
    %v1023 = vsub.f32 1.0, %v1022
    %v1024 = vmul.f32 %v1021, %v1023
    %v1025 = vadd.f32 %v1021, %v1024
    %vm1026 = vweird.f32 %v1005
    %vm1027 = vweird.f32 %v1021
    %vm1028 = vmor %vm1026, %vm1027
    %v1029 = vsel %vm1028, %v1021, %v1025
    %v1030 = vand.u32 2147483647, %v1005
    %vm1031 = vcmp.eq.f32.partialorder %v1030, 8.507059e+37
    %v1032 = vand.u32 %v1005, 2147483648
    %v1033 = vor.u32 1.1754944e-38, %v1032
    %v1034 = vsel %vm1031, %v1033, %v1029
    %v1035 = vmul.f32 1.0, %v1034
    %v1036 = vsel %vm329, %v996, %v1020
    %v1037 = vsel %vm330, %v997, %v1035
    %v1038 = vmul.f32 %v1036, %v946
    %v1039 = vmul.f32 %v1036, %v1037
    %1041 = vrot.lane.b32.xlu0 %v1039, 64
    %v1042 = vpop.permute.xlu0 %1041
    %v1044 = vadd.f32 %v1038, %v1042
    %v1045 = vtanh.pop %v1044
    %v1046 = vmul.f32 %v1037, %v1045
    %1048 = vrot.lane.b32.xlu0 %v1046, 64
    %v1049 = vpop.permute.xlu0 %1048
    %v1050 = vsel %vm191, %v1049, 0
    %1052 = vmatpush.msra.mxu0 0.0
    %1053 = vmatpush.msra.mxu0 0.0
    %1054 = vmatpush.msra.mxu0 0.0
    %1055 = vmatpush.msra.mxu0 0.0
    %1056 = vmatpush.msra.mxu0 0.0
    %1057 = vmatpush.msra.mxu0 0.0
    %1058 = vmatpush.msra.mxu0 0.0
    %1059 = vmatpush.msra.mxu0 0.0
    %1060 = vmatpush.msra.mxu0 %v345
    %1061 = vmatpush.msra.mxu0 %v343
    %1062 = vmatpush.msra.mxu0 %v341
    %1063 = vmatpush.msra.mxu0 %v339
    %1064 = vmatpush.msra.mxu0 %v337
    %1065 = vmatpush.msra.mxu0 %v335
    %1066 = vmatpush.msra.mxu0 %v333
    %1067 = vmatpush.msra.mxu0 %v331
    %1068 = vmatmul.f32.gmra.mxu0 %v1050
    %v1069 = vpop.f32.mrf.mxu0
    %v1070 = vadd.f32 0.0, %v1069
    %1071 = vdwg.mxu0
    %1072 = vmatpush.msra.mxu0 0.0
    %1073 = vmatpush.msra.mxu0 0.0
    %1074 = vmatpush.msra.mxu0 0.0
    %1075 = vmatpush.msra.mxu0 0.0
    %1076 = vmatpush.msra.mxu0 0.0
    %1077 = vmatpush.msra.mxu0 0.0
    %1078 = vmatpush.msra.mxu0 0.0
    %1079 = vmatpush.msra.mxu0 0.0
    %1080 = vmatpush.msra.mxu0 %v346
    %1081 = vmatpush.msra.mxu0 %v344
    %1082 = vmatpush.msra.mxu0 %v342
    %1083 = vmatpush.msra.mxu0 %v340
    %1084 = vmatpush.msra.mxu0 %v338
    %1085 = vmatpush.msra.mxu0 %v336
    %1086 = vmatpush.msra.mxu0 %v334
    %1087 = vmatpush.msra.mxu0 %v332
    %1088 = vmatmul.f32.gmra.mxu0 %v1050
    %v1089 = vpop.f32.mrf.mxu0
    %v1090 = vadd.f32 0.0, %v1089
    %1091 = vdwg.mxu0
    %v1092 = vadd.f32 %v361, %v1070
    %v1093 = vadd.f32 %v362, %v1090
    %v1094 = vtanh.pop %v1092
    %v1095 = vtanh.pop %v1093
    %v1096 = vxor.u32 %v1092, 2147483648
    %v1097 = vxor.u32 %v1093, 2147483648
    %v1098 = vmul.f32 %v1096, 1.442695
    %v1099 = vpow.pop %v1098
    %v1100 = vmul.f32 %v1097, 1.442695
    %v1101 = vpow.pop %v1100
    %v1102 = vadd.f32 %v1099, 1.0
    %v1103 = vadd.f32 %v1101, 1.0
    %v1104 = vrcp.pop %v1102
    %v1105 = vmul.f32 %v1102, %v1104
    %v1106 = vsub.f32 1.0, %v1105
    %v1107 = vmul.f32 %v1104, %v1106
    %v1108 = vadd.f32 %v1104, %v1107
    %vm1109 = vweird.f32 %v1102
    %vm1110 = vweird.f32 %v1104
    %vm1111 = vmor %vm1109, %vm1110
    %v1112 = vsel %vm1111, %v1104, %v1108
    %v1113 = vand.u32 2147483647, %v1102
    %vm1114 = vcmp.eq.f32.partialorder %v1113, 8.507059e+37
    %v1115 = vand.u32 %v1102, 2147483648
    %v1116 = vor.u32 1.1754944e-38, %v1115
    %v1117 = vsel %vm1114, %v1116, %v1112
    %v1118 = vmul.f32 1.0, %v1117
    %v1119 = vrcp.pop %v1103
    %v1120 = vmul.f32 %v1103, %v1119
    %v1121 = vsub.f32 1.0, %v1120
    %v1122 = vmul.f32 %v1119, %v1121
    %v1123 = vadd.f32 %v1119, %v1122
    %vm1124 = vweird.f32 %v1103
    %vm1125 = vweird.f32 %v1119
    %vm1126 = vmor %vm1124, %vm1125
    %v1127 = vsel %vm1126, %v1119, %v1123
    %v1128 = vand.u32 2147483647, %v1103
    %vm1129 = vcmp.eq.f32.partialorder %v1128, 8.507059e+37
    %v1130 = vand.u32 %v1103, 2147483648
    %v1131 = vor.u32 1.1754944e-38, %v1130
    %v1132 = vsel %vm1129, %v1131, %v1127
    %v1133 = vmul.f32 1.0, %v1132
    %v1134 = vsel %vm329, %v1094, %v1118
    %v1135 = vsel %vm330, %v1095, %v1133
    %v1136 = vmul.f32 %v1134, %v1044
    %v1137 = vmul.f32 %v1134, %v1135
    %1139 = vrot.lane.b32.xlu0 %v1137, 64
    %v1140 = vpop.permute.xlu0 %1139
    %v1142 = vadd.f32 %v1136, %v1140
    %v1143 = vtanh.pop %v1142
    %v1144 = vmul.f32 %v1135, %v1143
    %1147 = vrot.lane.b32.xlu0 %v1144, 64
    %v1148 = vpop.permute.xlu0 %1147
    %vm1150 = vcmask 261120
    %v1151 = vsel %vm1150, %v461, %v1148
    %v1154 = vsel %vm1150, %v559, %v1049
    %v1157 = vsel %vm1150, %v657, %v951
    %v1160 = vsel %vm1150, %v755, %v853
    %v1161 = vsel %vm1150, %v853, %v755
    %v1162 = vsel %vm1150, %v951, %v657
    %v1163 = vsel %vm1150, %v1049, %v559
    %v1164 = vsel %vm1150, %v1148, %v461
    %v1165 = vld [vmem:[#allocation5] sm:$0xff]
    %v1166 = vld [vmem:[#allocation5 + $0x8] sm:$0xff]
    %v1167 = vld [vmem:[#allocation5 + $0x10] sm:$0xff]
    %v1168 = vld [vmem:[#allocation5 + $0x18] sm:$0xff]
    %v1169 = vld [vmem:[#allocation5 + $0x20] sm:$0xff]
    %v1170 = vld [vmem:[#allocation5 + $0x28] sm:$0xff]
    %v1171 = vld [vmem:[#allocation5 + $0x30] sm:$0xff]
    %v1172 = vld [vmem:[#allocation5 + $0x38] sm:$0xff]
    %v1173 = vld [vmem:[#allocation5 + $0x40] sm:$0xff]
    %v1174 = vld [vmem:[#allocation5 + $0x48] sm:$0xff]
    %v1175 = vld [vmem:[#allocation5 + $0x50] sm:$0xff]
    %v1176 = vld [vmem:[#allocation5 + $0x58] sm:$0xff]
    %v1177 = vld [vmem:[#allocation5 + $0x60] sm:$0xff]
    %v1178 = vld [vmem:[#allocation5 + $0x68] sm:$0xff]
    %v1179 = vld [vmem:[#allocation5 + $0x70] sm:$0xff]
    %v1180 = vld [vmem:[#allocation5 + $0x78] sm:$0xff]
    %v1181 = vld [vmem:[%s6] sm:$0x3]
    %v1183 = vperm.slane %v1181, 0
    %v1184 = vperm.slane %v1181, 1
    %v1188 = vsel %vm191, %v1151, 0
    %v1191 = vsel %vm191, %v1154, 0
    %v1194 = vsel %vm191, %v1157, 0
    %v1197 = vsel %vm191, %v1160, 0
    %v1200 = vsel %vm191, %v1161, 0
    %v1203 = vsel %vm191, %v1162, 0
    %v1206 = vsel %vm191, %v1163, 0
    %v1209 = vsel %vm191, %v1164, 0
    %1211 = vmatpush.msra.mxu0 0.0
    %1212 = vmatpush.msra.mxu0 0.0
    %1213 = vmatpush.msra.mxu0 0.0
    %1214 = vmatpush.msra.mxu0 0.0
    %1215 = vmatpush.msra.mxu0 0.0
    %1216 = vmatpush.msra.mxu0 0.0
    %1217 = vmatpush.msra.mxu0 0.0
    %1218 = vmatpush.msra.mxu0 0.0
    %1219 = vmatpush.msra.mxu0 %v1179
    %1220 = vmatpush.msra.mxu0 %v1177
    %1221 = vmatpush.msra.mxu0 %v1175
    %1222 = vmatpush.msra.mxu0 %v1173
    %1223 = vmatpush.msra.mxu0 %v1171
    %1224 = vmatpush.msra.mxu0 %v1169
    %1225 = vmatpush.msra.mxu0 %v1167
    %1226 = vmatpush.msra.mxu0 %v1165
    %1227 = vmatmul.f32.gmra.mxu0 %v1188
    %v1228 = vpop.f32.mrf.mxu0
    %v1229 = vadd.f32 %v1183, %v1228
    %1230 = vmatmul.f32.gmra.mxu0 %v1191
    %v1231 = vpop.f32.mrf.mxu0
    %v1232 = vadd.f32 %v1183, %v1231
    %1233 = vmatmul.f32.gmra.mxu0 %v1194
    %v1234 = vpop.f32.mrf.mxu0
    %v1235 = vadd.f32 %v1183, %v1234
    %1236 = vmatmul.f32.gmra.mxu0 %v1197
    %v1237 = vpop.f32.mrf.mxu0
    %v1238 = vadd.f32 %v1183, %v1237
    %1239 = vmatmul.f32.gmra.mxu0 %v1200
    %v1240 = vpop.f32.mrf.mxu0
    %v1241 = vadd.f32 %v1183, %v1240
    %1242 = vmatmul.f32.gmra.mxu0 %v1203
    %v1243 = vpop.f32.mrf.mxu0
    %v1244 = vadd.f32 %v1183, %v1243
    %1245 = vmatmul.f32.gmra.mxu0 %v1206
    %v1246 = vpop.f32.mrf.mxu0
    %v1247 = vadd.f32 %v1183, %v1246
    %1248 = vmatmul.f32.gmra.mxu0 %v1209
    %v1249 = vpop.f32.mrf.mxu0
    %v1250 = vadd.f32 %v1183, %v1249
    %1251 = vdwg.mxu0
    %1252 = vmatpush.msra.mxu0 0.0
    %1253 = vmatpush.msra.mxu0 0.0
    %1254 = vmatpush.msra.mxu0 0.0
    %1255 = vmatpush.msra.mxu0 0.0
    %1256 = vmatpush.msra.mxu0 0.0
    %1257 = vmatpush.msra.mxu0 0.0
    %1258 = vmatpush.msra.mxu0 0.0
    %1259 = vmatpush.msra.mxu0 0.0
    %1260 = vmatpush.msra.mxu0 %v1180
    %1261 = vmatpush.msra.mxu0 %v1178
    %1262 = vmatpush.msra.mxu0 %v1176
    %1263 = vmatpush.msra.mxu0 %v1174
    %1264 = vmatpush.msra.mxu0 %v1172
    %1265 = vmatpush.msra.mxu0 %v1170
    %1266 = vmatpush.msra.mxu0 %v1168
    %1267 = vmatpush.msra.mxu0 %v1166
    %1268 = vmatmul.f32.gmra.mxu0 %v1188
    %v1269 = vpop.f32.mrf.mxu0
    %v1270 = vadd.f32 %v1184, %v1269
    %1271 = vmatmul.f32.gmra.mxu0 %v1191
    %v1272 = vpop.f32.mrf.mxu0
    %v1273 = vadd.f32 %v1184, %v1272
    %1274 = vmatmul.f32.gmra.mxu0 %v1194
    %v1275 = vpop.f32.mrf.mxu0
    %v1276 = vadd.f32 %v1184, %v1275
    %1277 = vmatmul.f32.gmra.mxu0 %v1197
    %v1278 = vpop.f32.mrf.mxu0
    %v1279 = vadd.f32 %v1184, %v1278
    %1280 = vmatmul.f32.gmra.mxu0 %v1200
    %v1281 = vpop.f32.mrf.mxu0
    %v1282 = vadd.f32 %v1184, %v1281
    %1283 = vmatmul.f32.gmra.mxu0 %v1203
    %v1284 = vpop.f32.mrf.mxu0
    %v1285 = vadd.f32 %v1184, %v1284
    %1286 = vmatmul.f32.gmra.mxu0 %v1206
    %v1287 = vpop.f32.mrf.mxu0
    %v1288 = vadd.f32 %v1184, %v1287
    %1289 = vmatmul.f32.gmra.mxu0 %v1209
    %v1290 = vpop.f32.mrf.mxu0
    %v1291 = vadd.f32 %v1184, %v1290
    %1292 = vdwg.mxu0
    %v1293 = vld [vmem:[#allocation7] sm:$0xff]
    %v1294 = vld [vmem:[#allocation7 + $0x8] sm:$0xff]
    %v1295 = vld [vmem:[#allocation7 + $0x10] sm:$0xff]
    %v1296 = vld [vmem:[#allocation7 + $0x18] sm:$0xff]
    %v1297 = vld [vmem:[#allocation7 + $0x20] sm:$0xff]
    %v1298 = vld [vmem:[#allocation7 + $0x28] sm:$0xff]
    %v1299 = vld [vmem:[#allocation7 + $0x30] sm:$0xff]
    %v1300 = vld [vmem:[#allocation7 + $0x38] sm:$0xff]
    %v1301 = vld [vmem:[#allocation7 + $0x40] sm:$0xff]
    %v1302 = vld [vmem:[#allocation7 + $0x48] sm:$0xff]
    %v1303 = vld [vmem:[#allocation7 + $0x50] sm:$0xff]
    %v1304 = vld [vmem:[#allocation7 + $0x58] sm:$0xff]
    %v1305 = vld [vmem:[#allocation7 + $0x60] sm:$0xff]
    %v1306 = vld [vmem:[#allocation7 + $0x68] sm:$0xff]
    %v1307 = vld [vmem:[#allocation7 + $0x70] sm:$0xff]
    %v1308 = vld [vmem:[#allocation7 + $0x78] sm:$0xff]
    %v1309 = vsel %vm323, %v1229, %v1250
    %v1310 = vsel %vm324, %v1270, %v1291
    %v1311 = vsel %vm323, %v1232, %v1247
    %v1312 = vsel %vm324, %v1273, %v1288
    %v1313 = vsel %vm323, %v1235, %v1244
    %v1314 = vsel %vm324, %v1276, %v1285
    %v1315 = vsel %vm323, %v1238, %v1241
    %v1316 = vsel %vm324, %v1279, %v1282
    %v1317 = vsel %vm323, %v1241, %v1238
    %v1318 = vsel %vm324, %v1282, %v1279
    %v1319 = vsel %vm323, %v1244, %v1235
    %v1320 = vsel %vm324, %v1285, %v1276
    %v1321 = vsel %vm323, %v1247, %v1232
    %v1322 = vsel %vm324, %v1288, %v1273
    %v1323 = vsel %vm323, %v1250, %v1229
    %v1324 = vsel %vm324, %v1291, %v1270
    %1325 = vmatpush.msra.mxu0 0.0
    %1326 = vmatpush.msra.mxu0 0.0
    %1327 = vmatpush.msra.mxu0 0.0
    %1328 = vmatpush.msra.mxu0 0.0
    %1329 = vmatpush.msra.mxu0 0.0
    %1330 = vmatpush.msra.mxu0 0.0
    %1331 = vmatpush.msra.mxu0 0.0
    %1332 = vmatpush.msra.mxu0 0.0
    %1333 = vmatpush.msra.mxu0 %v1307
    %1334 = vmatpush.msra.mxu0 %v1305
    %1335 = vmatpush.msra.mxu0 %v1303
    %1336 = vmatpush.msra.mxu0 %v1301
    %1337 = vmatpush.msra.mxu0 %v1299
    %1338 = vmatpush.msra.mxu0 %v1297
    %1339 = vmatpush.msra.mxu0 %v1295
    %1340 = vmatpush.msra.mxu0 %v1293
    %1341 = vmatmul.f32.gmra.mxu0 %v364
    %v1342 = vpop.f32.mrf.mxu0
    %v1343 = vadd.f32 0.0, %v1342
    %1344 = vdwg.mxu0
    %1345 = vmatpush.msra.mxu0 0.0
    %1346 = vmatpush.msra.mxu0 0.0
    %1347 = vmatpush.msra.mxu0 0.0
    %1348 = vmatpush.msra.mxu0 0.0
    %1349 = vmatpush.msra.mxu0 0.0
    %1350 = vmatpush.msra.mxu0 0.0
    %1351 = vmatpush.msra.mxu0 0.0
    %1352 = vmatpush.msra.mxu0 0.0
    %1353 = vmatpush.msra.mxu0 %v1308
    %1354 = vmatpush.msra.mxu0 %v1306
    %1355 = vmatpush.msra.mxu0 %v1304
    %1356 = vmatpush.msra.mxu0 %v1302
    %1357 = vmatpush.msra.mxu0 %v1300
    %1358 = vmatpush.msra.mxu0 %v1298
    %1359 = vmatpush.msra.mxu0 %v1296
    %1360 = vmatpush.msra.mxu0 %v1294
    %1361 = vmatmul.f32.gmra.mxu0 %v364
    %v1362 = vpop.f32.mrf.mxu0
    %v1363 = vadd.f32 0.0, %v1362
    %1364 = vdwg.mxu0
    %v1365 = vadd.f32 %v1309, %v1343
    %v1366 = vadd.f32 %v1310, %v1363
    %v1367 = vtanh.pop %v1365
    %v1368 = vtanh.pop %v1366
    %v1369 = vxor.u32 %v1365, 2147483648
    %v1370 = vxor.u32 %v1366, 2147483648
    %v1371 = vmul.f32 %v1369, 1.442695
    %v1372 = vpow.pop %v1371
    %v1373 = vmul.f32 %v1370, 1.442695
    %v1374 = vpow.pop %v1373
    %v1375 = vadd.f32 %v1372, 1.0
    %v1376 = vadd.f32 %v1374, 1.0
    %v1377 = vrcp.pop %v1375
    %v1378 = vmul.f32 %v1375, %v1377
    %v1379 = vsub.f32 1.0, %v1378
    %v1380 = vmul.f32 %v1377, %v1379
    %v1381 = vadd.f32 %v1377, %v1380
    %vm1382 = vweird.f32 %v1375
    %vm1383 = vweird.f32 %v1377
    %vm1384 = vmor %vm1382, %vm1383
    %v1385 = vsel %vm1384, %v1377, %v1381
    %v1386 = vand.u32 2147483647, %v1375
    %vm1387 = vcmp.eq.f32.partialorder %v1386, 8.507059e+37
    %v1388 = vand.u32 %v1375, 2147483648
    %v1389 = vor.u32 1.1754944e-38, %v1388
    %v1390 = vsel %vm1387, %v1389, %v1385
    %v1391 = vmul.f32 1.0, %v1390
    %v1392 = vrcp.pop %v1376
    %v1393 = vmul.f32 %v1376, %v1392
    %v1394 = vsub.f32 1.0, %v1393
    %v1395 = vmul.f32 %v1392, %v1394
    %v1396 = vadd.f32 %v1392, %v1395
    %vm1397 = vweird.f32 %v1376
    %vm1398 = vweird.f32 %v1392
    %vm1399 = vmor %vm1397, %vm1398
    %v1400 = vsel %vm1399, %v1392, %v1396
    %v1401 = vand.u32 2147483647, %v1376
    %vm1402 = vcmp.eq.f32.partialorder %v1401, 8.507059e+37
    %v1403 = vand.u32 %v1376, 2147483648
    %v1404 = vor.u32 1.1754944e-38, %v1403
    %v1405 = vsel %vm1402, %v1404, %v1400
    %v1406 = vmul.f32 1.0, %v1405
    %v1407 = vsel %vm329, %v1367, %v1391
    %v1408 = vsel %vm330, %v1368, %v1406
    %v1409 = vmul.f32 %v1407, 0.0
    %v1410 = vmul.f32 %v1407, %v1408
    %1412 = vrot.lane.b32.xlu0 %v1410, 64
    %v1413 = vpop.permute.xlu0 %1412
    %v1415 = vadd.f32 %v1409, %v1413
    %v1416 = vtanh.pop %v1415
    %v1417 = vmul.f32 %v1408, %v1416
    %1419 = vrot.lane.b32.xlu0 %v1417, 64
    %v1420 = vpop.permute.xlu0 %1419
    %v1421 = vsel %vm191, %v1420, 0
    %1423 = vmatpush.msra.mxu0 0.0
    %1424 = vmatpush.msra.mxu0 0.0
    %1425 = vmatpush.msra.mxu0 0.0
    %1426 = vmatpush.msra.mxu0 0.0
    %1427 = vmatpush.msra.mxu0 0.0
    %1428 = vmatpush.msra.mxu0 0.0
    %1429 = vmatpush.msra.mxu0 0.0
    %1430 = vmatpush.msra.mxu0 0.0
    %1431 = vmatpush.msra.mxu0 %v1307
    %1432 = vmatpush.msra.mxu0 %v1305
    %1433 = vmatpush.msra.mxu0 %v1303
    %1434 = vmatpush.msra.mxu0 %v1301
    %1435 = vmatpush.msra.mxu0 %v1299
    %1436 = vmatpush.msra.mxu0 %v1297
    %1437 = vmatpush.msra.mxu0 %v1295
    %1438 = vmatpush.msra.mxu0 %v1293
    %1439 = vmatmul.f32.gmra.mxu0 %v1421
    %v1440 = vpop.f32.mrf.mxu0
    %v1441 = vadd.f32 0.0, %v1440
    %1442 = vdwg.mxu0
    %1443 = vmatpush.msra.mxu0 0.0
    %1444 = vmatpush.msra.mxu0 0.0
    %1445 = vmatpush.msra.mxu0 0.0
    %1446 = vmatpush.msra.mxu0 0.0
    %1447 = vmatpush.msra.mxu0 0.0
    %1448 = vmatpush.msra.mxu0 0.0
    %1449 = vmatpush.msra.mxu0 0.0
    %1450 = vmatpush.msra.mxu0 0.0
    %1451 = vmatpush.msra.mxu0 %v1308
    %1452 = vmatpush.msra.mxu0 %v1306
    %1453 = vmatpush.msra.mxu0 %v1304
    %1454 = vmatpush.msra.mxu0 %v1302
    %1455 = vmatpush.msra.mxu0 %v1300
    %1456 = vmatpush.msra.mxu0 %v1298
    %1457 = vmatpush.msra.mxu0 %v1296
    %1458 = vmatpush.msra.mxu0 %v1294
    %1459 = vmatmul.f32.gmra.mxu0 %v1421
    %v1460 = vpop.f32.mrf.mxu0
    %v1461 = vadd.f32 0.0, %v1460
    %1462 = vdwg.mxu0
    %v1463 = vadd.f32 %v1311, %v1441
    %v1464 = vadd.f32 %v1312, %v1461
    %v1465 = vtanh.pop %v1463
    %v1466 = vtanh.pop %v1464
    %v1467 = vxor.u32 %v1463, 2147483648
    %v1468 = vxor.u32 %v1464, 2147483648
    %v1469 = vmul.f32 %v1467, 1.442695
    %v1470 = vpow.pop %v1469
    %v1471 = vmul.f32 %v1468, 1.442695
    %v1472 = vpow.pop %v1471
    %v1473 = vadd.f32 %v1470, 1.0
    %v1474 = vadd.f32 %v1472, 1.0
    %v1475 = vrcp.pop %v1473
    %v1476 = vmul.f32 %v1473, %v1475
    %v1477 = vsub.f32 1.0, %v1476
    %v1478 = vmul.f32 %v1475, %v1477
    %v1479 = vadd.f32 %v1475, %v1478
    %vm1480 = vweird.f32 %v1473
    %vm1481 = vweird.f32 %v1475
    %vm1482 = vmor %vm1480, %vm1481
    %v1483 = vsel %vm1482, %v1475, %v1479
    %v1484 = vand.u32 2147483647, %v1473
    %vm1485 = vcmp.eq.f32.partialorder %v1484, 8.507059e+37
    %v1486 = vand.u32 %v1473, 2147483648
    %v1487 = vor.u32 1.1754944e-38, %v1486
    %v1488 = vsel %vm1485, %v1487, %v1483
    %v1489 = vmul.f32 1.0, %v1488
    %v1490 = vrcp.pop %v1474
    %v1491 = vmul.f32 %v1474, %v1490
    %v1492 = vsub.f32 1.0, %v1491
    %v1493 = vmul.f32 %v1490, %v1492
    %v1494 = vadd.f32 %v1490, %v1493
    %vm1495 = vweird.f32 %v1474
    %vm1496 = vweird.f32 %v1490
    %vm1497 = vmor %vm1495, %vm1496
    %v1498 = vsel %vm1497, %v1490, %v1494
    %v1499 = vand.u32 2147483647, %v1474
    %vm1500 = vcmp.eq.f32.partialorder %v1499, 8.507059e+37
    %v1501 = vand.u32 %v1474, 2147483648
    %v1502 = vor.u32 1.1754944e-38, %v1501
    %v1503 = vsel %vm1500, %v1502, %v1498
    %v1504 = vmul.f32 1.0, %v1503
    %v1505 = vsel %vm329, %v1465, %v1489
    %v1506 = vsel %vm330, %v1466, %v1504
    %v1507 = vmul.f32 %v1505, %v1415
    %v1508 = vmul.f32 %v1505, %v1506
    %1510 = vrot.lane.b32.xlu0 %v1508, 64
    %v1511 = vpop.permute.xlu0 %1510
    %v1513 = vadd.f32 %v1507, %v1511
    %v1514 = vtanh.pop %v1513
    %v1515 = vmul.f32 %v1506, %v1514
    %1517 = vrot.lane.b32.xlu0 %v1515, 64
    %v1518 = vpop.permute.xlu0 %1517
    %v1519 = vsel %vm191, %v1518, 0
    %1521 = vmatpush.msra.mxu0 0.0
    %1522 = vmatpush.msra.mxu0 0.0
    %1523 = vmatpush.msra.mxu0 0.0
    %1524 = vmatpush.msra.mxu0 0.0
    %1525 = vmatpush.msra.mxu0 0.0
    %1526 = vmatpush.msra.mxu0 0.0
    %1527 = vmatpush.msra.mxu0 0.0
    %1528 = vmatpush.msra.mxu0 0.0
    %1529 = vmatpush.msra.mxu0 %v1307
    %1530 = vmatpush.msra.mxu0 %v1305
    %1531 = vmatpush.msra.mxu0 %v1303
    %1532 = vmatpush.msra.mxu0 %v1301
    %1533 = vmatpush.msra.mxu0 %v1299
    %1534 = vmatpush.msra.mxu0 %v1297
    %1535 = vmatpush.msra.mxu0 %v1295
    %1536 = vmatpush.msra.mxu0 %v1293
    %1537 = vmatmul.f32.gmra.mxu0 %v1519
    %v1538 = vpop.f32.mrf.mxu0
    %v1539 = vadd.f32 0.0, %v1538
    %1540 = vdwg.mxu0
    %1541 = vmatpush.msra.mxu0 0.0
    %1542 = vmatpush.msra.mxu0 0.0
    %1543 = vmatpush.msra.mxu0 0.0
    %1544 = vmatpush.msra.mxu0 0.0
    %1545 = vmatpush.msra.mxu0 0.0
    %1546 = vmatpush.msra.mxu0 0.0
    %1547 = vmatpush.msra.mxu0 0.0
    %1548 = vmatpush.msra.mxu0 0.0
    %1549 = vmatpush.msra.mxu0 %v1308
    %1550 = vmatpush.msra.mxu0 %v1306
    %1551 = vmatpush.msra.mxu0 %v1304
    %1552 = vmatpush.msra.mxu0 %v1302
    %1553 = vmatpush.msra.mxu0 %v1300
    %1554 = vmatpush.msra.mxu0 %v1298
    %1555 = vmatpush.msra.mxu0 %v1296
    %1556 = vmatpush.msra.mxu0 %v1294
    %1557 = vmatmul.f32.gmra.mxu0 %v1519
    %v1558 = vpop.f32.mrf.mxu0
    %v1559 = vadd.f32 0.0, %v1558
    %1560 = vdwg.mxu0
    %v1561 = vadd.f32 %v1313, %v1539
    %v1562 = vadd.f32 %v1314, %v1559
    %v1563 = vtanh.pop %v1561
    %v1564 = vtanh.pop %v1562
    %v1565 = vxor.u32 %v1561, 2147483648
    %v1566 = vxor.u32 %v1562, 2147483648
    %v1567 = vmul.f32 %v1565, 1.442695
    %v1568 = vpow.pop %v1567
    %v1569 = vmul.f32 %v1566, 1.442695
    %v1570 = vpow.pop %v1569
    %v1571 = vadd.f32 %v1568, 1.0
    %v1572 = vadd.f32 %v1570, 1.0
    %v1573 = vrcp.pop %v1571
    %v1574 = vmul.f32 %v1571, %v1573
    %v1575 = vsub.f32 1.0, %v1574
    %v1576 = vmul.f32 %v1573, %v1575
    %v1577 = vadd.f32 %v1573, %v1576
    %vm1578 = vweird.f32 %v1571
    %vm1579 = vweird.f32 %v1573
    %vm1580 = vmor %vm1578, %vm1579
    %v1581 = vsel %vm1580, %v1573, %v1577
    %v1582 = vand.u32 2147483647, %v1571
    %vm1583 = vcmp.eq.f32.partialorder %v1582, 8.507059e+37
    %v1584 = vand.u32 %v1571, 2147483648
    %v1585 = vor.u32 1.1754944e-38, %v1584
    %v1586 = vsel %vm1583, %v1585, %v1581
    %v1587 = vmul.f32 1.0, %v1586
    %v1588 = vrcp.pop %v1572
    %v1589 = vmul.f32 %v1572, %v1588
    %v1590 = vsub.f32 1.0, %v1589
    %v1591 = vmul.f32 %v1588, %v1590
    %v1592 = vadd.f32 %v1588, %v1591
    %vm1593 = vweird.f32 %v1572
    %vm1594 = vweird.f32 %v1588
    %vm1595 = vmor %vm1593, %vm1594
    %v1596 = vsel %vm1595, %v1588, %v1592
    %v1597 = vand.u32 2147483647, %v1572
    %vm1598 = vcmp.eq.f32.partialorder %v1597, 8.507059e+37
    %v1599 = vand.u32 %v1572, 2147483648
    %v1600 = vor.u32 1.1754944e-38, %v1599
    %v1601 = vsel %vm1598, %v1600, %v1596
    %v1602 = vmul.f32 1.0, %v1601
    %v1603 = vsel %vm329, %v1563, %v1587
    %v1604 = vsel %vm330, %v1564, %v1602
    %v1605 = vmul.f32 %v1603, %v1513
    %v1606 = vmul.f32 %v1603, %v1604
    %1608 = vrot.lane.b32.xlu0 %v1606, 64
    %v1609 = vpop.permute.xlu0 %1608
    %v1611 = vadd.f32 %v1605, %v1609
    %v1612 = vtanh.pop %v1611
    %v1613 = vmul.f32 %v1604, %v1612
    %1615 = vrot.lane.b32.xlu0 %v1613, 64
    %v1616 = vpop.permute.xlu0 %1615
    %v1617 = vsel %vm191, %v1616, 0
    %1619 = vmatpush.msra.mxu0 0.0
    %1620 = vmatpush.msra.mxu0 0.0
    %1621 = vmatpush.msra.mxu0 0.0
    %1622 = vmatpush.msra.mxu0 0.0
    %1623 = vmatpush.msra.mxu0 0.0
    %1624 = vmatpush.msra.mxu0 0.0
    %1625 = vmatpush.msra.mxu0 0.0
    %1626 = vmatpush.msra.mxu0 0.0
    %1627 = vmatpush.msra.mxu0 %v1307
    %1628 = vmatpush.msra.mxu0 %v1305
    %1629 = vmatpush.msra.mxu0 %v1303
    %1630 = vmatpush.msra.mxu0 %v1301
    %1631 = vmatpush.msra.mxu0 %v1299
    %1632 = vmatpush.msra.mxu0 %v1297
    %1633 = vmatpush.msra.mxu0 %v1295
    %1634 = vmatpush.msra.mxu0 %v1293
    %1635 = vmatmul.f32.gmra.mxu0 %v1617
    %v1636 = vpop.f32.mrf.mxu0
    %v1637 = vadd.f32 0.0, %v1636
    %1638 = vdwg.mxu0
    %1639 = vmatpush.msra.mxu0 0.0
    %1640 = vmatpush.msra.mxu0 0.0
    %1641 = vmatpush.msra.mxu0 0.0
    %1642 = vmatpush.msra.mxu0 0.0
    %1643 = vmatpush.msra.mxu0 0.0
    %1644 = vmatpush.msra.mxu0 0.0
    %1645 = vmatpush.msra.mxu0 0.0
    %1646 = vmatpush.msra.mxu0 0.0
    %1647 = vmatpush.msra.mxu0 %v1308
    %1648 = vmatpush.msra.mxu0 %v1306
    %1649 = vmatpush.msra.mxu0 %v1304
    %1650 = vmatpush.msra.mxu0 %v1302
    %1651 = vmatpush.msra.mxu0 %v1300
    %1652 = vmatpush.msra.mxu0 %v1298
    %1653 = vmatpush.msra.mxu0 %v1296
    %1654 = vmatpush.msra.mxu0 %v1294
    %1655 = vmatmul.f32.gmra.mxu0 %v1617
    %v1656 = vpop.f32.mrf.mxu0
    %v1657 = vadd.f32 0.0, %v1656
    %1658 = vdwg.mxu0
    %v1659 = vadd.f32 %v1315, %v1637
    %v1660 = vadd.f32 %v1316, %v1657
    %v1661 = vtanh.pop %v1659
    %v1662 = vtanh.pop %v1660
    %v1663 = vxor.u32 %v1659, 2147483648
    %v1664 = vxor.u32 %v1660, 2147483648
    %v1665 = vmul.f32 %v1663, 1.442695
    %v1666 = vpow.pop %v1665
    %v1667 = vmul.f32 %v1664, 1.442695
    %v1668 = vpow.pop %v1667
    %v1669 = vadd.f32 %v1666, 1.0
    %v1670 = vadd.f32 %v1668, 1.0
    %v1671 = vrcp.pop %v1669
    %v1672 = vmul.f32 %v1669, %v1671
    %v1673 = vsub.f32 1.0, %v1672
    %v1674 = vmul.f32 %v1671, %v1673
    %v1675 = vadd.f32 %v1671, %v1674
    %vm1676 = vweird.f32 %v1669
    %vm1677 = vweird.f32 %v1671
    %vm1678 = vmor %vm1676, %vm1677
    %v1679 = vsel %vm1678, %v1671, %v1675
    %v1680 = vand.u32 2147483647, %v1669
    %vm1681 = vcmp.eq.f32.partialorder %v1680, 8.507059e+37
    %v1682 = vand.u32 %v1669, 2147483648
    %v1683 = vor.u32 1.1754944e-38, %v1682
    %v1684 = vsel %vm1681, %v1683, %v1679
    %v1685 = vmul.f32 1.0, %v1684
    %v1686 = vrcp.pop %v1670
    %v1687 = vmul.f32 %v1670, %v1686
    %v1688 = vsub.f32 1.0, %v1687
    %v1689 = vmul.f32 %v1686, %v1688
    %v1690 = vadd.f32 %v1686, %v1689
    %vm1691 = vweird.f32 %v1670
    %vm1692 = vweird.f32 %v1686
    %vm1693 = vmor %vm1691, %vm1692
    %v1694 = vsel %vm1693, %v1686, %v1690
    %v1695 = vand.u32 2147483647, %v1670
    %vm1696 = vcmp.eq.f32.partialorder %v1695, 8.507059e+37
    %v1697 = vand.u32 %v1670, 2147483648
    %v1698 = vor.u32 1.1754944e-38, %v1697
    %v1699 = vsel %vm1696, %v1698, %v1694
    %v1700 = vmul.f32 1.0, %v1699
    %v1701 = vsel %vm329, %v1661, %v1685
    %v1702 = vsel %vm330, %v1662, %v1700
    %v1703 = vmul.f32 %v1701, %v1611
    %v1704 = vmul.f32 %v1701, %v1702
    %1706 = vrot.lane.b32.xlu0 %v1704, 64
    %v1707 = vpop.permute.xlu0 %1706
    %v1709 = vadd.f32 %v1703, %v1707
    %v1710 = vtanh.pop %v1709
    %v1711 = vmul.f32 %v1702, %v1710
    %1713 = vrot.lane.b32.xlu0 %v1711, 64
    %v1714 = vpop.permute.xlu0 %1713
    %v1715 = vsel %vm191, %v1714, 0
    %1717 = vmatpush.msra.mxu0 0.0
    %1718 = vmatpush.msra.mxu0 0.0
    %1719 = vmatpush.msra.mxu0 0.0
    %1720 = vmatpush.msra.mxu0 0.0
    %1721 = vmatpush.msra.mxu0 0.0
    %1722 = vmatpush.msra.mxu0 0.0
    %1723 = vmatpush.msra.mxu0 0.0
    %1724 = vmatpush.msra.mxu0 0.0
    %1725 = vmatpush.msra.mxu0 %v1307
    %1726 = vmatpush.msra.mxu0 %v1305
    %1727 = vmatpush.msra.mxu0 %v1303
    %1728 = vmatpush.msra.mxu0 %v1301
    %1729 = vmatpush.msra.mxu0 %v1299
    %1730 = vmatpush.msra.mxu0 %v1297
    %1731 = vmatpush.msra.mxu0 %v1295
    %1732 = vmatpush.msra.mxu0 %v1293
    %1733 = vmatmul.f32.gmra.mxu0 %v1715
    %v1734 = vpop.f32.mrf.mxu0
    %v1735 = vadd.f32 0.0, %v1734
    %1736 = vdwg.mxu0
    %1737 = vmatpush.msra.mxu0 0.0
    %1738 = vmatpush.msra.mxu0 0.0
    %1739 = vmatpush.msra.mxu0 0.0
    %1740 = vmatpush.msra.mxu0 0.0
    %1741 = vmatpush.msra.mxu0 0.0
    %1742 = vmatpush.msra.mxu0 0.0
    %1743 = vmatpush.msra.mxu0 0.0
    %1744 = vmatpush.msra.mxu0 0.0
    %1745 = vmatpush.msra.mxu0 %v1308
    %1746 = vmatpush.msra.mxu0 %v1306
    %1747 = vmatpush.msra.mxu0 %v1304
    %1748 = vmatpush.msra.mxu0 %v1302
    %1749 = vmatpush.msra.mxu0 %v1300
    %1750 = vmatpush.msra.mxu0 %v1298
    %1751 = vmatpush.msra.mxu0 %v1296
    %1752 = vmatpush.msra.mxu0 %v1294
    %1753 = vmatmul.f32.gmra.mxu0 %v1715
    %v1754 = vpop.f32.mrf.mxu0
    %v1755 = vadd.f32 0.0, %v1754
    %1756 = vdwg.mxu0
    %v1757 = vadd.f32 %v1317, %v1735
    %v1758 = vadd.f32 %v1318, %v1755
    %v1759 = vtanh.pop %v1757
    %v1760 = vtanh.pop %v1758
    %v1761 = vxor.u32 %v1757, 2147483648
    %v1762 = vxor.u32 %v1758, 2147483648
    %v1763 = vmul.f32 %v1761, 1.442695
    %v1764 = vpow.pop %v1763
    %v1765 = vmul.f32 %v1762, 1.442695
    %v1766 = vpow.pop %v1765
    %v1767 = vadd.f32 %v1764, 1.0
    %v1768 = vadd.f32 %v1766, 1.0
    %v1769 = vrcp.pop %v1767
    %v1770 = vmul.f32 %v1767, %v1769
    %v1771 = vsub.f32 1.0, %v1770
    %v1772 = vmul.f32 %v1769, %v1771
    %v1773 = vadd.f32 %v1769, %v1772
    %vm1774 = vweird.f32 %v1767
    %vm1775 = vweird.f32 %v1769
    %vm1776 = vmor %vm1774, %vm1775
    %v1777 = vsel %vm1776, %v1769, %v1773
    %v1778 = vand.u32 2147483647, %v1767
    %vm1779 = vcmp.eq.f32.partialorder %v1778, 8.507059e+37
    %v1780 = vand.u32 %v1767, 2147483648
    %v1781 = vor.u32 1.1754944e-38, %v1780
    %v1782 = vsel %vm1779, %v1781, %v1777
    %v1783 = vmul.f32 1.0, %v1782
    %v1784 = vrcp.pop %v1768
    %v1785 = vmul.f32 %v1768, %v1784
    %v1786 = vsub.f32 1.0, %v1785
    %v1787 = vmul.f32 %v1784, %v1786
    %v1788 = vadd.f32 %v1784, %v1787
    %vm1789 = vweird.f32 %v1768
    %vm1790 = vweird.f32 %v1784
    %vm1791 = vmor %vm1789, %vm1790
    %v1792 = vsel %vm1791, %v1784, %v1788
    %v1793 = vand.u32 2147483647, %v1768
    %vm1794 = vcmp.eq.f32.partialorder %v1793, 8.507059e+37
    %v1795 = vand.u32 %v1768, 2147483648
    %v1796 = vor.u32 1.1754944e-38, %v1795
    %v1797 = vsel %vm1794, %v1796, %v1792
    %v1798 = vmul.f32 1.0, %v1797
    %v1799 = vsel %vm329, %v1759, %v1783
    %v1800 = vsel %vm330, %v1760, %v1798
    %v1801 = vmul.f32 %v1799, %v1709
    %v1802 = vmul.f32 %v1799, %v1800
    %1804 = vrot.lane.b32.xlu0 %v1802, 64
    %v1805 = vpop.permute.xlu0 %1804
    %v1807 = vadd.f32 %v1801, %v1805
    %v1808 = vtanh.pop %v1807
    %v1809 = vmul.f32 %v1800, %v1808
    %1811 = vrot.lane.b32.xlu0 %v1809, 64
    %v1812 = vpop.permute.xlu0 %1811
    %v1813 = vsel %vm191, %v1812, 0
    %1815 = vmatpush.msra.mxu0 0.0
    %1816 = vmatpush.msra.mxu0 0.0
    %1817 = vmatpush.msra.mxu0 0.0
    %1818 = vmatpush.msra.mxu0 0.0
    %1819 = vmatpush.msra.mxu0 0.0
    %1820 = vmatpush.msra.mxu0 0.0
    %1821 = vmatpush.msra.mxu0 0.0
    %1822 = vmatpush.msra.mxu0 0.0
    %1823 = vmatpush.msra.mxu0 %v1307
    %1824 = vmatpush.msra.mxu0 %v1305
    %1825 = vmatpush.msra.mxu0 %v1303
    %1826 = vmatpush.msra.mxu0 %v1301
    %1827 = vmatpush.msra.mxu0 %v1299
    %1828 = vmatpush.msra.mxu0 %v1297
    %1829 = vmatpush.msra.mxu0 %v1295
    %1830 = vmatpush.msra.mxu0 %v1293
    %1831 = vmatmul.f32.gmra.mxu0 %v1813
    %v1832 = vpop.f32.mrf.mxu0
    %v1833 = vadd.f32 0.0, %v1832
    %1834 = vdwg.mxu0
    %1835 = vmatpush.msra.mxu0 0.0
    %1836 = vmatpush.msra.mxu0 0.0
    %1837 = vmatpush.msra.mxu0 0.0
    %1838 = vmatpush.msra.mxu0 0.0
    %1839 = vmatpush.msra.mxu0 0.0
    %1840 = vmatpush.msra.mxu0 0.0
    %1841 = vmatpush.msra.mxu0 0.0
    %1842 = vmatpush.msra.mxu0 0.0
    %1843 = vmatpush.msra.mxu0 %v1308
    %1844 = vmatpush.msra.mxu0 %v1306
    %1845 = vmatpush.msra.mxu0 %v1304
    %1846 = vmatpush.msra.mxu0 %v1302
    %1847 = vmatpush.msra.mxu0 %v1300
    %1848 = vmatpush.msra.mxu0 %v1298
    %1849 = vmatpush.msra.mxu0 %v1296
    %1850 = vmatpush.msra.mxu0 %v1294
    %1851 = vmatmul.f32.gmra.mxu0 %v1813
    %v1852 = vpop.f32.mrf.mxu0
    %v1853 = vadd.f32 0.0, %v1852
    %1854 = vdwg.mxu0
    %v1855 = vadd.f32 %v1319, %v1833
    %v1856 = vadd.f32 %v1320, %v1853
    %v1857 = vtanh.pop %v1855
    %v1858 = vtanh.pop %v1856
    %v1859 = vxor.u32 %v1855, 2147483648
    %v1860 = vxor.u32 %v1856, 2147483648
    %v1861 = vmul.f32 %v1859, 1.442695
    %v1862 = vpow.pop %v1861
    %v1863 = vmul.f32 %v1860, 1.442695
    %v1864 = vpow.pop %v1863
    %v1865 = vadd.f32 %v1862, 1.0
    %v1866 = vadd.f32 %v1864, 1.0
    %v1867 = vrcp.pop %v1865
    %v1868 = vmul.f32 %v1865, %v1867
    %v1869 = vsub.f32 1.0, %v1868
    %v1870 = vmul.f32 %v1867, %v1869
    %v1871 = vadd.f32 %v1867, %v1870
    %vm1872 = vweird.f32 %v1865
    %vm1873 = vweird.f32 %v1867
    %vm1874 = vmor %vm1872, %vm1873
    %v1875 = vsel %vm1874, %v1867, %v1871
    %v1876 = vand.u32 2147483647, %v1865
    %vm1877 = vcmp.eq.f32.partialorder %v1876, 8.507059e+37
    %v1878 = vand.u32 %v1865, 2147483648
    %v1879 = vor.u32 1.1754944e-38, %v1878
    %v1880 = vsel %vm1877, %v1879, %v1875
    %v1881 = vmul.f32 1.0, %v1880
    %v1882 = vrcp.pop %v1866
    %v1883 = vmul.f32 %v1866, %v1882
    %v1884 = vsub.f32 1.0, %v1883
    %v1885 = vmul.f32 %v1882, %v1884
    %v1886 = vadd.f32 %v1882, %v1885
    %vm1887 = vweird.f32 %v1866
    %vm1888 = vweird.f32 %v1882
    %vm1889 = vmor %vm1887, %vm1888
    %v1890 = vsel %vm1889, %v1882, %v1886
    %v1891 = vand.u32 2147483647, %v1866
    %vm1892 = vcmp.eq.f32.partialorder %v1891, 8.507059e+37
    %v1893 = vand.u32 %v1866, 2147483648
    %v1894 = vor.u32 1.1754944e-38, %v1893
    %v1895 = vsel %vm1892, %v1894, %v1890
    %v1896 = vmul.f32 1.0, %v1895
    %v1897 = vsel %vm329, %v1857, %v1881
    %v1898 = vsel %vm330, %v1858, %v1896
    %v1899 = vmul.f32 %v1897, %v1807
    %v1900 = vmul.f32 %v1897, %v1898
    %1902 = vrot.lane.b32.xlu0 %v1900, 64
    %v1903 = vpop.permute.xlu0 %1902
    %v1905 = vadd.f32 %v1899, %v1903
    %v1906 = vtanh.pop %v1905
    %v1907 = vmul.f32 %v1898, %v1906
    %1909 = vrot.lane.b32.xlu0 %v1907, 64
    %v1910 = vpop.permute.xlu0 %1909
    %v1911 = vsel %vm191, %v1910, 0
    %1913 = vmatpush.msra.mxu0 0.0
    %1914 = vmatpush.msra.mxu0 0.0
    %1915 = vmatpush.msra.mxu0 0.0
    %1916 = vmatpush.msra.mxu0 0.0
    %1917 = vmatpush.msra.mxu0 0.0
    %1918 = vmatpush.msra.mxu0 0.0
    %1919 = vmatpush.msra.mxu0 0.0
    %1920 = vmatpush.msra.mxu0 0.0
    %1921 = vmatpush.msra.mxu0 %v1307
    %1922 = vmatpush.msra.mxu0 %v1305
    %1923 = vmatpush.msra.mxu0 %v1303
    %1924 = vmatpush.msra.mxu0 %v1301
    %1925 = vmatpush.msra.mxu0 %v1299
    %1926 = vmatpush.msra.mxu0 %v1297
    %1927 = vmatpush.msra.mxu0 %v1295
    %1928 = vmatpush.msra.mxu0 %v1293
    %1929 = vmatmul.f32.gmra.mxu0 %v1911
    %v1930 = vpop.f32.mrf.mxu0
    %v1931 = vadd.f32 0.0, %v1930
    %1932 = vdwg.mxu0
    %1933 = vmatpush.msra.mxu0 0.0
    %1934 = vmatpush.msra.mxu0 0.0
    %1935 = vmatpush.msra.mxu0 0.0
    %1936 = vmatpush.msra.mxu0 0.0
    %1937 = vmatpush.msra.mxu0 0.0
    %1938 = vmatpush.msra.mxu0 0.0
    %1939 = vmatpush.msra.mxu0 0.0
    %1940 = vmatpush.msra.mxu0 0.0
    %1941 = vmatpush.msra.mxu0 %v1308
    %1942 = vmatpush.msra.mxu0 %v1306
    %1943 = vmatpush.msra.mxu0 %v1304
    %1944 = vmatpush.msra.mxu0 %v1302
    %1945 = vmatpush.msra.mxu0 %v1300
    %1946 = vmatpush.msra.mxu0 %v1298
    %1947 = vmatpush.msra.mxu0 %v1296
    %1948 = vmatpush.msra.mxu0 %v1294
    %1949 = vmatmul.f32.gmra.mxu0 %v1911
    %v1950 = vpop.f32.mrf.mxu0
    %v1951 = vadd.f32 0.0, %v1950
    %1952 = vdwg.mxu0
    %v1953 = vadd.f32 %v1321, %v1931
    %v1954 = vadd.f32 %v1322, %v1951
    %v1955 = vtanh.pop %v1953
    %v1956 = vtanh.pop %v1954
    %v1957 = vxor.u32 %v1953, 2147483648
    %v1958 = vxor.u32 %v1954, 2147483648
    %v1959 = vmul.f32 %v1957, 1.442695
    %v1960 = vpow.pop %v1959
    %v1961 = vmul.f32 %v1958, 1.442695
    %v1962 = vpow.pop %v1961
    %v1963 = vadd.f32 %v1960, 1.0
    %v1964 = vadd.f32 %v1962, 1.0
    %v1965 = vrcp.pop %v1963
    %v1966 = vmul.f32 %v1963, %v1965
    %v1967 = vsub.f32 1.0, %v1966
    %v1968 = vmul.f32 %v1965, %v1967
    %v1969 = vadd.f32 %v1965, %v1968
    %vm1970 = vweird.f32 %v1963
    %vm1971 = vweird.f32 %v1965
    %vm1972 = vmor %vm1970, %vm1971
    %v1973 = vsel %vm1972, %v1965, %v1969
    %v1974 = vand.u32 2147483647, %v1963
    %vm1975 = vcmp.eq.f32.partialorder %v1974, 8.507059e+37
    %v1976 = vand.u32 %v1963, 2147483648
    %v1977 = vor.u32 1.1754944e-38, %v1976
    %v1978 = vsel %vm1975, %v1977, %v1973
    %v1979 = vmul.f32 1.0, %v1978
    %v1980 = vrcp.pop %v1964
    %v1981 = vmul.f32 %v1964, %v1980
    %v1982 = vsub.f32 1.0, %v1981
    %v1983 = vmul.f32 %v1980, %v1982
    %v1984 = vadd.f32 %v1980, %v1983
    %vm1985 = vweird.f32 %v1964
    %vm1986 = vweird.f32 %v1980
    %vm1987 = vmor %vm1985, %vm1986
    %v1988 = vsel %vm1987, %v1980, %v1984
    %v1989 = vand.u32 2147483647, %v1964
    %vm1990 = vcmp.eq.f32.partialorder %v1989, 8.507059e+37
    %v1991 = vand.u32 %v1964, 2147483648
    %v1992 = vor.u32 1.1754944e-38, %v1991
    %v1993 = vsel %vm1990, %v1992, %v1988
    %v1994 = vmul.f32 1.0, %v1993
    %v1995 = vsel %vm329, %v1955, %v1979
    %v1996 = vsel %vm330, %v1956, %v1994
    %v1997 = vmul.f32 %v1995, %v1905
    %v1998 = vmul.f32 %v1995, %v1996
    %2000 = vrot.lane.b32.xlu0 %v1998, 64
    %v2001 = vpop.permute.xlu0 %2000
    %v2003 = vadd.f32 %v1997, %v2001
    %v2004 = vtanh.pop %v2003
    %v2005 = vmul.f32 %v1996, %v2004
    %2007 = vrot.lane.b32.xlu0 %v2005, 64
    %v2008 = vpop.permute.xlu0 %2007
    %v2009 = vsel %vm191, %v2008, 0
    %2011 = vmatpush.msra.mxu0 0.0
    %2012 = vmatpush.msra.mxu0 0.0
    %2013 = vmatpush.msra.mxu0 0.0
    %2014 = vmatpush.msra.mxu0 0.0
    %2015 = vmatpush.msra.mxu0 0.0
    %2016 = vmatpush.msra.mxu0 0.0
    %2017 = vmatpush.msra.mxu0 0.0
    %2018 = vmatpush.msra.mxu0 0.0
    %2019 = vmatpush.msra.mxu0 %v1307
    %2020 = vmatpush.msra.mxu0 %v1305
    %2021 = vmatpush.msra.mxu0 %v1303
    %2022 = vmatpush.msra.mxu0 %v1301
    %2023 = vmatpush.msra.mxu0 %v1299
    %2024 = vmatpush.msra.mxu0 %v1297
    %2025 = vmatpush.msra.mxu0 %v1295
    %2026 = vmatpush.msra.mxu0 %v1293
    %2027 = vmatmul.f32.gmra.mxu0 %v2009
    %v2028 = vpop.f32.mrf.mxu0
    %v2029 = vadd.f32 0.0, %v2028
    %2030 = vdwg.mxu0
    %2031 = vmatpush.msra.mxu0 0.0
    %2032 = vmatpush.msra.mxu0 0.0
    %2033 = vmatpush.msra.mxu0 0.0
    %2034 = vmatpush.msra.mxu0 0.0
    %2035 = vmatpush.msra.mxu0 0.0
    %2036 = vmatpush.msra.mxu0 0.0
    %2037 = vmatpush.msra.mxu0 0.0
    %2038 = vmatpush.msra.mxu0 0.0
    %2039 = vmatpush.msra.mxu0 %v1308
    %2040 = vmatpush.msra.mxu0 %v1306
    %2041 = vmatpush.msra.mxu0 %v1304
    %2042 = vmatpush.msra.mxu0 %v1302
    %2043 = vmatpush.msra.mxu0 %v1300
    %2044 = vmatpush.msra.mxu0 %v1298
    %2045 = vmatpush.msra.mxu0 %v1296
    %2046 = vmatpush.msra.mxu0 %v1294
    %2047 = vmatmul.f32.gmra.mxu0 %v2009
    %v2048 = vpop.f32.mrf.mxu0
    %v2049 = vadd.f32 0.0, %v2048
    %2050 = vdwg.mxu0
    %v2051 = vadd.f32 %v1323, %v2029
    %v2052 = vadd.f32 %v1324, %v2049
    %v2053 = vtanh.pop %v2051
    %v2054 = vtanh.pop %v2052
    %v2055 = vxor.u32 %v2051, 2147483648
    %v2056 = vxor.u32 %v2052, 2147483648
    %v2057 = vmul.f32 %v2055, 1.442695
    %v2058 = vpow.pop %v2057
    %v2059 = vmul.f32 %v2056, 1.442695
    %v2060 = vpow.pop %v2059
    %v2061 = vadd.f32 %v2058, 1.0
    %v2062 = vadd.f32 %v2060, 1.0
    %v2063 = vrcp.pop %v2061
    %v2064 = vmul.f32 %v2061, %v2063
    %v2065 = vsub.f32 1.0, %v2064
    %v2066 = vmul.f32 %v2063, %v2065
    %v2067 = vadd.f32 %v2063, %v2066
    %vm2068 = vweird.f32 %v2061
    %vm2069 = vweird.f32 %v2063
    %vm2070 = vmor %vm2068, %vm2069
    %v2071 = vsel %vm2070, %v2063, %v2067
    %v2072 = vand.u32 2147483647, %v2061
    %vm2073 = vcmp.eq.f32.partialorder %v2072, 8.507059e+37
    %v2074 = vand.u32 %v2061, 2147483648
    %v2075 = vor.u32 1.1754944e-38, %v2074
    %v2076 = vsel %vm2073, %v2075, %v2071
    %v2077 = vmul.f32 1.0, %v2076
    %v2078 = vrcp.pop %v2062
    %v2079 = vmul.f32 %v2062, %v2078
    %v2080 = vsub.f32 1.0, %v2079
    %v2081 = vmul.f32 %v2078, %v2080
    %v2082 = vadd.f32 %v2078, %v2081
    %vm2083 = vweird.f32 %v2062
    %vm2084 = vweird.f32 %v2078
    %vm2085 = vmor %vm2083, %vm2084
    %v2086 = vsel %vm2085, %v2078, %v2082
    %v2087 = vand.u32 2147483647, %v2062
    %vm2088 = vcmp.eq.f32.partialorder %v2087, 8.507059e+37
    %v2089 = vand.u32 %v2062, 2147483648
    %v2090 = vor.u32 1.1754944e-38, %v2089
    %v2091 = vsel %vm2088, %v2090, %v2086
    %v2092 = vmul.f32 1.0, %v2091
    %v2093 = vsel %vm329, %v2053, %v2077
    %v2094 = vsel %vm330, %v2054, %v2092
    %v2095 = vmul.f32 %v2093, %v2003
    %v2096 = vmul.f32 %v2093, %v2094
    %2098 = vrot.lane.b32.xlu0 %v2096, 64
    %v2099 = vpop.permute.xlu0 %2098
    %v2101 = vadd.f32 %v2095, %v2099
    %v2102 = vtanh.pop %v2101
    %v2103 = vmul.f32 %v2094, %v2102
    %2106 = vrot.lane.b32.xlu0 %v2103, 64
    %v2107 = vpop.permute.xlu0 %2106
    %v2109 = vsel %vm1150, %v1420, %v2107
    %v2112 = vsel %vm1150, %v1518, %v2008
    %v2115 = vsel %vm1150, %v1616, %v1910
    %v2118 = vsel %vm1150, %v1714, %v1812
    %v2119 = vsel %vm1150, %v1812, %v1714
    %v2120 = vsel %vm1150, %v1910, %v1616
    %v2121 = vsel %vm1150, %v2008, %v1518
    %v2122 = vsel %vm1150, %v2107, %v1420
    %v2123 = vld [vmem:[%s7] sm:$0xff]
    %v2124 = vld [vmem:[%s7 + $0x8] sm:$0xff]
    %v2125 = vld [vmem:[%s7 + $0x10] sm:$0xff]
    %v2126 = vld [vmem:[%s7 + $0x18] sm:$0xff]
    %v2127 = vld [vmem:[%s7 + $0x20] sm:$0xff]
    %v2128 = vld [vmem:[%s7 + $0x28] sm:$0xff]
    %v2129 = vld [vmem:[%s7 + $0x30] sm:$0xff]
    %v2130 = vld [vmem:[%s7 + $0x38] sm:$0xff]
    %v2132 = vsel %vm191, %v2109, 0
    %v2135 = vsel %vm191, %v2112, 0
    %v2138 = vsel %vm191, %v2115, 0
    %v2141 = vsel %vm191, %v2118, 0
    %v2144 = vsel %vm191, %v2119, 0
    %v2147 = vsel %vm191, %v2120, 0
    %v2150 = vsel %vm191, %v2121, 0
    %v2153 = vsel %vm191, %v2122, 0
    %2155 = vmatpush.msra.mxu0 0.0
    %2156 = vmatpush.msra.mxu0 0.0
    %2157 = vmatpush.msra.mxu0 0.0
    %2158 = vmatpush.msra.mxu0 0.0
    %2159 = vmatpush.msra.mxu0 0.0
    %2160 = vmatpush.msra.mxu0 0.0
    %2161 = vmatpush.msra.mxu0 0.0
    %2162 = vmatpush.msra.mxu0 0.0
    %2163 = vmatpush.msra.mxu0 %v2130
    %2164 = vmatpush.msra.mxu0 %v2129
    %2165 = vmatpush.msra.mxu0 %v2128
    %2166 = vmatpush.msra.mxu0 %v2127
    %2167 = vmatpush.msra.mxu0 %v2126
    %2168 = vmatpush.msra.mxu0 %v2125
    %2169 = vmatpush.msra.mxu0 %v2124
    %2170 = vmatpush.msra.mxu0 %v2123
    %2171 = vmatmul.f32.gmra.mxu0 %v2132
    %v2172 = vpop.f32.mrf.mxu0
    %v2173 = vadd.f32 0.0, %v2172
    %2174 = vmatmul.f32.gmra.mxu0 %v2135
    %v2175 = vpop.f32.mrf.mxu0
    %v2176 = vadd.f32 0.0, %v2175
    %2177 = vmatmul.f32.gmra.mxu0 %v2138
    %v2178 = vpop.f32.mrf.mxu0
    %v2179 = vadd.f32 0.0, %v2178
    %2180 = vmatmul.f32.gmra.mxu0 %v2141
    %v2181 = vpop.f32.mrf.mxu0
    %v2182 = vadd.f32 0.0, %v2181
    %2183 = vmatmul.f32.gmra.mxu0 %v2144
    %v2184 = vpop.f32.mrf.mxu0
    %v2185 = vadd.f32 0.0, %v2184
    %2186 = vmatmul.f32.gmra.mxu0 %v2147
    %v2187 = vpop.f32.mrf.mxu0
    %v2188 = vadd.f32 0.0, %v2187
    %2189 = vmatmul.f32.gmra.mxu0 %v2150
    %v2190 = vpop.f32.mrf.mxu0
    %v2191 = vadd.f32 0.0, %v2190
    %2192 = vmatmul.f32.gmra.mxu0 %v2153
    %v2193 = vpop.f32.mrf.mxu0
    %v2194 = vadd.f32 0.0, %v2193
    %2195 = vdwg.mxu0
    %2197 = vrot.lane.b32.xlu0 %v2176, 1
    %v2198 = vpop.permute.xlu0 %2197
    %2201 = vrot.lane.b32.xlu0 %v2179, 2
    %v2202 = vpop.permute.xlu0 %2201
    %2205 = vrot.lane.b32.xlu0 %v2182, 3
    %v2206 = vpop.permute.xlu0 %2205
    %2209 = vrot.lane.b32.xlu0 %v2185, 4
    %v2210 = vpop.permute.xlu0 %2209
    %2213 = vrot.lane.b32.xlu0 %v2188, 5
    %v2214 = vpop.permute.xlu0 %2213
    %2217 = vrot.lane.b32.xlu0 %v2191, 6
    %v2218 = vpop.permute.xlu0 %2217
    %2221 = vrot.lane.b32.xlu0 %v2194, 7
    %v2222 = vpop.permute.xlu0 %2221
    %vm2224 = vcmask 7168
    %v2225 = vsel %vm2224, %v2173, %v2198
    %vm2226 = vcmask 15360
    %v2227 = vsel %vm2226, %v2225, %v2202
    %vm2228 = vcmask 23552
    %v2229 = vsel %vm2228, %v2227, %v2206
    %vm2230 = vcmask 31744
    %v2231 = vsel %vm2230, %v2229, %v2210
    %vm2232 = vcmask 39936
    %v2233 = vsel %vm2232, %v2231, %v2214
    %vm2234 = vcmask 48128
    %v2235 = vsel %vm2234, %v2233, %v2218
    %vm2236 = vcmask 56320
    %v2237 = vsel %vm2236, %v2235, %v2222
    %v2238 = vld [vmem:[#allocation2] sm:$0x1]
    %v2240 = vperm.slane %v2238, 0
    %2241 = vset.pattern.permute.xlu0 0
    %2242 = vperm.xlu0 %2241, %v2240
    %v2243 = vpop.permute.xlu0 %2242
    %v2245 = vadd.f32 %v2237, %v2243
    %vm2246 = vcmask 64512
    %v2247 = vsel %vm2246, %v2245, -inf
    %2248 = vmax.xlane.f32.xlu0 %v2247
    %v2249 = vpop.xlane.xlu0 %2248
    %v2250 = vsub.f32 %v2245, %v2249
    %v2251 = vmul.f32 %v2250, 1.442695
    %v2252 = vpow.pop %v2251
    %v2253 = vsel %vm2246, %v2252, 0.0
    %2254 = vadd.xlane.f32.xlu0 %v2253
    %v2255 = vpop.xlane.xlu0 %2254
    %v2256 = vrcp.pop %v2255
    %v2257 = vmul.f32 %v2255, %v2256
    %v2258 = vsub.f32 1.0, %v2257
    %v2259 = vmul.f32 %v2256, %v2258
    %v2260 = vadd.f32 %v2256, %v2259
    %vm2261 = vweird.f32 %v2255
    %vm2262 = vweird.f32 %v2256
    %vm2263 = vmor %vm2261, %vm2262
    %v2264 = vsel %vm2263, %v2256, %v2260
    %v2265 = vand.u32 2147483647, %v2255
    %vm2266 = vcmp.eq.f32.partialorder %v2265, 8.507059e+37
    %v2267 = vand.u32 %v2255, 2147483648
    %v2268 = vor.u32 1.1754944e-38, %v2267
    %v2269 = vsel %vm2266, %v2268, %v2264
    %v2270 = vmul.f32 %v2252, %v2269
    %2272 = vset.pattern.permute.xlu0 0
    %2273 = vperm.xlu0 %2272, %v2270
    %v2274 = vpop.permute.xlu0 %2273
    %v2276 = vmul.f32 %v2274, %v2109
    %v2277 = vadd.f32 %v2276, 0.0
    %2278 = vset.pattern.permute.xlu0 1
    %2279 = vperm.xlu0 %2278, %v2270
    %v2280 = vpop.permute.xlu0 %2279
    %v2282 = vmul.f32 %v2280, %v2112
    %v2283 = vadd.f32 %v2277, %v2282
    %2284 = vset.pattern.permute.xlu0 2
    %2285 = vperm.xlu0 %2284, %v2270
    %v2286 = vpop.permute.xlu0 %2285
    %v2288 = vmul.f32 %v2286, %v2115
    %v2289 = vadd.f32 %v2283, %v2288
    %2290 = vset.pattern.permute.xlu0 3
    %2291 = vperm.xlu0 %2290, %v2270
    %v2292 = vpop.permute.xlu0 %2291
    %v2294 = vmul.f32 %v2292, %v2118
    %v2295 = vadd.f32 %v2289, %v2294
    %2296 = vset.pattern.permute.xlu0 4
    %2297 = vperm.xlu0 %2296, %v2270
    %v2298 = vpop.permute.xlu0 %2297
    %v2300 = vmul.f32 %v2298, %v2119
    %v2301 = vadd.f32 %v2295, %v2300
    %2302 = vset.pattern.permute.xlu0 5
    %2303 = vperm.xlu0 %2302, %v2270
    %v2304 = vpop.permute.xlu0 %2303
    %v2306 = vmul.f32 %v2304, %v2120
    %v2307 = vadd.f32 %v2301, %v2306
    %2308 = vset.pattern.permute.xlu0 6
    %2309 = vperm.xlu0 %2308, %v2270
    %v2310 = vpop.permute.xlu0 %2309
    %v2312 = vmul.f32 %v2310, %v2121
    %v2313 = vadd.f32 %v2307, %v2312
    %2314 = vset.pattern.permute.xlu0 7
    %2315 = vperm.xlu0 %2314, %v2270
    %v2316 = vpop.permute.xlu0 %2315
    %v2318 = vmul.f32 %v2316, %v2122
    %v2319 = vadd.f32 %v2313, %v2318
    %v2320 = vld [vmem:[%s9] sm:$0xff]
    %v2321 = vld [vmem:[%s9 + $0x8] sm:$0xff]
    %v2322 = vld [vmem:[%s9 + $0x10] sm:$0xff]
    %v2323 = vld [vmem:[%s9 + $0x18] sm:$0xff]
    %v2324 = vld [vmem:[%s9 + $0x20] sm:$0xff]
    %v2325 = vld [vmem:[%s9 + $0x28] sm:$0xff]
    %v2326 = vld [vmem:[%s9 + $0x30] sm:$0xff]
    %v2327 = vld [vmem:[%s9 + $0x38] sm:$0xff]
    %v2328 = vld [vmem:[%s10] sm:$0x1]
    %v2330 = vperm.slane %v2328, 0
    %v2333 = vsel %vm191, %v2319, 0
    %2335 = vmatpush.msra.mxu0 0.0
    %2336 = vmatpush.msra.mxu0 0.0
    %2337 = vmatpush.msra.mxu0 0.0
    %2338 = vmatpush.msra.mxu0 0.0
    %2339 = vmatpush.msra.mxu0 0.0
    %2340 = vmatpush.msra.mxu0 0.0
    %2341 = vmatpush.msra.mxu0 0.0
    %2342 = vmatpush.msra.mxu0 0.0
    %2343 = vmatpush.msra.mxu0 %v2327
    %2344 = vmatpush.msra.mxu0 %v2326
    %2345 = vmatpush.msra.mxu0 %v2325
    %2346 = vmatpush.msra.mxu0 %v2324
    %2347 = vmatpush.msra.mxu0 %v2323
    %2348 = vmatpush.msra.mxu0 %v2322
    %2349 = vmatpush.msra.mxu0 %v2321
    %2350 = vmatpush.msra.mxu0 %v2320
    %2351 = vmatmul.f32.gmra.mxu0 %v2333
    %v2352 = vpop.f32.mrf.mxu0
    %v2353 = vadd.f32 %v2330, %v2352
    %2354 = vdwg.mxu0
    %2355 = vst.msk [vmem:[%s11] sm:$0xff] %vm2226, %v2353
    // Predicated region
    $region58: #{tpu_custom_call.1} parent=1 // pred_check
      _
    $region59: #{tpu_custom_call.1} parent=1 // pred_check_branch
      %2357 = sbr.rel (0) target = $region61
    $region60: #{tpu_custom_call.1} parent=1 // pred_region
      _
    $region61: #{tpu_custom_call.1} parent=1 // pred_fallthru
      _
    // Predicated region
    $region62: #{tpu_custom_call.1} parent=1 // pred_check
      _
    $region63: #{tpu_custom_call.1} parent=1 // pred_check_branch
      %2359 = sbr.rel (0) target = $region65
    $region64: #{tpu_custom_call.1} parent=1 // pred_region
      _
    $region65: #{tpu_custom_call.1} parent=1 // pred_fallthru
      _
    %2360 = vsyncpa [#allocation4], 1
    %2361 = vsyncpa [#allocation6], 1

</llo_original>
